<compile_context>
chip_gen: v7x
topology: tpu7x:2x2x1
jax: 0.10.0
libtpu: 0.0.40
codegen_flags: <defaults>
</compile_context>

<pallas_src>
import functools

import jax
import jax.numpy as jnp
from jax.experimental import pallas as pl
from jax.experimental.pallas import tpu as pltpu


# ----------------------------------------------------------------------------
# Fused RB kernel
# ----------------------------------------------------------------------------
def _im2col_conv(xpad, w, H, W):
    """3x3 'same' conv as one matmul.

    xpad: (Bb, H+2, W+2, C) value (matmul dtype), w: (9*C, Cout) value.
    Returns (Bb*H*W, Cout) in f32.
    """
    Bb = xpad.shape[0]
    C = xpad.shape[-1]
    # Tap order (dh-major, then dw, then cin) matches w.reshape(9*C, Cout)
    # of an HWIO (3,3,Cin,Cout) weight.
    cols = jnp.concatenate(
        [xpad[:, dh:dh + H, dw:dw + W, :] for dh in range(3) for dw in range(3)],
        axis=-1)                                     # (Bb, H, W, 9*C)
    patches = cols.reshape(Bb * H * W, 9 * C)        # leading-dim merge only
    return jnp.dot(patches, w, preferred_element_type=jnp.float32)


def _rb_kernel(x_ref, w1_ref, b1_ref, w2_ref, b2_ref, out_ref,
               xpad_s, tpad_s, *, matmul_dtype):
    Bb, H, W, C = x_ref.shape
    x = x_ref[...]                                   # (Bb, H, W, C) f32

    # ---- conv1: zero-pad into scratch, single im2col matmul, bias+ReLU epilogue
    xpad_s[...] = jnp.zeros_like(xpad_s)
    xpad_s[:, 1:H + 1, 1:W + 1, :] = x
    t = _im2col_conv(xpad_s[...].astype(matmul_dtype), w1_ref[...], H, W)
    t = jnp.maximum(t + b1_ref[...], 0.0)            # (Bb*H*W, C) f32

    # ---- conv2 on the padded intermediate, bias + residual epilogue
    tpad_s[...] = jnp.zeros_like(tpad_s)
    tpad_s[:, 1:H + 1, 1:W + 1, :] = t.reshape(Bb, H, W, C)
    res = _im2col_conv(tpad_s[...].astype(matmul_dtype), w2_ref[...], H, W)
    res = res + b2_ref[...] + x.reshape(Bb * H * W, C)

    out_ref[...] = res.reshape(Bb, H, W, C)


def rb_forward(x_nchw, params, *, batch_block=1, matmul_dtype=jnp.bfloat16):
    """RB forward. x_nchw: (B, C, H, W) f32; params: dict with w1,b1,w2,b2 (HWIO)."""
    w1, b1, w2, b2 = params["w1"], params["b1"], params["w2"], params["b2"]
    B, C, H, W = x_nchw.shape
    assert w1.shape == (3, 3, C, C) and w2.shape == (3, 3, C, C)

    x = jnp.transpose(x_nchw, (0, 2, 3, 1)).astype(jnp.float32)     # NHWC
    Bb = max(1, min(batch_block, B))
    assert B % Bb == 0, (B, Bb)

    # (3,3,Cin,Cout) -> (9*Cin, Cout); row-major tap order matches the kernel's concat.
    w1m = w1.reshape(9 * C, C).astype(matmul_dtype)
    w2m = w2.reshape(9 * C, C).astype(matmul_dtype)
    b1m = b1.reshape(1, C).astype(jnp.float32)
    b2m = b2.reshape(1, C).astype(jnp.float32)

    flops = 2 * (2 * B * H * W * (9 * C) * C)                 # two convs
    bytes_accessed = (2 * B * H * W * C * 4                   # x in + out (f32)
                      + 2 * 9 * C * C * 2 + 2 * C * 4)        # weights (bf16) + biases

    out = pl.pallas_call(
        functools.partial(_rb_kernel, matmul_dtype=matmul_dtype),
        grid=(B // Bb,),
        out_shape=jax.ShapeDtypeStruct((B, H, W, C), jnp.float32),
        in_specs=[
            pl.BlockSpec((Bb, H, W, C), lambda i: (i, 0, 0, 0)),
            pl.BlockSpec((9 * C, C), lambda i: (0, 0)),
            pl.BlockSpec((1, C), lambda i: (0, 0)),
            pl.BlockSpec((9 * C, C), lambda i: (0, 0)),
            pl.BlockSpec((1, C), lambda i: (0, 0)),
        ],
        out_specs=pl.BlockSpec((Bb, H, W, C), lambda i: (i, 0, 0, 0)),
        scratch_shapes=[
            pltpu.VMEM((Bb, H + 2, W + 2, C), jnp.float32),   # padded x
            pltpu.VMEM((Bb, H + 2, W + 2, C), jnp.float32),   # padded relu(conv1)
        ],
        compiler_params=pltpu.CompilerParams(
            dimension_semantics=("parallel",),
            vmem_limit_bytes=64 * 1024 * 1024),
        cost_estimate=pl.CostEstimate(
            flops=flops, transcendentals=0, bytes_accessed=bytes_accessed),
    )(x, w1m, b1m, w2m, b2m)

    return jnp.transpose(out, (0, 3, 1, 2))                   # back to NCHW


# ----------------------------------------------------------------------------
# Pure-JAX reference (matches the PyTorch RB forward).
# ----------------------------------------------------------------------------
def _ref_forward(x_nchw, params, matmul_dtype=None):
    """matmul_dtype=None -> full f32 reference; bf16 -> same dtype policy as kernel."""
    w1, b1, w2, b2 = params["w1"], params["b1"], params["w2"], params["b2"]
    x = jnp.transpose(x_nchw, (0, 2, 3, 1)).astype(jnp.float32)

    def conv(h, w):
        if matmul_dtype is not None:
            h = h.astype(matmul_dtype)
            w = w.astype(matmul_dtype)
        return jax.lax.conv_general_dilated(
            h, w, (1, 1), "SAME",
            dimension_numbers=("NHWC", "HWIO", "NHWC"),
            preferred_element_type=jnp.float32)

    t = jnp.maximum(conv(x, w1) + b1.reshape(1, 1, 1, -1), 0.0)
    res = conv(t, w2) + b2.reshape(1, 1, 1, -1) + x
    return jnp.transpose(res, (0, 3, 1, 2))


# ----------------------------------------------------------------------------
# Deterministic parameter init (shapes follow RB.__init__ with bn=False, bias=True).
# ----------------------------------------------------------------------------
def init_params(key, n_feat, ksize=3):
    k1, k2, k3, k4 = jax.random.split(key, 4)
    fan = n_feat * ksize * ksize
    w1 = jax.random.normal(k1, (ksize, ksize, n_feat, n_feat), jnp.float32) / jnp.sqrt(fan)
    b1 = 0.01 * jax.random.normal(k2, (n_feat,), jnp.float32)
    w2 = jax.random.normal(k3, (ksize, ksize, n_feat, n_feat), jnp.float32) / jnp.sqrt(fan)
    b2 = 0.01 * jax.random.normal(k4, (n_feat,), jnp.float32)
    return {"w1": w1, "b1": b1, "w2": w2, "b2": b2}


if __name__ == "__main__":
    B, n_feat, H, W = 2, 64, 16, 16

    key = jax.random.PRNGKey(0)
    kp, kx = jax.random.split(key)
    params = init_params(kp, n_feat)
    x = jax.random.normal(kx, (B, n_feat, H, W), jnp.float32)

    fwd = jax.jit(rb_forward)
    y = jax.block_until_ready(fwd(x, params))
    assert y.shape == (B, n_feat, H, W), y.shape

    # Implementation check: reference with the same bf16-matmul / f32-accumulate policy.
    y_ref_same = _ref_forward(x, params, matmul_dtype=jnp.bfloat16)
    err_impl = float(jnp.max(jnp.abs(y - y_ref_same)))
    assert err_impl < 1e-2, f"max abs err vs bf16-policy reference: {err_impl}"

    # Fidelity check: full-f32 reference (bf16 matmul operands bound the error).
    y_ref_f32 = _ref_forward(x, params, matmul_dtype=None)
    err_f32 = float(jnp.max(jnp.abs(y - y_ref_f32)))
    assert err_f32 < 5e-2, f"max abs err vs f32 reference: {err_f32}"

    print("KERNEL_OK")
</pallas_src>

<mosaic_0001>
module attributes {stable_mosaic.version = 11 : i64} {
  func.func @_rb_kernel(%arg0: i32, %arg1: memref<1x16x16x64xf32, #tpu.memory_space<vmem>>, %arg2: memref<576x64xbf16, #tpu.memory_space<vmem>>, %arg3: memref<1x64xf32, #tpu.memory_space<vmem>>, %arg4: memref<576x64xbf16, #tpu.memory_space<vmem>>, %arg5: memref<1x64xf32, #tpu.memory_space<vmem>>, %arg6: memref<1x16x16x64xf32, #tpu.memory_space<vmem>>, %arg7: memref<1x18x18x64xf32, #tpu.memory_space<vmem>>, %arg8: memref<1x18x18x64xf32, #tpu.memory_space<vmem>>) attributes {dimension_semantics = [#tpu.dimension_semantics<parallel>], iteration_bounds = array<i64: 2>, scalar_prefetch = 0 : i64, scratch_operands = 2 : i64, tpu.core_type = #tpu.core_type<tc>, window_params = [{transform_indices = @transform_0, window_bounds = array<i64: 1, 16, 16, 64>}, {pipeline_mode = #tpu.pipeline_mode<synchronous>, transform_indices = @transform_1, window_bounds = array<i64: 576, 64>}, {pipeline_mode = #tpu.pipeline_mode<synchronous>, transform_indices = @transform_2, window_bounds = array<i64: 1, 64>}, {pipeline_mode = #tpu.pipeline_mode<synchronous>, transform_indices = @transform_3, window_bounds = array<i64: 576, 64>}, {pipeline_mode = #tpu.pipeline_mode<synchronous>, transform_indices = @transform_4, window_bounds = array<i64: 1, 64>}, {transform_indices = @transform_5, window_bounds = array<i64: 1, 16, 16, 64>}]} {
    %c0 = arith.constant 0 : index
    %c0_0 = arith.constant 0 : index
    %c0_1 = arith.constant 0 : index
    %c0_2 = arith.constant 0 : index
    %0 = vector.load %arg1[%c0, %c0_0, %c0_1, %c0_2] : memref<1x16x16x64xf32, #tpu.memory_space<vmem>>, vector<1x16x16x64xf32>
    %cst = arith.constant 0.000000e+00 : f32
    %1 = vector.broadcast %cst : f32 to vector<1x18x18x64xf32>
    %c0_3 = arith.constant 0 : index
    %c0_4 = arith.constant 0 : index
    %c0_5 = arith.constant 0 : index
    %c0_6 = arith.constant 0 : index
    %2 = vector.load %arg7[%c0_3, %c0_4, %c0_5, %c0_6] : memref<1x18x18x64xf32, #tpu.memory_space<vmem>>, vector<1x18x18x64xf32>
    tpu.vector_store %arg7[%c0_3, %c0_4, %c0_5, %c0_6], %1 {strides = array<i32>} : memref<1x18x18x64xf32, #tpu.memory_space<vmem>>, vector<1x18x18x64xf32>,
    %c0_7 = arith.constant 0 : index
    %c1 = arith.constant 1 : index
    %c1_8 = arith.constant 1 : index
    %c0_9 = arith.constant 0 : index
    %3 = vector.load %arg7[%c0_7, %c1, %c1_8, %c0_9] : memref<1x18x18x64xf32, #tpu.memory_space<vmem>>, vector<1x16x16x64xf32>
    tpu.vector_store %arg7[%c0_7, %c1, %c1_8, %c0_9], %0 {strides = array<i32>} : memref<1x18x18x64xf32, #tpu.memory_space<vmem>>, vector<1x16x16x64xf32>,
    %c0_10 = arith.constant 0 : index
    %c0_11 = arith.constant 0 : index
    %c0_12 = arith.constant 0 : index
    %c0_13 = arith.constant 0 : index
    %4 = vector.load %arg7[%c0_10, %c0_11, %c0_12, %c0_13] : memref<1x18x18x64xf32, #tpu.memory_space<vmem>>, vector<1x18x18x64xf32>
    %5 = arith.truncf %4 : vector<1x18x18x64xf32> to vector<1x18x18x64xbf16>
    %c0_14 = arith.constant 0 : index
    %c0_15 = arith.constant 0 : index
    %6 = vector.load %arg2[%c0_14, %c0_15] : memref<576x64xbf16, #tpu.memory_space<vmem>>, vector<576x64xbf16>
    %7 = vector.extract_strided_slice %5 {offsets = [0, 0, 0, 0], sizes = [1, 16, 16, 64], strides = [1, 1, 1, 1]} : vector<1x18x18x64xbf16> to vector<1x16x16x64xbf16>
    %8 = vector.extract_strided_slice %5 {offsets = [0, 0, 1, 0], sizes = [1, 16, 16, 64], strides = [1, 1, 1, 1]} : vector<1x18x18x64xbf16> to vector<1x16x16x64xbf16>
    %9 = vector.extract_strided_slice %5 {offsets = [0, 0, 2, 0], sizes = [1, 16, 16, 64], strides = [1, 1, 1, 1]} : vector<1x18x18x64xbf16> to vector<1x16x16x64xbf16>
    %10 = vector.extract_strided_slice %5 {offsets = [0, 1, 0, 0], sizes = [1, 16, 16, 64], strides = [1, 1, 1, 1]} : vector<1x18x18x64xbf16> to vector<1x16x16x64xbf16>
    %11 = vector.extract_strided_slice %5 {offsets = [0, 1, 1, 0], sizes = [1, 16, 16, 64], strides = [1, 1, 1, 1]} : vector<1x18x18x64xbf16> to vector<1x16x16x64xbf16>
    %12 = vector.extract_strided_slice %5 {offsets = [0, 1, 2, 0], sizes = [1, 16, 16, 64], strides = [1, 1, 1, 1]} : vector<1x18x18x64xbf16> to vector<1x16x16x64xbf16>
    %13 = vector.extract_strided_slice %5 {offsets = [0, 2, 0, 0], sizes = [1, 16, 16, 64], strides = [1, 1, 1, 1]} : vector<1x18x18x64xbf16> to vector<1x16x16x64xbf16>
    %14 = vector.extract_strided_slice %5 {offsets = [0, 2, 1, 0], sizes = [1, 16, 16, 64], strides = [1, 1, 1, 1]} : vector<1x18x18x64xbf16> to vector<1x16x16x64xbf16>
    %15 = vector.extract_strided_slice %5 {offsets = [0, 2, 2, 0], sizes = [1, 16, 16, 64], strides = [1, 1, 1, 1]} : vector<1x18x18x64xbf16> to vector<1x16x16x64xbf16>
    %16 = tpu.concatenate %7, %8, %9, %10, %11, %12, %13, %14, %15 in 3 : vector<1x16x16x64xbf16>, vector<1x16x16x64xbf16>, vector<1x16x16x64xbf16>, vector<1x16x16x64xbf16>, vector<1x16x16x64xbf16>, vector<1x16x16x64xbf16>, vector<1x16x16x64xbf16>, vector<1x16x16x64xbf16>, vector<1x16x16x64xbf16> -> vector<1x16x16x576xbf16>
    %17 = vector.shape_cast %16 : vector<1x16x16x576xbf16> to vector<256x576xbf16>
    %cst_16 = arith.constant dense<0.000000e+00> : vector<256x64xf32>
    %18 = tpu.matmul %17, %6, %cst_16 {dimension_numbers = #tpu.dot_dimension_numbers<[1], [0], [0], [1], [0, 0, 1, 1], [], []>} : vector<256x576xbf16>, vector<576x64xbf16>, vector<256x64xf32> -> vector<256x64xf32>
    %c0_17 = arith.constant 0 : index
    %c0_18 = arith.constant 0 : index
    %19 = vector.load %arg3[%c0_17, %c0_18] : memref<1x64xf32, #tpu.memory_space<vmem>>, vector<1x64xf32>
    %20 = vector.broadcast %19 : vector<1x64xf32> to vector<256x64xf32>
    %21 = arith.addf %18, %20 : vector<256x64xf32>
    %cst_19 = arith.constant 0.000000e+00 : f32
    %22 = vector.broadcast %cst_19 : f32 to vector<256x64xf32>
    %23 = arith.maximumf %21, %22 : vector<256x64xf32>
    %cst_20 = arith.constant 0.000000e+00 : f32
    %24 = vector.broadcast %cst_20 : f32 to vector<1x18x18x64xf32>
    %c0_21 = arith.constant 0 : index
    %c0_22 = arith.constant 0 : index
    %c0_23 = arith.constant 0 : index
    %c0_24 = arith.constant 0 : index
    %25 = vector.load %arg8[%c0_21, %c0_22, %c0_23, %c0_24] : memref<1x18x18x64xf32, #tpu.memory_space<vmem>>, vector<1x18x18x64xf32>
    tpu.vector_store %arg8[%c0_21, %c0_22, %c0_23, %c0_24], %24 {strides = array<i32>} : memref<1x18x18x64xf32, #tpu.memory_space<vmem>>, vector<1x18x18x64xf32>,
    %26 = vector.shape_cast %23 : vector<256x64xf32> to vector<1x16x16x64xf32>
    %c0_25 = arith.constant 0 : index
    %c1_26 = arith.constant 1 : index
    %c1_27 = arith.constant 1 : index
    %c0_28 = arith.constant 0 : index
    %27 = vector.load %arg8[%c0_25, %c1_26, %c1_27, %c0_28] : memref<1x18x18x64xf32, #tpu.memory_space<vmem>>, vector<1x16x16x64xf32>
    tpu.vector_store %arg8[%c0_25, %c1_26, %c1_27, %c0_28], %26 {strides = array<i32>} : memref<1x18x18x64xf32, #tpu.memory_space<vmem>>, vector<1x16x16x64xf32>,
    %c0_29 = arith.constant 0 : index
    %c0_30 = arith.constant 0 : index
    %c0_31 = arith.constant 0 : index
    %c0_32 = arith.constant 0 : index
    %28 = vector.load %arg8[%c0_29, %c0_30, %c0_31, %c0_32] : memref<1x18x18x64xf32, #tpu.memory_space<vmem>>, vector<1x18x18x64xf32>
    %29 = arith.truncf %28 : vector<1x18x18x64xf32> to vector<1x18x18x64xbf16>
    %c0_33 = arith.constant 0 : index
    %c0_34 = arith.constant 0 : index
    %30 = vector.load %arg4[%c0_33, %c0_34] : memref<576x64xbf16, #tpu.memory_space<vmem>>, vector<576x64xbf16>
    %31 = vector.extract_strided_slice %29 {offsets = [0, 0, 0, 0], sizes = [1, 16, 16, 64], strides = [1, 1, 1, 1]} : vector<1x18x18x64xbf16> to vector<1x16x16x64xbf16>
    %32 = vector.extract_strided_slice %29 {offsets = [0, 0, 1, 0], sizes = [1, 16, 16, 64], strides = [1, 1, 1, 1]} : vector<1x18x18x64xbf16> to vector<1x16x16x64xbf16>
    %33 = vector.extract_strided_slice %29 {offsets = [0, 0, 2, 0], sizes = [1, 16, 16, 64], strides = [1, 1, 1, 1]} : vector<1x18x18x64xbf16> to vector<1x16x16x64xbf16>
    %34 = vector.extract_strided_slice %29 {offsets = [0, 1, 0, 0], sizes = [1, 16, 16, 64], strides = [1, 1, 1, 1]} : vector<1x18x18x64xbf16> to vector<1x16x16x64xbf16>
    %35 = vector.extract_strided_slice %29 {offsets = [0, 1, 1, 0], sizes = [1, 16, 16, 64], strides = [1, 1, 1, 1]} : vector<1x18x18x64xbf16> to vector<1x16x16x64xbf16>
    %36 = vector.extract_strided_slice %29 {offsets = [0, 1, 2, 0], sizes = [1, 16, 16, 64], strides = [1, 1, 1, 1]} : vector<1x18x18x64xbf16> to vector<1x16x16x64xbf16>
    %37 = vector.extract_strided_slice %29 {offsets = [0, 2, 0, 0], sizes = [1, 16, 16, 64], strides = [1, 1, 1, 1]} : vector<1x18x18x64xbf16> to vector<1x16x16x64xbf16>
    %38 = vector.extract_strided_slice %29 {offsets = [0, 2, 1, 0], sizes = [1, 16, 16, 64], strides = [1, 1, 1, 1]} : vector<1x18x18x64xbf16> to vector<1x16x16x64xbf16>
    %39 = vector.extract_strided_slice %29 {offsets = [0, 2, 2, 0], sizes = [1, 16, 16, 64], strides = [1, 1, 1, 1]} : vector<1x18x18x64xbf16> to vector<1x16x16x64xbf16>
    %40 = tpu.concatenate %31, %32, %33, %34, %35, %36, %37, %38, %39 in 3 : vector<1x16x16x64xbf16>, vector<1x16x16x64xbf16>, vector<1x16x16x64xbf16>, vector<1x16x16x64xbf16>, vector<1x16x16x64xbf16>, vector<1x16x16x64xbf16>, vector<1x16x16x64xbf16>, vector<1x16x16x64xbf16>, vector<1x16x16x64xbf16> -> vector<1x16x16x576xbf16>
    %41 = vector.shape_cast %40 : vector<1x16x16x576xbf16> to vector<256x576xbf16>
    %cst_35 = arith.constant dense<0.000000e+00> : vector<256x64xf32>
    %42 = tpu.matmul %41, %30, %cst_35 {dimension_numbers = #tpu.dot_dimension_numbers<[1], [0], [0], [1], [0, 0, 1, 1], [], []>} : vector<256x576xbf16>, vector<576x64xbf16>, vector<256x64xf32> -> vector<256x64xf32>
    %c0_36 = arith.constant 0 : index
    %c0_37 = arith.constant 0 : index
    %43 = vector.load %arg5[%c0_36, %c0_37] : memref<1x64xf32, #tpu.memory_space<vmem>>, vector<1x64xf32>
    %44 = vector.broadcast %43 : vector<1x64xf32> to vector<256x64xf32>
    %45 = arith.addf %42, %44 : vector<256x64xf32>
    %46 = vector.shape_cast %0 : vector<1x16x16x64xf32> to vector<256x64xf32>
    %47 = arith.addf %45, %46 : vector<256x64xf32>
    %48 = vector.shape_cast %47 : vector<256x64xf32> to vector<1x16x16x64xf32>
    %c0_38 = arith.constant 0 : index
    %c0_39 = arith.constant 0 : index
    %c0_40 = arith.constant 0 : index
    %c0_41 = arith.constant 0 : index
    %49 = vector.load %arg6[%c0_38, %c0_39, %c0_40, %c0_41] : memref<1x16x16x64xf32, #tpu.memory_space<vmem>>, vector<1x16x16x64xf32>
    tpu.vector_store %arg6[%c0_38, %c0_39, %c0_40, %c0_41], %48 {strides = array<i32>} : memref<1x16x16x64xf32, #tpu.memory_space<vmem>>, vector<1x16x16x64xf32>,
    return
  }
  func.func @transform_0(%arg0: i32) -> (i32, i32, i32, i32) {
    %c0_i32 = arith.constant 0 : i32
    %c0_i32_0 = arith.constant 0 : i32
    %c0_i32_1 = arith.constant 0 : i32
    %c0_i32_2 = arith.constant 0 : i32
    return %arg0, %c0_i32, %c0_i32_0, %c0_i32_1 : i32, i32, i32, i32
  }
  func.func @transform_1(%arg0: i32) -> (i32, i32) {
    %c0_i32 = arith.constant 0 : i32
    %c0_i32_0 = arith.constant 0 : i32
    %c0_i32_1 = arith.constant 0 : i32
    return %c0_i32, %c0_i32_0 : i32, i32
  }
  func.func @transform_2(%arg0: i32) -> (i32, i32) {
    %c0_i32 = arith.constant 0 : i32
    %c0_i32_0 = arith.constant 0 : i32
    %c0_i32_1 = arith.constant 0 : i32
    return %c0_i32, %c0_i32_0 : i32, i32
  }
  func.func @transform_3(%arg0: i32) -> (i32, i32) {
    %c0_i32 = arith.constant 0 : i32
    %c0_i32_0 = arith.constant 0 : i32
    %c0_i32_1 = arith.constant 0 : i32
    return %c0_i32, %c0_i32_0 : i32, i32
  }
  func.func @transform_4(%arg0: i32) -> (i32, i32) {
    %c0_i32 = arith.constant 0 : i32
    %c0_i32_0 = arith.constant 0 : i32
    %c0_i32_1 = arith.constant 0 : i32
    return %c0_i32, %c0_i32_0 : i32, i32
  }
  func.func @transform_5(%arg0: i32) -> (i32, i32, i32, i32) {
    %c0_i32 = arith.constant 0 : i32
    %c0_i32_0 = arith.constant 0 : i32
    %c0_i32_1 = arith.constant 0 : i32
    %c0_i32_2 = arith.constant 0 : i32
    return %arg0, %c0_i32, %c0_i32_0, %c0_i32_1 : i32, i32, i32, i32
  }
}

</mosaic_0001>

<llo_original>
// kernel: rb_forward.1
$region0: #{rb_forward.1}
  #allocation0 [shape = 'u32[]', space=smem, size = 0x4, offset = 0x4, fixed_abs, tag = 'smem constant byte address 0x4 - core index']
  #allocation1 [shape = 'u32[144,128]{1,0:T(1,128)}', space=vmem, size = 0x12000, scoped, tag = 'internal scratch']
  #allocation2 [shape = 'f32[1,18,18,64]{3,2,1,0:T(8,128)}', space=vmem, size = 0x36000, scoped, tag = 'scratch operand']
  #allocation3 [shape = 'f32[1,18,18,64]{3,2,1,0:T(8,128)}', space=vmem, size = 0x36000, scoped, tag = 'scratch operand']
  %s0 = inlined_call_operand.hbm [shape: f32[2,16,16,64], index: 0, kind: input, shape index: {}]
  %s1 = inlined_call_operand.hbm [shape: bf16[576,64], index: 1, kind: input, shape index: {}]
  %s2 = inlined_call_operand.hbm [shape: f32[1,64], index: 2, kind: input, shape index: {}]
  %s3 = inlined_call_operand.hbm [shape: bf16[576,64], index: 3, kind: input, shape index: {}]
  %s4 = inlined_call_operand.hbm [shape: f32[1,64], index: 4, kind: input, shape index: {}]
  %s5 = inlined_call_operand.hbm [shape: f32[2,16,16,64], index: 5, kind: output, shape index: {}]
  %s6 = sld [smem:[#allocation0]]
  $region73: #{rb_forward.1} parent=0
    _
  %s8 = ssub.s32 1, %s6
  %s9 = scalar_select 0, %s8, %s6
  $region1: #{rb_forward.1} parent=0
    #allocation4 [shape = 'u8[262144]{0}', space=vmem, size = 0x40000, scoped, tag = 'input window, operand 0']
    #allocation5 [shape = 's32[2]{0}', space=sflag, size = 0x8, scoped, tag = 'scoped memory for rb_forward.1']
    #allocation6 [shape = 's32[2]{0}', space=sflag, size = 0x8, scoped, tag = 'scoped memory for rb_forward.1']
    #allocation7 [shape = 'u8[147456]{0}', space=vmem, size = 0x24000, scoped, tag = 'input window, operand 1, single buffered']
    #allocation8 [shape = 's32[1]{0}', space=sflag, size = 0x4, scoped, tag = 'scoped memory for rb_forward.1']
    #allocation9 [shape = 'u8[512]{0}', space=vmem, size = 0x400, scoped, tag = 'input window, operand 2, single buffered']
    #allocation10 [shape = 'u8[147456]{0}', space=vmem, size = 0x24000, scoped, tag = 'input window, operand 3, single buffered']
    #allocation11 [shape = 's32[1]{0}', space=sflag, size = 0x4, scoped, tag = 'scoped memory for rb_forward.1']
    #allocation12 [shape = 'u8[512]{0}', space=vmem, size = 0x400, scoped, tag = 'input window, operand 4, single buffered']
    #allocation13 [shape = 'u8[262144]{0}', space=vmem, size = 0x40000, scoped, tag = 'output window, operand 0']
    %10 = vsyncpa [#allocation5], 0
    %s11 = scalar_lea.sflag [#allocation5], 1
    %12 = vsyncpa %s11, 0
    %13 = vsyncpa [#allocation8], 0
    %14 = vsyncpa [#allocation11], 0
    %15 = vsyncpa [#allocation6], 0
    %s16 = scalar_lea.sflag [#allocation6], 1
    %17 = vsyncpa %s16, 0
    loop: start=0, step=1, limit=4
    $region2: #{rb_forward.1} parent=1 // loop_pre_header
      _
    $region3: #{rb_forward.1} parent=1 // loop_header
      %s19 = sphi 0, %s23
      %p20 = scmp.ge.s32.totalorder %s19, 4
      %s29 = sphi 0, %s31
      %s32 = sphi 0, %s29
      %s33 = sphi 0, %s32
      %s49 = sphi 0, %s33
      %s53 = sphi 0, %s53
      %s55 = sphi 0, %s53
      %s56 = sphi 0, %s55
      %s70 = sphi 0, %s56
      %s74 = sphi 0, %s74
      %s76 = sphi 0, %s74
      %s77 = sphi 0, %s76
      %s91 = sphi 0, %s77
      %s95 = sphi 0, %s95
      %s97 = sphi 0, %s95
      %s98 = sphi 0, %s97
      %s112 = sphi 0, %s98
      %s116 = sphi 0, %s116
      %s118 = sphi 0, %s116
      %s119 = sphi 0, %s118
      %s133 = sphi 0, %s119
      %s139 = sphi 0, %s141
      %s142 = sphi 0, %s139
      %s143 = sphi 0, %s142
      %s159 = sphi 0, %s143
    $region4: #{rb_forward.1} parent=1 // loop_header_branch
      %22 = sbr.rel (%p20) target = $region8
    $region5: #{rb_forward.1} parent=1 // loop_body
      %s24 = ssub.s32 %s19, 1
      %s25 = ssub.s32 %s19, 2
      %s26 = sadd.s32 %s19, 1
      %s27 = ssub.s32 %s19, %s26
      %p28 = scmp.eq.s32.totalorder %s27, 0
      %s30 = sadd.s32 %s29, 1
      %s31 = scalar_select %p28, %s29, %s30
      %p34 = pneg %p28
      %p35 = scmp.eq.s32.totalorder %s19, 1
      %p36 = por %p34, %p35
      %p37 = scmp.ne.s32.totalorder %s29, %s32
      %p38 = scmp.eq.s32.totalorder %s19, 0
      %p39 = por %p37, %p38
      %p40 = scmp.ne.s32.totalorder %s29, %s32
      %p41 = scmp.eq.s32.totalorder %s24, 1
      %p42 = por %p40, %p41
      %p43 = scmp.ne.s32.totalorder %s32, %s33
      %p44 = scmp.eq.s32.totalorder %s24, 0
      %p45 = por %p43, %p44
      %p46 = scmp.ne.s32.totalorder %s32, %s33
      %p47 = scmp.eq.s32.totalorder %s25, 1
      %p48 = por %p46, %p47
      %p50 = scmp.ne.s32.totalorder %s33, %s49
      %p51 = scmp.eq.s32.totalorder %s25, 0
      %p52 = por %p50, %p51
      %s54 = sadd.s32 %s53, 1
      %p57 = scmp.eq.s32.totalorder %s19, 1
      %p58 = scmp.ne.s32.totalorder %s53, %s55
      %p59 = scmp.eq.s32.totalorder %s19, 0
      %p60 = por %p58, %p59
      %p61 = scmp.ne.s32.totalorder %s53, %s55
      %p62 = scmp.eq.s32.totalorder %s24, 1
      %p63 = por %p61, %p62
      %p64 = scmp.ne.s32.totalorder %s55, %s56
      %p65 = scmp.eq.s32.totalorder %s24, 0
      %p66 = por %p64, %p65
      %p67 = scmp.ne.s32.totalorder %s55, %s56
      %p68 = scmp.eq.s32.totalorder %s25, 1
      %p69 = por %p67, %p68
      %p71 = scmp.ne.s32.totalorder %s56, %s70
      %p72 = scmp.eq.s32.totalorder %s25, 0
      %p73 = por %p71, %p72
      %s75 = sadd.s32 %s74, 1
      %p78 = scmp.eq.s32.totalorder %s19, 1
      %p79 = scmp.ne.s32.totalorder %s74, %s76
      %p80 = scmp.eq.s32.totalorder %s19, 0
      %p81 = por %p79, %p80
      %p82 = scmp.ne.s32.totalorder %s74, %s76
      %p83 = scmp.eq.s32.totalorder %s24, 1
      %p84 = por %p82, %p83
      %p85 = scmp.ne.s32.totalorder %s76, %s77
      %p86 = scmp.eq.s32.totalorder %s24, 0
      %p87 = por %p85, %p86
      %p88 = scmp.ne.s32.totalorder %s76, %s77
      %p89 = scmp.eq.s32.totalorder %s25, 1
      %p90 = por %p88, %p89
      %p92 = scmp.ne.s32.totalorder %s77, %s91
      %p93 = scmp.eq.s32.totalorder %s25, 0
      %p94 = por %p92, %p93
      %s96 = sadd.s32 %s95, 1
      %p99 = scmp.eq.s32.totalorder %s19, 1
      %p100 = scmp.ne.s32.totalorder %s95, %s97
      %p101 = scmp.eq.s32.totalorder %s19, 0
      %p102 = por %p100, %p101
      %p103 = scmp.ne.s32.totalorder %s95, %s97
      %p104 = scmp.eq.s32.totalorder %s24, 1
      %p105 = por %p103, %p104
      %p106 = scmp.ne.s32.totalorder %s97, %s98
      %p107 = scmp.eq.s32.totalorder %s24, 0
      %p108 = por %p106, %p107
      %p109 = scmp.ne.s32.totalorder %s97, %s98
      %p110 = scmp.eq.s32.totalorder %s25, 1
      %p111 = por %p109, %p110
      %p113 = scmp.ne.s32.totalorder %s98, %s112
      %p114 = scmp.eq.s32.totalorder %s25, 0
      %p115 = por %p113, %p114
      %s117 = sadd.s32 %s116, 1
      %p120 = scmp.eq.s32.totalorder %s19, 1
      %p121 = scmp.ne.s32.totalorder %s116, %s118
      %p122 = scmp.eq.s32.totalorder %s19, 0
      %p123 = por %p121, %p122
      %p124 = scmp.ne.s32.totalorder %s116, %s118
      %p125 = scmp.eq.s32.totalorder %s24, 1
      %p126 = por %p124, %p125
      %p127 = scmp.ne.s32.totalorder %s118, %s119
      %p128 = scmp.eq.s32.totalorder %s24, 0
      %p129 = por %p127, %p128
      %p130 = scmp.ne.s32.totalorder %s118, %s119
      %p131 = scmp.eq.s32.totalorder %s25, 1
      %p132 = por %p130, %p131
      %p134 = scmp.ne.s32.totalorder %s119, %s133
      %p135 = scmp.eq.s32.totalorder %s25, 0
      %p136 = por %p134, %p135
      %s137 = ssub.s32 %s19, %s26
      %p138 = scmp.eq.s32.totalorder %s137, 0
      %s140 = sadd.s32 %s139, 1
      %s141 = scalar_select %p138, %s139, %s140
      %p144 = pneg %p138
      %p145 = scmp.eq.s32.totalorder %s19, 1
      %p146 = por %p144, %p145
      %p147 = scmp.ne.s32.totalorder %s139, %s142
      %p148 = scmp.eq.s32.totalorder %s19, 0
      %p149 = por %p147, %p148
      %p150 = scmp.ne.s32.totalorder %s139, %s142
      %p151 = scmp.eq.s32.totalorder %s24, 1
      %p152 = por %p150, %p151
      %p153 = scmp.ne.s32.totalorder %s142, %s143
      %p154 = scmp.eq.s32.totalorder %s24, 0
      %p155 = por %p153, %p154
      %p156 = scmp.ne.s32.totalorder %s142, %s143
      %p157 = scmp.eq.s32.totalorder %s25, 1
      %p158 = por %p156, %p157
      %p160 = scmp.ne.s32.totalorder %s143, %s159
      %p161 = scmp.eq.s32.totalorder %s25, 0
      %p162 = por %p160, %p161
      %p163 = scmp.le.s32.totalorder 1, %s19
      %p164 = scmp.lt.s32.totalorder %s19, 3
      %p165 = pnand %p163, %p164
      %p166 = pneg %p165
      // Predicated region
      $region9: #{rb_forward.1} parent=5 // pred_check
        _
      $region10: #{rb_forward.1} parent=5 // pred_check_branch
        %168 = sbr.rel (%p165) target = $region12
      $region11: #{rb_forward.1} parent=5 // pred_region
        %s169 = ssub.s32 %s19, 1
        // Predicated region
        $region13: #{rb_forward.1} parent=11 // pred_check
          %p170 = pneg %p66
        $region14: #{rb_forward.1} parent=11 // pred_check_branch
          %172 = sbr.rel (%p170) target = $region16
        $region15: #{rb_forward.1} parent=11 // pred_region
          %s174 = ssub.s32 4608, 4608
          %175 = vsyncadd [#allocation8], %s174
          %s176 = sshll.u32 [#allocation7], 4
          %s177 = int_to_ptr.vmem [resolvable:$true] %s176
          %182 = dma.hbm_to_vmem [thread:$0]  %s1, 4608, %s177, [#allocation8], 64, 64, 4
        $region16: #{rb_forward.1} parent=11 // pred_fallthru
          _
        // Predicated region
        $region17: #{rb_forward.1} parent=11 // pred_check
          %p183 = pneg %p87
        $region18: #{rb_forward.1} parent=11 // pred_check_branch
          %185 = sbr.rel (%p183) target = $region20
        $region19: #{rb_forward.1} parent=11 // pred_region
          %s187 = ssub.s32 16, 16
          %188 = vsyncadd [#allocation8], %s187
          %s190 = sshll.u32 [#allocation9], 4
          %s191 = int_to_ptr.vmem [resolvable:$true] %s190
          %193 = dma.hbm_to_vmem [thread:$0]  %s2, 16, %s191, [#allocation8]
        $region20: #{rb_forward.1} parent=11 // pred_fallthru
          _
        // Predicated region
        $region21: #{rb_forward.1} parent=11 // pred_check
          %p194 = pneg %p108
        $region22: #{rb_forward.1} parent=11 // pred_check_branch
          %196 = sbr.rel (%p194) target = $region24
        $region23: #{rb_forward.1} parent=11 // pred_region
          %s198 = ssub.s32 4608, 4608
          %199 = vsyncadd [#allocation11], %s198
          %s200 = sshll.u32 [#allocation10], 4
          %s201 = int_to_ptr.vmem [resolvable:$true] %s200
          %206 = dma.hbm_to_vmem [thread:$0]  %s3, 4608, %s201, [#allocation11], 64, 64, 4
        $region24: #{rb_forward.1} parent=11 // pred_fallthru
          _
        // Predicated region
        $region25: #{rb_forward.1} parent=11 // pred_check
          %p207 = pneg %p129
        $region26: #{rb_forward.1} parent=11 // pred_check_branch
          %209 = sbr.rel (%p207) target = $region28
        $region27: #{rb_forward.1} parent=11 // pred_region
          %s211 = ssub.s32 16, 16
          %212 = vsyncadd [#allocation11], %s211
          %s214 = sshll.u32 [#allocation12], 4
          %s215 = int_to_ptr.vmem [resolvable:$true] %s214
          %217 = dma.hbm_to_vmem [thread:$0]  %s4, 16, %s215, [#allocation11]
        $region28: #{rb_forward.1} parent=11 // pred_fallthru
          _
      $region12: #{rb_forward.1} parent=5 // pred_fallthru
        _
      %p218 = scmp.lt.s32.totalorder %s19, 2
      // Predicated region
      $region29: #{rb_forward.1} parent=5 // pred_check
        %p219 = pneg %p218
      $region30: #{rb_forward.1} parent=5 // pred_check_branch
        %221 = sbr.rel (%p219) target = $region32
      $region31: #{rb_forward.1} parent=5 // pred_region
        // Predicated region
        $region33: #{rb_forward.1} parent=31 // pred_check
          %p222 = pneg %p39
        $region34: #{rb_forward.1} parent=31 // pred_check_branch
          %224 = sbr.rel (%p222) target = $region36
        $region35: #{rb_forward.1} parent=31 // pred_region
          %s225 = sand.u32 %s29, 1
          %s226 = scalar_lea.sflag [#allocation5], %s225
          %s227 = sand.u32 %s29, 1
          %s228 = smul.addr %s227, 256
          %s229 = scalar_lea.vmem [#allocation4], %s228
          %s231 = ssub.s32 4096, 4096
          %232 = vsyncadd %s226, %s231
          %s233 = smul.addr %s19, 32
          %s234 = smul.addr %s233, 128
          %s235 = scalar_lea.hbm %s0, %s234
          %s236 = sshll.u32 %s229, 4
          %s237 = int_to_ptr.vmem [resolvable:$true] %s236
          %242 = dma.hbm_to_vmem [thread:$0]  %s235, 4096, %s237, %s226, 128, 128, 8
        $region36: #{rb_forward.1} parent=31 // pred_fallthru
          _
      $region32: #{rb_forward.1} parent=5 // pred_fallthru
        _
      %p243 = scmp.le.s32.totalorder 1, %s19
      %p244 = scmp.lt.s32.totalorder %s19, 3
      %p245 = pnand %p243, %p244
      %p246 = pneg %p245
      // Predicated region
      $region37: #{rb_forward.1} parent=5 // pred_check
        _
      $region38: #{rb_forward.1} parent=5 // pred_check_branch
        %248 = sbr.rel (%p245) target = $region40
      $region39: #{rb_forward.1} parent=5 // pred_region
        %s249 = ssub.s32 %s19, 1
        %s250 = sand.u32 %s32, 1
        %s251 = scalar_lea.sflag [#allocation5], %s250
        %s252 = sand.u32 %s32, 1
        %s253 = smul.addr %s252, 256
        %s254 = scalar_lea.vmem [#allocation4], %s253
        // Predicated region
        $region41: #{rb_forward.1} parent=39 // pred_check
          %p255 = pneg %p45
        $region42: #{rb_forward.1} parent=39 // pred_check_branch
          %257 = sbr.rel (%p255) target = $region44
        $region43: #{rb_forward.1} parent=39 // pred_region
          %258 = dma.done %s251, 4096
        $region44: #{rb_forward.1} parent=39 // pred_fallthru
          _
        // Predicated region
        $region45: #{rb_forward.1} parent=39 // pred_check
          %p259 = pneg %p66
        $region46: #{rb_forward.1} parent=39 // pred_check_branch
          %261 = sbr.rel (%p259) target = $region48
        $region47: #{rb_forward.1} parent=39 // pred_region
          %262 = dma.done [#allocation8], 4608
        $region48: #{rb_forward.1} parent=39 // pred_fallthru
          _
        // Predicated region
        $region49: #{rb_forward.1} parent=39 // pred_check
          %p263 = pneg %p87
        $region50: #{rb_forward.1} parent=39 // pred_check_branch
          %265 = sbr.rel (%p263) target = $region52
        $region51: #{rb_forward.1} parent=39 // pred_region
          %266 = dma.done [#allocation8], 16
        $region52: #{rb_forward.1} parent=39 // pred_fallthru
          _
        // Predicated region
        $region53: #{rb_forward.1} parent=39 // pred_check
          %p267 = pneg %p108
        $region54: #{rb_forward.1} parent=39 // pred_check_branch
          %269 = sbr.rel (%p267) target = $region56
        $region55: #{rb_forward.1} parent=39 // pred_region
          %270 = dma.done [#allocation11], 4608
        $region56: #{rb_forward.1} parent=39 // pred_fallthru
          _
        // Predicated region
        $region57: #{rb_forward.1} parent=39 // pred_check
          %p271 = pneg %p129
        $region58: #{rb_forward.1} parent=39 // pred_check_branch
          %273 = sbr.rel (%p271) target = $region60
        $region59: #{rb_forward.1} parent=39 // pred_region
          %274 = dma.done [#allocation11], 16
        $region60: #{rb_forward.1} parent=39 // pred_fallthru
          _
        %s275 = sand.u32 %s32, 1
        %s276 = scalar_lea.sflag [#allocation5], %s275
        %s277 = sand.u32 %s32, 1
        %s278 = smul.addr %s277, 256
        %s279 = scalar_lea.vmem [#allocation4], %s278
        %p280 = pneg %p45
        %p281 = pneg %p42
        %p282 = pneg %p66
        %p283 = pneg %p63
        %p284 = pneg %p87
        %p285 = pneg %p84
        %p286 = pneg %p108
        %p287 = pneg %p105
        %p288 = pneg %p129
        %p289 = pneg %p126
        %p290 = pneg %p155
        %p291 = pneg %p152
        %s292 = sand.u32 %s142, 1
        %s293 = scalar_lea.sflag [#allocation6], %s292
        %s294 = sand.u32 %s142, 1
        %s295 = smul.addr %s294, 256
        %s296 = scalar_lea.vmem [#allocation13], %s295
        %v298 = vld [vmem:[%s254] sm:$0xff]
        %v299 = vld [vmem:[%s254 + $0x8] sm:$0xff]
        %v300 = vld [vmem:[%s254 + $0x10] sm:$0xff]
        %v301 = vld [vmem:[%s254 + $0x18] sm:$0xff]
        %v302 = vld [vmem:[%s254 + $0x20] sm:$0xff]
        %v303 = vld [vmem:[%s254 + $0x28] sm:$0xff]
        %v304 = vld [vmem:[%s254 + $0x30] sm:$0xff]
        %v305 = vld [vmem:[%s254 + $0x38] sm:$0xff]
        %v306 = vld [vmem:[%s254 + $0x40] sm:$0xff]
        %v307 = vld [vmem:[%s254 + $0x48] sm:$0xff]
        %v308 = vld [vmem:[%s254 + $0x50] sm:$0xff]
        %v309 = vld [vmem:[%s254 + $0x58] sm:$0xff]
        %v310 = vld [vmem:[%s254 + $0x60] sm:$0xff]
        %v311 = vld [vmem:[%s254 + $0x68] sm:$0xff]
        %v312 = vld [vmem:[%s254 + $0x70] sm:$0xff]
        %v313 = vld [vmem:[%s254 + $0x78] sm:$0xff]
        %v314 = vld [vmem:[%s254 + $0x80] sm:$0xff]
        %v315 = vld [vmem:[%s254 + $0x88] sm:$0xff]
        %v316 = vld [vmem:[%s254 + $0x90] sm:$0xff]
        %v317 = vld [vmem:[%s254 + $0x98] sm:$0xff]
        %v318 = vld [vmem:[%s254 + $0xa0] sm:$0xff]
        %v319 = vld [vmem:[%s254 + $0xa8] sm:$0xff]
        %v320 = vld [vmem:[%s254 + $0xb0] sm:$0xff]
        %v321 = vld [vmem:[%s254 + $0xb8] sm:$0xff]
        %v322 = vld [vmem:[%s254 + $0xc0] sm:$0xff]
        %v323 = vld [vmem:[%s254 + $0xc8] sm:$0xff]
        %v324 = vld [vmem:[%s254 + $0xd0] sm:$0xff]
        %v325 = vld [vmem:[%s254 + $0xd8] sm:$0xff]
        %v326 = vld [vmem:[%s254 + $0xe0] sm:$0xff]
        %v327 = vld [vmem:[%s254 + $0xe8] sm:$0xff]
        %v328 = vld [vmem:[%s254 + $0xf0] sm:$0xff]
        %v329 = vld [vmem:[%s254 + $0xf8] sm:$0xff]
        %vm330 = vcmask 523264
        %331 = vst.msk [vmem:[#allocation2] sm:$0xff] %vm330, 0.0
        %332 = vst.msk [vmem:[#allocation2 + $0x8] sm:$0xff] %vm330, 0.0
        %vm333 = vcmask 517120
        %334 = vst.msk [vmem:[#allocation2 + $0x10] sm:$0x3] %vm333, 0.0
        %335 = vst.msk [vmem:[#allocation2 + $0x18] sm:$0xff] %vm330, 0.0
        %336 = vst.msk [vmem:[#allocation2 + $0x20] sm:$0xff] %vm330, 0.0
        %337 = vst.msk [vmem:[#allocation2 + $0x28] sm:$0x3] %vm333, 0.0
        %338 = vst.msk [vmem:[#allocation2 + $0x30] sm:$0xff] %vm330, 0.0
        %339 = vst.msk [vmem:[#allocation2 + $0x38] sm:$0xff] %vm330, 0.0
        %340 = vst.msk [vmem:[#allocation2 + $0x40] sm:$0x3] %vm333, 0.0
        %341 = vst.msk [vmem:[#allocation2 + $0x48] sm:$0xff] %vm330, 0.0
        %342 = vst.msk [vmem:[#allocation2 + $0x50] sm:$0xff] %vm330, 0.0
        %343 = vst.msk [vmem:[#allocation2 + $0x58] sm:$0x3] %vm333, 0.0
        %344 = vst.msk [vmem:[#allocation2 + $0x60] sm:$0xff] %vm330, 0.0
        %345 = vst.msk [vmem:[#allocation2 + $0x68] sm:$0xff] %vm330, 0.0
        %346 = vst.msk [vmem:[#allocation2 + $0x70] sm:$0x3] %vm333, 0.0
        %347 = vst.msk [vmem:[#allocation2 + $0x78] sm:$0xff] %vm330, 0.0
        %348 = vst.msk [vmem:[#allocation2 + $0x80] sm:$0xff] %vm330, 0.0
        %349 = vst.msk [vmem:[#allocation2 + $0x88] sm:$0x3] %vm333, 0.0
        %350 = vst.msk [vmem:[#allocation2 + $0x90] sm:$0xff] %vm330, 0.0
        %351 = vst.msk [vmem:[#allocation2 + $0x98] sm:$0xff] %vm330, 0.0
        %352 = vst.msk [vmem:[#allocation2 + $0xa0] sm:$0x3] %vm333, 0.0
        %353 = vst.msk [vmem:[#allocation2 + $0xa8] sm:$0xff] %vm330, 0.0
        %354 = vst.msk [vmem:[#allocation2 + $0xb0] sm:$0xff] %vm330, 0.0
        %355 = vst.msk [vmem:[#allocation2 + $0xb8] sm:$0x3] %vm333, 0.0
        %356 = vst.msk [vmem:[#allocation2 + $0xc0] sm:$0xff] %vm330, 0.0
        %357 = vst.msk [vmem:[#allocation2 + $0xc8] sm:$0xff] %vm330, 0.0
        %358 = vst.msk [vmem:[#allocation2 + $0xd0] sm:$0x3] %vm333, 0.0
        %359 = vst.msk [vmem:[#allocation2 + $0xd8] sm:$0xff] %vm330, 0.0
        %360 = vst.msk [vmem:[#allocation2 + $0xe0] sm:$0xff] %vm330, 0.0
        %361 = vst.msk [vmem:[#allocation2 + $0xe8] sm:$0x3] %vm333, 0.0
        %362 = vst.msk [vmem:[#allocation2 + $0xf0] sm:$0xff] %vm330, 0.0
        %363 = vst.msk [vmem:[#allocation2 + $0xf8] sm:$0xff] %vm330, 0.0
        %364 = vst.msk [vmem:[#allocation2 + $0x100] sm:$0x3] %vm333, 0.0
        %365 = vst.msk [vmem:[#allocation2 + $0x108] sm:$0xff] %vm330, 0.0
        %366 = vst.msk [vmem:[#allocation2 + $0x110] sm:$0xff] %vm330, 0.0
        %367 = vst.msk [vmem:[#allocation2 + $0x118] sm:$0x3] %vm333, 0.0
        %368 = vst.msk [vmem:[#allocation2 + $0x120] sm:$0xff] %vm330, 0.0
        %369 = vst.msk [vmem:[#allocation2 + $0x128] sm:$0xff] %vm330, 0.0
        %370 = vst.msk [vmem:[#allocation2 + $0x130] sm:$0x3] %vm333, 0.0
        %371 = vst.msk [vmem:[#allocation2 + $0x138] sm:$0xff] %vm330, 0.0
        %372 = vst.msk [vmem:[#allocation2 + $0x140] sm:$0xff] %vm330, 0.0
        %373 = vst.msk [vmem:[#allocation2 + $0x148] sm:$0x3] %vm333, 0.0
        %374 = vst.msk [vmem:[#allocation2 + $0x150] sm:$0xff] %vm330, 0.0
        %375 = vst.msk [vmem:[#allocation2 + $0x158] sm:$0xff] %vm330, 0.0
        %376 = vst.msk [vmem:[#allocation2 + $0x160] sm:$0x3] %vm333, 0.0
        %377 = vst.msk [vmem:[#allocation2 + $0x168] sm:$0xff] %vm330, 0.0
        %378 = vst.msk [vmem:[#allocation2 + $0x170] sm:$0xff] %vm330, 0.0
        %379 = vst.msk [vmem:[#allocation2 + $0x178] sm:$0x3] %vm333, 0.0
        %380 = vst.msk [vmem:[#allocation2 + $0x180] sm:$0xff] %vm330, 0.0
        %381 = vst.msk [vmem:[#allocation2 + $0x188] sm:$0xff] %vm330, 0.0
        %382 = vst.msk [vmem:[#allocation2 + $0x190] sm:$0x3] %vm333, 0.0
        %383 = vst.msk [vmem:[#allocation2 + $0x198] sm:$0xff] %vm330, 0.0
        %384 = vst.msk [vmem:[#allocation2 + $0x1a0] sm:$0xff] %vm330, 0.0
        %385 = vst.msk [vmem:[#allocation2 + $0x1a8] sm:$0x3] %vm333, 0.0
        %s386 = scalar_lea.vmem [#allocation2], 24
        %387 = vst.msk [vmem:[%s386 + $0x1] sm:$0xff] %vm330, %v298
        %388 = vst.msk [vmem:[%s386 + $0x9] sm:$0xff] %vm330, %v299
        %389 = vst.msk [vmem:[%s386 + $0x19] sm:$0xff] %vm330, %v300
        %390 = vst.msk [vmem:[%s386 + $0x21] sm:$0xff] %vm330, %v301
        %391 = vst.msk [vmem:[%s386 + $0x31] sm:$0xff] %vm330, %v302
        %392 = vst.msk [vmem:[%s386 + $0x39] sm:$0xff] %vm330, %v303
        %393 = vst.msk [vmem:[%s386 + $0x49] sm:$0xff] %vm330, %v304
        %394 = vst.msk [vmem:[%s386 + $0x51] sm:$0xff] %vm330, %v305
        %395 = vst.msk [vmem:[%s386 + $0x61] sm:$0xff] %vm330, %v306
        %396 = vst.msk [vmem:[%s386 + $0x69] sm:$0xff] %vm330, %v307
        %397 = vst.msk [vmem:[%s386 + $0x79] sm:$0xff] %vm330, %v308
        %398 = vst.msk [vmem:[%s386 + $0x81] sm:$0xff] %vm330, %v309
        %399 = vst.msk [vmem:[%s386 + $0x91] sm:$0xff] %vm330, %v310
        %400 = vst.msk [vmem:[%s386 + $0x99] sm:$0xff] %vm330, %v311
        %401 = vst.msk [vmem:[%s386 + $0xa9] sm:$0xff] %vm330, %v312
        %402 = vst.msk [vmem:[%s386 + $0xb1] sm:$0xff] %vm330, %v313
        %403 = vst.msk [vmem:[%s386 + $0xc1] sm:$0xff] %vm330, %v314
        %404 = vst.msk [vmem:[%s386 + $0xc9] sm:$0xff] %vm330, %v315
        %405 = vst.msk [vmem:[%s386 + $0xd9] sm:$0xff] %vm330, %v316
        %406 = vst.msk [vmem:[%s386 + $0xe1] sm:$0xff] %vm330, %v317
        %407 = vst.msk [vmem:[%s386 + $0xf1] sm:$0xff] %vm330, %v318
        %408 = vst.msk [vmem:[%s386 + $0xf9] sm:$0xff] %vm330, %v319
        %409 = vst.msk [vmem:[%s386 + $0x109] sm:$0xff] %vm330, %v320
        %410 = vst.msk [vmem:[%s386 + $0x111] sm:$0xff] %vm330, %v321
        %411 = vst.msk [vmem:[%s386 + $0x121] sm:$0xff] %vm330, %v322
        %412 = vst.msk [vmem:[%s386 + $0x129] sm:$0xff] %vm330, %v323
        %413 = vst.msk [vmem:[%s386 + $0x139] sm:$0xff] %vm330, %v324
        %414 = vst.msk [vmem:[%s386 + $0x141] sm:$0xff] %vm330, %v325
        %415 = vst.msk [vmem:[%s386 + $0x151] sm:$0xff] %vm330, %v326
        %416 = vst.msk [vmem:[%s386 + $0x159] sm:$0xff] %vm330, %v327
        %417 = vst.msk [vmem:[%s386 + $0x169] sm:$0xff] %vm330, %v328
        %418 = vst.msk [vmem:[%s386 + $0x171] sm:$0xff] %vm330, %v329
        %v419 = vld [vmem:[#allocation2] sm:$0xff]
        %v420 = vld [vmem:[#allocation2 + $0x8] sm:$0xff]
        %v421 = vld [vmem:[#allocation2 + $0x10] sm:$0x3]
        %v422 = vld [vmem:[#allocation2 + $0x18] sm:$0xff]
        %v423 = vld [vmem:[#allocation2 + $0x20] sm:$0xff]
        %v424 = vld [vmem:[#allocation2 + $0x28] sm:$0x3]
        %v425 = vld [vmem:[#allocation2 + $0x30] sm:$0xff]
        %v426 = vld [vmem:[#allocation2 + $0x38] sm:$0xff]
        %v427 = vld [vmem:[#allocation2 + $0x40] sm:$0x3]
        %v428 = vld [vmem:[#allocation2 + $0x48] sm:$0xff]
        %v429 = vld [vmem:[#allocation2 + $0x50] sm:$0xff]
        %v430 = vld [vmem:[#allocation2 + $0x58] sm:$0x3]
        %v431 = vld [vmem:[#allocation2 + $0x60] sm:$0xff]
        %v432 = vld [vmem:[#allocation2 + $0x68] sm:$0xff]
        %v433 = vld [vmem:[#allocation2 + $0x70] sm:$0x3]
        %v434 = vld [vmem:[#allocation2 + $0x78] sm:$0xff]
        %v435 = vld [vmem:[#allocation2 + $0x80] sm:$0xff]
        %v436 = vld [vmem:[#allocation2 + $0x88] sm:$0x3]
        %v437 = vld [vmem:[#allocation2 + $0x90] sm:$0xff]
        %v438 = vld [vmem:[#allocation2 + $0x98] sm:$0xff]
        %v439 = vld [vmem:[#allocation2 + $0xa0] sm:$0x3]
        %v440 = vld [vmem:[#allocation2 + $0xa8] sm:$0xff]
        %v441 = vld [vmem:[#allocation2 + $0xb0] sm:$0xff]
        %v442 = vld [vmem:[#allocation2 + $0xb8] sm:$0x3]
        %v443 = vld [vmem:[#allocation2 + $0xc0] sm:$0xff]
        %v444 = vld [vmem:[#allocation2 + $0xc8] sm:$0xff]
        %v445 = vld [vmem:[#allocation2 + $0xd0] sm:$0x3]
        %v446 = vld [vmem:[#allocation2 + $0xd8] sm:$0xff]
        %v447 = vld [vmem:[#allocation2 + $0xe0] sm:$0xff]
        %v448 = vld [vmem:[#allocation2 + $0xe8] sm:$0x3]
        %v449 = vld [vmem:[#allocation2 + $0xf0] sm:$0xff]
        %v450 = vld [vmem:[#allocation2 + $0xf8] sm:$0xff]
        %v451 = vld [vmem:[#allocation2 + $0x100] sm:$0x3]
        %v452 = vld [vmem:[#allocation2 + $0x108] sm:$0xff]
        %v453 = vld [vmem:[#allocation2 + $0x110] sm:$0xff]
        %v454 = vld [vmem:[#allocation2 + $0x118] sm:$0x3]
        %v455 = vld [vmem:[#allocation2 + $0x120] sm:$0xff]
        %v456 = vld [vmem:[#allocation2 + $0x128] sm:$0xff]
        %v457 = vld [vmem:[#allocation2 + $0x130] sm:$0x3]
        %v458 = vld [vmem:[#allocation2 + $0x138] sm:$0xff]
        %v459 = vld [vmem:[#allocation2 + $0x140] sm:$0xff]
        %v460 = vld [vmem:[#allocation2 + $0x148] sm:$0x3]
        %v461 = vld [vmem:[#allocation2 + $0x150] sm:$0xff]
        %v462 = vld [vmem:[#allocation2 + $0x158] sm:$0xff]
        %v463 = vld [vmem:[#allocation2 + $0x160] sm:$0x3]
        %v464 = vld [vmem:[#allocation2 + $0x168] sm:$0xff]
        %v465 = vld [vmem:[#allocation2 + $0x170] sm:$0xff]
        %v466 = vld [vmem:[#allocation2 + $0x178] sm:$0x3]
        %v467 = vld [vmem:[#allocation2 + $0x180] sm:$0xff]
        %v468 = vld [vmem:[#allocation2 + $0x188] sm:$0xff]
        %v469 = vld [vmem:[#allocation2 + $0x190] sm:$0x3]
        %v470 = vld [vmem:[#allocation2 + $0x198] sm:$0xff]
        %v471 = vld [vmem:[#allocation2 + $0x1a0] sm:$0xff]
        %v472 = vld [vmem:[#allocation2 + $0x1a8] sm:$0x3]
        %v473 = vpack.c.bf16 %v420, %v419
        %v474 = vpack.c.bf16 %v421, %v421
        %v475 = vpack.c.bf16 %v423, %v422
        %v476 = vpack.c.bf16 %v424, %v424
        %v477 = vpack.c.bf16 %v426, %v425
        %v478 = vpack.c.bf16 %v427, %v427
        %v479 = vpack.c.bf16 %v429, %v428
        %v480 = vpack.c.bf16 %v430, %v430
        %v481 = vpack.c.bf16 %v432, %v431
        %v482 = vpack.c.bf16 %v433, %v433
        %v483 = vpack.c.bf16 %v435, %v434
        %v484 = vpack.c.bf16 %v436, %v436
        %v485 = vpack.c.bf16 %v438, %v437
        %v486 = vpack.c.bf16 %v439, %v439
        %v487 = vpack.c.bf16 %v441, %v440
        %v488 = vpack.c.bf16 %v442, %v442
        %v489 = vpack.c.bf16 %v444, %v443
        %v490 = vpack.c.bf16 %v445, %v445
        %v491 = vpack.c.bf16 %v447, %v446
        %v492 = vpack.c.bf16 %v448, %v448
        %v493 = vpack.c.bf16 %v450, %v449
        %v494 = vpack.c.bf16 %v451, %v451
        %v495 = vpack.c.bf16 %v453, %v452
        %v496 = vpack.c.bf16 %v454, %v454
        %v497 = vpack.c.bf16 %v456, %v455
        %v498 = vpack.c.bf16 %v457, %v457
        %v499 = vpack.c.bf16 %v459, %v458
        %v500 = vpack.c.bf16 %v460, %v460
        %v501 = vpack.c.bf16 %v462, %v461
        %v502 = vpack.c.bf16 %v463, %v463
        %v503 = vpack.c.bf16 %v465, %v464
        %v504 = vpack.c.bf16 %v466, %v466
        %v505 = vpack.c.bf16 %v468, %v467
        %v506 = vpack.c.bf16 %v469, %v469
        %v507 = vpack.c.bf16 %v471, %v470
        %v508 = vpack.c.bf16 %v472, %v472
        %v509 = vld [vmem:[#allocation7] sm:$0xf]
        %v510 = vld [vmem:[#allocation7 + $0x4] sm:$0xf]
        %v511 = vld [vmem:[#allocation7 + $0x8] sm:$0xf]
        %v512 = vld [vmem:[#allocation7 + $0xc] sm:$0xf]
        %v513 = vld [vmem:[#allocation7 + $0x10] sm:$0xf]
        %v514 = vld [vmem:[#allocation7 + $0x14] sm:$0xf]
        %v515 = vld [vmem:[#allocation7 + $0x18] sm:$0xf]
        %v516 = vld [vmem:[#allocation7 + $0x1c] sm:$0xf]
        %v517 = vld [vmem:[#allocation7 + $0x20] sm:$0xf]
        %v518 = vld [vmem:[#allocation7 + $0x24] sm:$0xf]
        %v519 = vld [vmem:[#allocation7 + $0x28] sm:$0xf]
        %v520 = vld [vmem:[#allocation7 + $0x2c] sm:$0xf]
        %v521 = vld [vmem:[#allocation7 + $0x30] sm:$0xf]
        %v522 = vld [vmem:[#allocation7 + $0x34] sm:$0xf]
        %v523 = vld [vmem:[#allocation7 + $0x38] sm:$0xf]
        %v524 = vld [vmem:[#allocation7 + $0x3c] sm:$0xf]
        %v525 = vld [vmem:[#allocation7 + $0x40] sm:$0xf]
        %v526 = vld [vmem:[#allocation7 + $0x44] sm:$0xf]
        %v527 = vld [vmem:[#allocation7 + $0x48] sm:$0xf]
        %v528 = vld [vmem:[#allocation7 + $0x4c] sm:$0xf]
        %v529 = vld [vmem:[#allocation7 + $0x50] sm:$0xf]
        %v530 = vld [vmem:[#allocation7 + $0x54] sm:$0xf]
        %v531 = vld [vmem:[#allocation7 + $0x58] sm:$0xf]
        %v532 = vld [vmem:[#allocation7 + $0x5c] sm:$0xf]
        %v533 = vld [vmem:[#allocation7 + $0x60] sm:$0xf]
        %v534 = vld [vmem:[#allocation7 + $0x64] sm:$0xf]
        %v535 = vld [vmem:[#allocation7 + $0x68] sm:$0xf]
        %v536 = vld [vmem:[#allocation7 + $0x6c] sm:$0xf]
        %v537 = vld [vmem:[#allocation7 + $0x70] sm:$0xf]
        %v538 = vld [vmem:[#allocation7 + $0x74] sm:$0xf]
        %v539 = vld [vmem:[#allocation7 + $0x78] sm:$0xf]
        %v540 = vld [vmem:[#allocation7 + $0x7c] sm:$0xf]
        %v541 = vld [vmem:[#allocation7 + $0x80] sm:$0xf]
        %v542 = vld [vmem:[#allocation7 + $0x84] sm:$0xf]
        %v543 = vld [vmem:[#allocation7 + $0x88] sm:$0xf]
        %v544 = vld [vmem:[#allocation7 + $0x8c] sm:$0xf]
        %v545 = vld [vmem:[#allocation7 + $0x90] sm:$0xf]
        %v546 = vld [vmem:[#allocation7 + $0x94] sm:$0xf]
        %v547 = vld [vmem:[#allocation7 + $0x98] sm:$0xf]
        %v548 = vld [vmem:[#allocation7 + $0x9c] sm:$0xf]
        %v549 = vld [vmem:[#allocation7 + $0xa0] sm:$0xf]
        %v550 = vld [vmem:[#allocation7 + $0xa4] sm:$0xf]
        %v551 = vld [vmem:[#allocation7 + $0xa8] sm:$0xf]
        %v552 = vld [vmem:[#allocation7 + $0xac] sm:$0xf]
        %v553 = vld [vmem:[#allocation7 + $0xb0] sm:$0xf]
        %v554 = vld [vmem:[#allocation7 + $0xb4] sm:$0xf]
        %v555 = vld [vmem:[#allocation7 + $0xb8] sm:$0xf]
        %v556 = vld [vmem:[#allocation7 + $0xbc] sm:$0xf]
        %v557 = vld [vmem:[#allocation7 + $0xc0] sm:$0xf]
        %v558 = vld [vmem:[#allocation7 + $0xc4] sm:$0xf]
        %v559 = vld [vmem:[#allocation7 + $0xc8] sm:$0xf]
        %v560 = vld [vmem:[#allocation7 + $0xcc] sm:$0xf]
        %v561 = vld [vmem:[#allocation7 + $0xd0] sm:$0xf]
        %v562 = vld [vmem:[#allocation7 + $0xd4] sm:$0xf]
        %v563 = vld [vmem:[#allocation7 + $0xd8] sm:$0xf]
        %v564 = vld [vmem:[#allocation7 + $0xdc] sm:$0xf]
        %v565 = vld [vmem:[#allocation7 + $0xe0] sm:$0xf]
        %v566 = vld [vmem:[#allocation7 + $0xe4] sm:$0xf]
        %v567 = vld [vmem:[#allocation7 + $0xe8] sm:$0xf]
        %v568 = vld [vmem:[#allocation7 + $0xec] sm:$0xf]
        %v569 = vld [vmem:[#allocation7 + $0xf0] sm:$0xf]
        %v570 = vld [vmem:[#allocation7 + $0xf4] sm:$0xf]
        %v571 = vld [vmem:[#allocation7 + $0xf8] sm:$0xf]
        %v572 = vld [vmem:[#allocation7 + $0xfc] sm:$0xf]
        %v573 = vld [vmem:[#allocation7 + $0x100] sm:$0xf]
        %v574 = vld [vmem:[#allocation7 + $0x104] sm:$0xf]
        %v575 = vld [vmem:[#allocation7 + $0x108] sm:$0xf]
        %v576 = vld [vmem:[#allocation7 + $0x10c] sm:$0xf]
        %v577 = vld [vmem:[#allocation7 + $0x110] sm:$0xf]
        %v578 = vld [vmem:[#allocation7 + $0x114] sm:$0xf]
        %v579 = vld [vmem:[#allocation7 + $0x118] sm:$0xf]
        %v580 = vld [vmem:[#allocation7 + $0x11c] sm:$0xf]
        %vm581 = vsmask.f32 7424
        %v583 = vshrl.u32 %v473, 16
        %v585 = vshll.u32 %v473, 16
        %v587 = vrot.slane %v585, 1
        %v588 = vor.u32 %v583, %v587
        %v590 = vshll.u32 %v474, 16
        %v592 = vrot.slane %v590, 1
        %v593 = vsel %vm581, %v588, %v592
        %v595 = vshrl.u32 %v475, 16
        %v597 = vshll.u32 %v475, 16
        %v599 = vrot.slane %v597, 1
        %v600 = vor.u32 %v595, %v599
        %v602 = vshll.u32 %v476, 16
        %v604 = vrot.slane %v602, 1
        %v605 = vsel %vm581, %v600, %v604
        %v607 = vshrl.u32 %v477, 16
        %v609 = vshll.u32 %v477, 16
        %v611 = vrot.slane %v609, 1
        %v612 = vor.u32 %v607, %v611
        %v614 = vshll.u32 %v478, 16
        %v616 = vrot.slane %v614, 1
        %v617 = vsel %vm581, %v612, %v616
        %v619 = vshrl.u32 %v479, 16
        %v621 = vshll.u32 %v479, 16
        %v623 = vrot.slane %v621, 1
        %v624 = vor.u32 %v619, %v623
        %v626 = vshll.u32 %v480, 16
        %v628 = vrot.slane %v626, 1
        %v629 = vsel %vm581, %v624, %v628
        %v631 = vshrl.u32 %v481, 16
        %v633 = vshll.u32 %v481, 16
        %v635 = vrot.slane %v633, 1
        %v636 = vor.u32 %v631, %v635
        %v638 = vshll.u32 %v482, 16
        %v640 = vrot.slane %v638, 1
        %v641 = vsel %vm581, %v636, %v640
        %v643 = vshrl.u32 %v483, 16
        %v645 = vshll.u32 %v483, 16
        %v647 = vrot.slane %v645, 1
        %v648 = vor.u32 %v643, %v647
        %v650 = vshll.u32 %v484, 16
        %v652 = vrot.slane %v650, 1
        %v653 = vsel %vm581, %v648, %v652
        %v655 = vshrl.u32 %v485, 16
        %v657 = vshll.u32 %v485, 16
        %v659 = vrot.slane %v657, 1
        %v660 = vor.u32 %v655, %v659
        %v662 = vshll.u32 %v486, 16
        %v664 = vrot.slane %v662, 1
        %v665 = vsel %vm581, %v660, %v664
        %v667 = vshrl.u32 %v487, 16
        %v669 = vshll.u32 %v487, 16
        %v671 = vrot.slane %v669, 1
        %v672 = vor.u32 %v667, %v671
        %v674 = vshll.u32 %v488, 16
        %v676 = vrot.slane %v674, 1
        %v677 = vsel %vm581, %v672, %v676
        %v679 = vshrl.u32 %v489, 16
        %v681 = vshll.u32 %v489, 16
        %v683 = vrot.slane %v681, 1
        %v684 = vor.u32 %v679, %v683
        %v686 = vshll.u32 %v490, 16
        %v688 = vrot.slane %v686, 1
        %v689 = vsel %vm581, %v684, %v688
        %v691 = vshrl.u32 %v491, 16
        %v693 = vshll.u32 %v491, 16
        %v695 = vrot.slane %v693, 1
        %v696 = vor.u32 %v691, %v695
        %v698 = vshll.u32 %v492, 16
        %v700 = vrot.slane %v698, 1
        %v701 = vsel %vm581, %v696, %v700
        %v703 = vshrl.u32 %v493, 16
        %v705 = vshll.u32 %v493, 16
        %v707 = vrot.slane %v705, 1
        %v708 = vor.u32 %v703, %v707
        %v710 = vshll.u32 %v494, 16
        %v712 = vrot.slane %v710, 1
        %v713 = vsel %vm581, %v708, %v712
        %v715 = vshrl.u32 %v495, 16
        %v717 = vshll.u32 %v495, 16
        %v719 = vrot.slane %v717, 1
        %v720 = vor.u32 %v715, %v719
        %v722 = vshll.u32 %v496, 16
        %v724 = vrot.slane %v722, 1
        %v725 = vsel %vm581, %v720, %v724
        %v727 = vshrl.u32 %v497, 16
        %v729 = vshll.u32 %v497, 16
        %v731 = vrot.slane %v729, 1
        %v732 = vor.u32 %v727, %v731
        %v734 = vshll.u32 %v498, 16
        %v736 = vrot.slane %v734, 1
        %v737 = vsel %vm581, %v732, %v736
        %v739 = vshrl.u32 %v499, 16
        %v741 = vshll.u32 %v499, 16
        %v743 = vrot.slane %v741, 1
        %v744 = vor.u32 %v739, %v743
        %v746 = vshll.u32 %v500, 16
        %v748 = vrot.slane %v746, 1
        %v749 = vsel %vm581, %v744, %v748
        %v751 = vshrl.u32 %v501, 16
        %v753 = vshll.u32 %v501, 16
        %v755 = vrot.slane %v753, 1
        %v756 = vor.u32 %v751, %v755
        %v758 = vshll.u32 %v502, 16
        %v760 = vrot.slane %v758, 1
        %v761 = vsel %vm581, %v756, %v760
        %v763 = vshrl.u32 %v503, 16
        %v765 = vshll.u32 %v503, 16
        %v767 = vrot.slane %v765, 1
        %v768 = vor.u32 %v763, %v767
        %v770 = vshll.u32 %v504, 16
        %v772 = vrot.slane %v770, 1
        %v773 = vsel %vm581, %v768, %v772
        %774 = vrot.lane.b32.xlu0 %v593, 64
        %v775 = vpop.permute.xlu0 %774
        %776 = vrot.lane.b32.xlu0 %v605, 64
        %v777 = vpop.permute.xlu0 %776
        %778 = vrot.lane.b32.xlu0 %v617, 64
        %v779 = vpop.permute.xlu0 %778
        %780 = vrot.lane.b32.xlu0 %v629, 64
        %v781 = vpop.permute.xlu0 %780
        %782 = vrot.lane.b32.xlu0 %v641, 64
        %v783 = vpop.permute.xlu0 %782
        %784 = vrot.lane.b32.xlu0 %v653, 64
        %v785 = vpop.permute.xlu0 %784
        %786 = vrot.lane.b32.xlu0 %v665, 64
        %v787 = vpop.permute.xlu0 %786
        %788 = vrot.lane.b32.xlu0 %v677, 64
        %v789 = vpop.permute.xlu0 %788
        %790 = vrot.lane.b32.xlu0 %v689, 64
        %v791 = vpop.permute.xlu0 %790
        %792 = vrot.lane.b32.xlu0 %v701, 64
        %v793 = vpop.permute.xlu0 %792
        %794 = vrot.lane.b32.xlu0 %v713, 64
        %v795 = vpop.permute.xlu0 %794
        %796 = vrot.lane.b32.xlu0 %v725, 64
        %v797 = vpop.permute.xlu0 %796
        %798 = vrot.lane.b32.xlu0 %v737, 64
        %v799 = vpop.permute.xlu0 %798
        %800 = vrot.lane.b32.xlu0 %v749, 64
        %v801 = vpop.permute.xlu0 %800
        %802 = vrot.lane.b32.xlu0 %v761, 64
        %v803 = vpop.permute.xlu0 %802
        %804 = vrot.lane.b32.xlu0 %v773, 64
        %v805 = vpop.permute.xlu0 %804
        %vm838 = vcmask 1046528
        %v839 = vrot.slane %v473, 1
        %v840 = vrot.slane %v474, 1
        %v841 = vsel %vm838, %v839, %v840
        %v842 = vrot.slane %v475, 1
        %v843 = vrot.slane %v476, 1
        %v844 = vsel %vm838, %v842, %v843
        %v845 = vrot.slane %v477, 1
        %v846 = vrot.slane %v478, 1
        %v847 = vsel %vm838, %v845, %v846
        %v848 = vrot.slane %v479, 1
        %v849 = vrot.slane %v480, 1
        %v850 = vsel %vm838, %v848, %v849
        %v851 = vrot.slane %v481, 1
        %v852 = vrot.slane %v482, 1
        %v853 = vsel %vm838, %v851, %v852
        %v854 = vrot.slane %v483, 1
        %v855 = vrot.slane %v484, 1
        %v856 = vsel %vm838, %v854, %v855
        %v857 = vrot.slane %v485, 1
        %v858 = vrot.slane %v486, 1
        %v859 = vsel %vm838, %v857, %v858
        %v860 = vrot.slane %v487, 1
        %v861 = vrot.slane %v488, 1
        %v862 = vsel %vm838, %v860, %v861
        %v863 = vrot.slane %v489, 1
        %v864 = vrot.slane %v490, 1
        %v865 = vsel %vm838, %v863, %v864
        %v866 = vrot.slane %v491, 1
        %v867 = vrot.slane %v492, 1
        %v868 = vsel %vm838, %v866, %v867
        %v869 = vrot.slane %v493, 1
        %v870 = vrot.slane %v494, 1
        %v871 = vsel %vm838, %v869, %v870
        %v872 = vrot.slane %v495, 1
        %v873 = vrot.slane %v496, 1
        %v874 = vsel %vm838, %v872, %v873
        %v875 = vrot.slane %v497, 1
        %v876 = vrot.slane %v498, 1
        %v877 = vsel %vm838, %v875, %v876
        %v878 = vrot.slane %v499, 1
        %v879 = vrot.slane %v500, 1
        %v880 = vsel %vm838, %v878, %v879
        %v881 = vrot.slane %v501, 1
        %v882 = vrot.slane %v502, 1
        %v883 = vsel %vm838, %v881, %v882
        %v884 = vrot.slane %v503, 1
        %v885 = vrot.slane %v504, 1
        %v886 = vsel %vm838, %v884, %v885
        %888 = vrot.lane.b32.xlu0 %v475, 64
        %v889 = vpop.permute.xlu0 %888
        %890 = vrot.lane.b32.xlu0 %v477, 64
        %v891 = vpop.permute.xlu0 %890
        %892 = vrot.lane.b32.xlu0 %v479, 64
        %v893 = vpop.permute.xlu0 %892
        %894 = vrot.lane.b32.xlu0 %v481, 64
        %v895 = vpop.permute.xlu0 %894
        %896 = vrot.lane.b32.xlu0 %v483, 64
        %v897 = vpop.permute.xlu0 %896
        %898 = vrot.lane.b32.xlu0 %v485, 64
        %v899 = vpop.permute.xlu0 %898
        %900 = vrot.lane.b32.xlu0 %v487, 64
        %v901 = vpop.permute.xlu0 %900
        %902 = vrot.lane.b32.xlu0 %v489, 64
        %v903 = vpop.permute.xlu0 %902
        %904 = vrot.lane.b32.xlu0 %v491, 64
        %v905 = vpop.permute.xlu0 %904
        %906 = vrot.lane.b32.xlu0 %v493, 64
        %v907 = vpop.permute.xlu0 %906
        %908 = vrot.lane.b32.xlu0 %v495, 64
        %v909 = vpop.permute.xlu0 %908
        %910 = vrot.lane.b32.xlu0 %v497, 64
        %v911 = vpop.permute.xlu0 %910
        %912 = vrot.lane.b32.xlu0 %v499, 64
        %v913 = vpop.permute.xlu0 %912
        %914 = vrot.lane.b32.xlu0 %v501, 64
        %v915 = vpop.permute.xlu0 %914
        %916 = vrot.lane.b32.xlu0 %v503, 64
        %v917 = vpop.permute.xlu0 %916
        %918 = vrot.lane.b32.xlu0 %v505, 64
        %v919 = vpop.permute.xlu0 %918
        %v921 = vshrl.u32 %v505, 16
        %v923 = vshll.u32 %v505, 16
        %v925 = vrot.slane %v923, 1
        %v926 = vor.u32 %v921, %v925
        %v928 = vshll.u32 %v506, 16
        %v930 = vrot.slane %v928, 1
        %v931 = vsel %vm581, %v926, %v930
        %v933 = vrot.slane %v505, 1
        %v934 = vrot.slane %v506, 1
        %v935 = vsel %vm838, %v933, %v934
        %936 = vrot.lane.b32.xlu0 %v844, 64
        %v937 = vpop.permute.xlu0 %936
        %938 = vrot.lane.b32.xlu0 %v847, 64
        %v939 = vpop.permute.xlu0 %938
        %940 = vrot.lane.b32.xlu0 %v850, 64
        %v941 = vpop.permute.xlu0 %940
        %942 = vrot.lane.b32.xlu0 %v853, 64
        %v943 = vpop.permute.xlu0 %942
        %944 = vrot.lane.b32.xlu0 %v856, 64
        %v945 = vpop.permute.xlu0 %944
        %946 = vrot.lane.b32.xlu0 %v859, 64
        %v947 = vpop.permute.xlu0 %946
        %948 = vrot.lane.b32.xlu0 %v862, 64
        %v949 = vpop.permute.xlu0 %948
        %950 = vrot.lane.b32.xlu0 %v865, 64
        %v951 = vpop.permute.xlu0 %950
        %952 = vrot.lane.b32.xlu0 %v868, 64
        %v953 = vpop.permute.xlu0 %952
        %954 = vrot.lane.b32.xlu0 %v871, 64
        %v955 = vpop.permute.xlu0 %954
        %956 = vrot.lane.b32.xlu0 %v874, 64
        %v957 = vpop.permute.xlu0 %956
        %958 = vrot.lane.b32.xlu0 %v877, 64
        %v959 = vpop.permute.xlu0 %958
        %960 = vrot.lane.b32.xlu0 %v880, 64
        %v961 = vpop.permute.xlu0 %960
        %962 = vrot.lane.b32.xlu0 %v883, 64
        %v963 = vpop.permute.xlu0 %962
        %964 = vrot.lane.b32.xlu0 %v886, 64
        %v965 = vpop.permute.xlu0 %964
        %966 = vrot.lane.b32.xlu0 %v935, 64
        %v967 = vpop.permute.xlu0 %966
        %v969 = vshrl.u32 %v507, 16
        %v971 = vshll.u32 %v507, 16
        %v973 = vrot.slane %v971, 1
        %v974 = vor.u32 %v969, %v973
        %v976 = vshll.u32 %v508, 16
        %v978 = vrot.slane %v976, 1
        %v979 = vsel %vm581, %v974, %v978
        %980 = vrot.lane.b32.xlu0 %v931, 64
        %v981 = vpop.permute.xlu0 %980
        %982 = vrot.lane.b32.xlu0 %v979, 64
        %v983 = vpop.permute.xlu0 %982
        %v986 = vrot.slane %v507, 1
        %v987 = vrot.slane %v508, 1
        %v988 = vsel %vm838, %v986, %v987
        %v990 = vsel %vm330, %v473, %v775
        %v993 = vsel %vm330, %v475, %v777
        %v996 = vsel %vm330, %v477, %v779
        %v999 = vsel %vm330, %v479, %v781
        %v1002 = vsel %vm330, %v481, %v783
        %v1005 = vsel %vm330, %v483, %v785
        %v1008 = vsel %vm330, %v485, %v787
        %v1011 = vsel %vm330, %v487, %v789
        %v1014 = vsel %vm330, %v489, %v791
        %v1017 = vsel %vm330, %v491, %v793
        %v1020 = vsel %vm330, %v493, %v795
        %v1023 = vsel %vm330, %v495, %v797
        %v1026 = vsel %vm330, %v497, %v799
        %v1029 = vsel %vm330, %v499, %v801
        %v1032 = vsel %vm330, %v501, %v803
        %v1035 = vsel %vm330, %v503, %v805
        %v1039 = vsel %vm330, %v841, %v889
        %v1043 = vsel %vm330, %v844, %v891
        %v1047 = vsel %vm330, %v847, %v893
        %v1051 = vsel %vm330, %v850, %v895
        %v1055 = vsel %vm330, %v853, %v897
        %v1059 = vsel %vm330, %v856, %v899
        %v1063 = vsel %vm330, %v859, %v901
        %v1067 = vsel %vm330, %v862, %v903
        %v1071 = vsel %vm330, %v865, %v905
        %v1075 = vsel %vm330, %v868, %v907
        %v1079 = vsel %vm330, %v871, %v909
        %v1083 = vsel %vm330, %v874, %v911
        %v1087 = vsel %vm330, %v877, %v913
        %v1091 = vsel %vm330, %v880, %v915
        %v1095 = vsel %vm330, %v883, %v917
        %v1099 = vsel %vm330, %v886, %v919
        %v1103 = vsel %vm330, %v605, %v937
        %v1107 = vsel %vm330, %v617, %v939
        %v1111 = vsel %vm330, %v629, %v941
        %v1115 = vsel %vm330, %v641, %v943
        %v1119 = vsel %vm330, %v653, %v945
        %v1123 = vsel %vm330, %v665, %v947
        %v1127 = vsel %vm330, %v677, %v949
        %v1131 = vsel %vm330, %v689, %v951
        %v1135 = vsel %vm330, %v701, %v953
        %v1139 = vsel %vm330, %v713, %v955
        %v1143 = vsel %vm330, %v725, %v957
        %v1147 = vsel %vm330, %v737, %v959
        %v1151 = vsel %vm330, %v749, %v961
        %v1155 = vsel %vm330, %v761, %v963
        %v1159 = vsel %vm330, %v773, %v965
        %v1163 = vsel %vm330, %v931, %v967
        %v1166 = vsel %vm330, %v505, %v981
        %v1169 = vsel %vm330, %v507, %v983
        %v1171 = vld [vmem:[#allocation9] sm:$0x1]
        %v1173 = vlaneseq
        %v1174 = vshrl.u32 %v1173, 7
        %v1175 = vsub.s32 0, %v1174
        %v1176 = vrot.slane %v1171, %v1175
        %v1250 = vunpack.c.l.b16 %v509
        %v1251 = vunpack.c.l.b16 %v510
        %v1252 = vunpack.c.l.b16 %v511
        %v1253 = vunpack.c.l.b16 %v512
        %v1254 = vunpack.c.l.b16 %v513
        %v1255 = vunpack.c.l.b16 %v514
        %v1256 = vunpack.c.l.b16 %v515
        %v1257 = vunpack.c.l.b16 %v516
        %v1258 = vunpack.c.l.b16 %v517
        %v1259 = vunpack.c.l.b16 %v518
        %v1260 = vunpack.c.l.b16 %v519
        %v1261 = vunpack.c.l.b16 %v520
        %v1262 = vunpack.c.l.b16 %v521
        %v1263 = vunpack.c.l.b16 %v522
        %v1264 = vunpack.c.l.b16 %v523
        %v1265 = vunpack.c.l.b16 %v524
        %v1266 = vunpack.c.l.b16 %v525
        %v1267 = vunpack.c.l.b16 %v526
        %v1268 = vunpack.c.l.b16 %v527
        %v1269 = vunpack.c.l.b16 %v528
        %v1270 = vunpack.c.l.b16 %v529
        %v1271 = vunpack.c.l.b16 %v530
        %v1272 = vunpack.c.l.b16 %v531
        %v1273 = vunpack.c.l.b16 %v532
        %v1274 = vunpack.c.l.b16 %v533
        %v1275 = vunpack.c.l.b16 %v534
        %v1276 = vunpack.c.l.b16 %v535
        %v1277 = vunpack.c.l.b16 %v536
        %v1278 = vunpack.c.l.b16 %v537
        %v1279 = vunpack.c.l.b16 %v538
        %v1280 = vunpack.c.l.b16 %v539
        %v1281 = vunpack.c.l.b16 %v540
        %v1282 = vunpack.c.l.b16 %v541
        %v1283 = vunpack.c.l.b16 %v542
        %v1284 = vunpack.c.l.b16 %v543
        %v1285 = vunpack.c.l.b16 %v544
        %v1286 = vunpack.c.l.b16 %v545
        %v1287 = vunpack.c.l.b16 %v546
        %v1288 = vunpack.c.l.b16 %v547
        %v1289 = vunpack.c.l.b16 %v548
        %v1290 = vunpack.c.l.b16 %v549
        %v1291 = vunpack.c.l.b16 %v550
        %v1292 = vunpack.c.l.b16 %v551
        %v1293 = vunpack.c.l.b16 %v552
        %v1294 = vunpack.c.l.b16 %v553
        %v1295 = vunpack.c.l.b16 %v554
        %v1296 = vunpack.c.l.b16 %v555
        %v1297 = vunpack.c.l.b16 %v556
        %v1298 = vunpack.c.l.b16 %v557
        %v1299 = vunpack.c.l.b16 %v558
        %v1300 = vunpack.c.l.b16 %v559
        %v1301 = vunpack.c.l.b16 %v560
        %v1302 = vunpack.c.l.b16 %v561
        %v1303 = vunpack.c.l.b16 %v562
        %v1304 = vunpack.c.l.b16 %v563
        %v1305 = vunpack.c.l.b16 %v564
        %v1306 = vunpack.c.l.b16 %v565
        %v1307 = vunpack.c.l.b16 %v566
        %v1308 = vunpack.c.l.b16 %v567
        %v1309 = vunpack.c.l.b16 %v568
        %v1310 = vunpack.c.l.b16 %v569
        %v1311 = vunpack.c.l.b16 %v570
        %v1312 = vunpack.c.l.b16 %v571
        %v1313 = vunpack.c.l.b16 %v572
        %v1314 = vunpack.c.l.b16 %v573
        %v1315 = vunpack.c.l.b16 %v574
        %v1316 = vunpack.c.l.b16 %v575
        %v1317 = vunpack.c.l.b16 %v576
        %v1318 = vunpack.c.l.b16 %v577
        %v1319 = vunpack.c.l.b16 %v578
        %v1320 = vunpack.c.l.b16 %v579
        %v1321 = vunpack.c.l.b16 %v580
        %v1322 = vpack.c.b16 %v1251, %v1250
        %v1323 = vpack.c.b16 %v1253, %v1252
        %v1324 = vpack.c.b16 %v1255, %v1254
        %v1325 = vpack.c.b16 %v1257, %v1256
        %v1326 = vpack.c.b16 %v1259, %v1258
        %v1327 = vpack.c.b16 %v1261, %v1260
        %v1328 = vpack.c.b16 %v1263, %v1262
        %v1329 = vpack.c.b16 %v1265, %v1264
        %v1330 = vpack.c.b16 %v1267, %v1266
        %v1331 = vpack.c.b16 %v1269, %v1268
        %v1332 = vpack.c.b16 %v1271, %v1270
        %v1333 = vpack.c.b16 %v1273, %v1272
        %v1334 = vpack.c.b16 %v1275, %v1274
        %v1335 = vpack.c.b16 %v1277, %v1276
        %v1336 = vpack.c.b16 %v1279, %v1278
        %v1337 = vpack.c.b16 %v1281, %v1280
        %v1338 = vpack.c.b16 %v1283, %v1282
        %v1339 = vpack.c.b16 %v1285, %v1284
        %v1340 = vpack.c.b16 %v1287, %v1286
        %v1341 = vpack.c.b16 %v1289, %v1288
        %v1342 = vpack.c.b16 %v1291, %v1290
        %v1343 = vpack.c.b16 %v1293, %v1292
        %v1344 = vpack.c.b16 %v1295, %v1294
        %v1345 = vpack.c.b16 %v1297, %v1296
        %v1346 = vpack.c.b16 %v1299, %v1298
        %v1347 = vpack.c.b16 %v1301, %v1300
        %v1348 = vpack.c.b16 %v1303, %v1302
        %v1349 = vpack.c.b16 %v1305, %v1304
        %v1350 = vpack.c.b16 %v1307, %v1306
        %v1351 = vpack.c.b16 %v1309, %v1308
        %v1352 = vpack.c.b16 %v1311, %v1310
        %v1353 = vpack.c.b16 %v1313, %v1312
        %v1354 = vpack.c.b16 %v1315, %v1314
        %v1355 = vpack.c.b16 %v1317, %v1316
        %v1356 = vpack.c.b16 %v1319, %v1318
        %v1357 = vpack.c.b16 %v1321, %v1320
        %v1394 = vsel %vm330, %v847, 0
        %v1396 = vsel %vm330, %v850, 0
        %v1398 = vsel %vm330, %v853, 0
        %v1400 = vsel %vm330, %v856, 0
        %v1402 = vsel %vm330, %v859, 0
        %v1404 = vsel %vm330, %v862, 0
        %v1406 = vsel %vm330, %v865, 0
        %v1408 = vsel %vm330, %v868, 0
        %v1410 = vsel %vm330, %v871, 0
        %v1412 = vsel %vm330, %v874, 0
        %v1414 = vsel %vm330, %v877, 0
        %v1416 = vsel %vm330, %v880, 0
        %v1418 = vsel %vm330, %v883, 0
        %v1420 = vsel %vm330, %v886, 0
        %v1423 = vsel %vm330, %v935, 0
        %v1426 = vsel %vm330, %v988, 0
        %1428 = vmatprep.subr.bf16.mxu0 0
        %1429 = vmatpush1.bf16.msra.mxu0 %v1322
        %1430 = vmatprep.subr.bf16.mxu0 0
        %1431 = vmatpush1.bf16.msra.mxu0 %v1323
        %1432 = vmatprep.subr.bf16.mxu0 0
        %1433 = vmatpush1.bf16.msra.mxu0 %v1324
        %1434 = vmatprep.subr.bf16.mxu0 0
        %1435 = vmatpush1.bf16.msra.mxu0 %v1325
        %1436 = vmatprep.subr.bf16.mxu0 0
        %1437 = vmatpush1.bf16.msra.mxu0 %v1326
        %1438 = vmatprep.subr.bf16.mxu0 0
        %1439 = vmatpush1.bf16.msra.mxu0 %v1327
        %1440 = vmatprep.subr.bf16.mxu0 0
        %1441 = vmatpush1.bf16.msra.mxu0 %v1328
        %1442 = vmatprep.subr.bf16.mxu0 0
        %1443 = vmatpush1.bf16.msra.mxu0 %v1329
        %1444 = vmatprep.subr.bf16.mxu0 0
        %1445 = vmatpush1.bf16.msra.mxu0 %v1330
        %1446 = vmatprep.subr.bf16.mxu0 0
        %1447 = vmatpush1.bf16.msra.mxu0 %v1331
        %1448 = vmatprep.subr.bf16.mxu0 0
        %1449 = vmatpush1.bf16.msra.mxu0 %v1332
        %1450 = vmatprep.subr.bf16.mxu0 0
        %1451 = vmatpush1.bf16.msra.mxu0 %v1333
        %1452 = vmatprep.subr.bf16.mxu0 0
        %1453 = vmatpush1.bf16.msra.mxu0 %v1334
        %1454 = vmatprep.subr.bf16.mxu0 0
        %1455 = vmatpush1.bf16.msra.mxu0 %v1335
        %1456 = vmatprep.subr.bf16.mxu0 0
        %1457 = vmatpush1.bf16.msra.mxu0 %v1336
        %1458 = vmatprep.subr.bf16.mxu0 0
        %1459 = vmatpush1.bf16.msra.mxu0 %v1337
        %1460 = vmatprep.mubr.bf16.mxu0 %v1039
        %1461 = vmatmul.mubr.bf16.gmra.mrb[0].mxu0 %v990
        %v1462 = vpop.f32.mrb[0].mxu0
        %v1463 = vadd.f32 %v1176, %v1462
        %v1464 = vpop.f32.mrb[0].mxu0
        %v1465 = vpop.f32.mrb[0].mxu0
        %v1466 = vadd.f32 %v1176, %v1465
        %v1467 = vpop.f32.mrb[0].mxu0
        %1468 = vmatprep.mubr.bf16.mxu0 %v1043
        %1469 = vmatmul.mubr.bf16.gmra.mrb[0].mxu0 %v993
        %v1470 = vpop.f32.mrb[0].mxu0
        %v1471 = vadd.f32 %v1176, %v1470
        %v1472 = vpop.f32.mrb[0].mxu0
        %v1473 = vpop.f32.mrb[0].mxu0
        %v1474 = vadd.f32 %v1176, %v1473
        %v1475 = vpop.f32.mrb[0].mxu0
        %1476 = vmatprep.mubr.bf16.mxu0 %v1047
        %1477 = vmatmul.mubr.bf16.gmra.mrb[0].mxu0 %v996
        %v1478 = vpop.f32.mrb[0].mxu0
        %v1479 = vadd.f32 %v1176, %v1478
        %v1480 = vpop.f32.mrb[0].mxu0
        %v1481 = vpop.f32.mrb[0].mxu0
        %v1482 = vadd.f32 %v1176, %v1481
        %v1483 = vpop.f32.mrb[0].mxu0
        %1484 = vmatprep.mubr.bf16.mxu0 %v1051
        %1485 = vmatmul.mubr.bf16.gmra.mrb[0].mxu0 %v999
        %v1486 = vpop.f32.mrb[0].mxu0
        %v1487 = vadd.f32 %v1176, %v1486
        %v1488 = vpop.f32.mrb[0].mxu0
        %v1489 = vpop.f32.mrb[0].mxu0
        %v1490 = vadd.f32 %v1176, %v1489
        %v1491 = vpop.f32.mrb[0].mxu0
        %1492 = vmatprep.mubr.bf16.mxu0 %v1055
        %1493 = vmatmul.mubr.bf16.gmra.mrb[0].mxu0 %v1002
        %v1494 = vpop.f32.mrb[0].mxu0
        %v1495 = vadd.f32 %v1176, %v1494
        %v1496 = vpop.f32.mrb[0].mxu0
        %v1497 = vpop.f32.mrb[0].mxu0
        %v1498 = vadd.f32 %v1176, %v1497
        %v1499 = vpop.f32.mrb[0].mxu0
        %1500 = vmatprep.mubr.bf16.mxu0 %v1059
        %1501 = vmatmul.mubr.bf16.gmra.mrb[0].mxu0 %v1005
        %v1502 = vpop.f32.mrb[0].mxu0
        %v1503 = vadd.f32 %v1176, %v1502
        %v1504 = vpop.f32.mrb[0].mxu0
        %v1505 = vpop.f32.mrb[0].mxu0
        %v1506 = vadd.f32 %v1176, %v1505
        %v1507 = vpop.f32.mrb[0].mxu0
        %1508 = vmatprep.mubr.bf16.mxu0 %v1063
        %1509 = vmatmul.mubr.bf16.gmra.mrb[0].mxu0 %v1008
        %v1510 = vpop.f32.mrb[0].mxu0
        %v1511 = vadd.f32 %v1176, %v1510
        %v1512 = vpop.f32.mrb[0].mxu0
        %v1513 = vpop.f32.mrb[0].mxu0
        %v1514 = vadd.f32 %v1176, %v1513
        %v1515 = vpop.f32.mrb[0].mxu0
        %1516 = vmatprep.mubr.bf16.mxu0 %v1067
        %1517 = vmatmul.mubr.bf16.gmra.mrb[0].mxu0 %v1011
        %v1518 = vpop.f32.mrb[0].mxu0
        %v1519 = vadd.f32 %v1176, %v1518
        %v1520 = vpop.f32.mrb[0].mxu0
        %v1521 = vpop.f32.mrb[0].mxu0
        %v1522 = vadd.f32 %v1176, %v1521
        %v1523 = vpop.f32.mrb[0].mxu0
        %1524 = vmatprep.mubr.bf16.mxu0 %v1071
        %1525 = vmatmul.mubr.bf16.gmra.mrb[0].mxu0 %v1014
        %v1526 = vpop.f32.mrb[0].mxu0
        %v1527 = vadd.f32 %v1176, %v1526
        %v1528 = vpop.f32.mrb[0].mxu0
        %v1529 = vpop.f32.mrb[0].mxu0
        %v1530 = vadd.f32 %v1176, %v1529
        %v1531 = vpop.f32.mrb[0].mxu0
        %1532 = vmatprep.mubr.bf16.mxu0 %v1075
        %1533 = vmatmul.mubr.bf16.gmra.mrb[0].mxu0 %v1017
        %v1534 = vpop.f32.mrb[0].mxu0
        %v1535 = vadd.f32 %v1176, %v1534
        %v1536 = vpop.f32.mrb[0].mxu0
        %v1537 = vpop.f32.mrb[0].mxu0
        %v1538 = vadd.f32 %v1176, %v1537
        %v1539 = vpop.f32.mrb[0].mxu0
        %1540 = vmatprep.mubr.bf16.mxu0 %v1079
        %1541 = vmatmul.mubr.bf16.gmra.mrb[0].mxu0 %v1020
        %v1542 = vpop.f32.mrb[0].mxu0
        %v1543 = vadd.f32 %v1176, %v1542
        %v1544 = vpop.f32.mrb[0].mxu0
        %v1545 = vpop.f32.mrb[0].mxu0
        %v1546 = vadd.f32 %v1176, %v1545
        %v1547 = vpop.f32.mrb[0].mxu0
        %1548 = vmatprep.mubr.bf16.mxu0 %v1083
        %1549 = vmatmul.mubr.bf16.gmra.mrb[0].mxu0 %v1023
        %v1550 = vpop.f32.mrb[0].mxu0
        %v1551 = vadd.f32 %v1176, %v1550
        %v1552 = vpop.f32.mrb[0].mxu0
        %v1553 = vpop.f32.mrb[0].mxu0
        %v1554 = vadd.f32 %v1176, %v1553
        %v1555 = vpop.f32.mrb[0].mxu0
        %1556 = vmatprep.mubr.bf16.mxu0 %v1087
        %1557 = vmatmul.mubr.bf16.gmra.mrb[0].mxu0 %v1026
        %v1558 = vpop.f32.mrb[0].mxu0
        %v1559 = vadd.f32 %v1176, %v1558
        %v1560 = vpop.f32.mrb[0].mxu0
        %v1561 = vpop.f32.mrb[0].mxu0
        %v1562 = vadd.f32 %v1176, %v1561
        %v1563 = vpop.f32.mrb[0].mxu0
        %1564 = vmatprep.mubr.bf16.mxu0 %v1091
        %1565 = vmatmul.mubr.bf16.gmra.mrb[0].mxu0 %v1029
        %v1566 = vpop.f32.mrb[0].mxu0
        %v1567 = vadd.f32 %v1176, %v1566
        %v1568 = vpop.f32.mrb[0].mxu0
        %v1569 = vpop.f32.mrb[0].mxu0
        %v1570 = vadd.f32 %v1176, %v1569
        %v1571 = vpop.f32.mrb[0].mxu0
        %1572 = vmatprep.mubr.bf16.mxu0 %v1095
        %1573 = vmatmul.mubr.bf16.gmra.mrb[0].mxu0 %v1032
        %v1574 = vpop.f32.mrb[0].mxu0
        %v1575 = vadd.f32 %v1176, %v1574
        %v1576 = vpop.f32.mrb[0].mxu0
        %v1577 = vpop.f32.mrb[0].mxu0
        %v1578 = vadd.f32 %v1176, %v1577
        %v1579 = vpop.f32.mrb[0].mxu0
        %1580 = vmatprep.mubr.bf16.mxu0 %v1099
        %1581 = vmatmul.mubr.bf16.gmra.mrb[0].mxu0 %v1035
        %v1582 = vpop.f32.mrb[0].mxu0
        %v1583 = vadd.f32 %v1176, %v1582
        %v1584 = vpop.f32.mrb[0].mxu0
        %v1585 = vpop.f32.mrb[0].mxu0
        %v1586 = vadd.f32 %v1176, %v1585
        %v1587 = vpop.f32.mrb[0].mxu0
        %1588 = vdwg.mxu0
        %1589 = vmatprep.subr.bf16.mxu0 0
        %1590 = vmatpush1.bf16.msra.mxu0 %v1338
        %1591 = vmatprep.subr.bf16.mxu0 0
        %1592 = vmatpush1.bf16.msra.mxu0 %v1339
        %1593 = vmatprep.subr.bf16.mxu0 0
        %1594 = vmatpush1.bf16.msra.mxu0 %v1340
        %1595 = vmatprep.subr.bf16.mxu0 0
        %1596 = vmatpush1.bf16.msra.mxu0 %v1341
        %1597 = vmatprep.subr.bf16.mxu0 0
        %1598 = vmatpush1.bf16.msra.mxu0 %v1342
        %1599 = vmatprep.subr.bf16.mxu0 0
        %1600 = vmatpush1.bf16.msra.mxu0 %v1343
        %1601 = vmatprep.subr.bf16.mxu0 0
        %1602 = vmatpush1.bf16.msra.mxu0 %v1344
        %1603 = vmatprep.subr.bf16.mxu0 0
        %1604 = vmatpush1.bf16.msra.mxu0 %v1345
        %1605 = vmatprep.subr.bf16.mxu0 0
        %1606 = vmatpush1.bf16.msra.mxu0 %v1346
        %1607 = vmatprep.subr.bf16.mxu0 0
        %1608 = vmatpush1.bf16.msra.mxu0 %v1347
        %1609 = vmatprep.subr.bf16.mxu0 0
        %1610 = vmatpush1.bf16.msra.mxu0 %v1348
        %1611 = vmatprep.subr.bf16.mxu0 0
        %1612 = vmatpush1.bf16.msra.mxu0 %v1349
        %1613 = vmatprep.subr.bf16.mxu0 0
        %1614 = vmatpush1.bf16.msra.mxu0 %v1350
        %1615 = vmatprep.subr.bf16.mxu0 0
        %1616 = vmatpush1.bf16.msra.mxu0 %v1351
        %1617 = vmatprep.subr.bf16.mxu0 0
        %1618 = vmatpush1.bf16.msra.mxu0 %v1352
        %1619 = vmatprep.subr.bf16.mxu0 0
        %1620 = vmatpush1.bf16.msra.mxu0 %v1353
        %1621 = vmatprep.mubr.bf16.mxu0 %v996
        %1622 = vmatmul.mubr.bf16.gmra.mrb[0].mxu0 %v1103
        %v1623 = vpop.f32.mrb[0].mxu0
        %v1624 = vadd.f32 %v1463, %v1623
        %v1625 = vpop.f32.mrb[0].mxu0
        %v1626 = vpop.f32.mrb[0].mxu0
        %v1627 = vadd.f32 %v1466, %v1626
        %v1628 = vpop.f32.mrb[0].mxu0
        %1629 = vmatprep.mubr.bf16.mxu0 %v999
        %1630 = vmatmul.mubr.bf16.gmra.mrb[0].mxu0 %v1107
        %v1631 = vpop.f32.mrb[0].mxu0
        %v1632 = vadd.f32 %v1471, %v1631
        %v1633 = vpop.f32.mrb[0].mxu0
        %v1634 = vpop.f32.mrb[0].mxu0
        %v1635 = vadd.f32 %v1474, %v1634
        %v1636 = vpop.f32.mrb[0].mxu0
        %1637 = vmatprep.mubr.bf16.mxu0 %v1002
        %1638 = vmatmul.mubr.bf16.gmra.mrb[0].mxu0 %v1111
        %v1639 = vpop.f32.mrb[0].mxu0
        %v1640 = vadd.f32 %v1479, %v1639
        %v1641 = vpop.f32.mrb[0].mxu0
        %v1642 = vpop.f32.mrb[0].mxu0
        %v1643 = vadd.f32 %v1482, %v1642
        %v1644 = vpop.f32.mrb[0].mxu0
        %1645 = vmatprep.mubr.bf16.mxu0 %v1005
        %1646 = vmatmul.mubr.bf16.gmra.mrb[0].mxu0 %v1115
        %v1647 = vpop.f32.mrb[0].mxu0
        %v1648 = vadd.f32 %v1487, %v1647
        %v1649 = vpop.f32.mrb[0].mxu0
        %v1650 = vpop.f32.mrb[0].mxu0
        %v1651 = vadd.f32 %v1490, %v1650
        %v1652 = vpop.f32.mrb[0].mxu0
        %1653 = vmatprep.mubr.bf16.mxu0 %v1008
        %1654 = vmatmul.mubr.bf16.gmra.mrb[0].mxu0 %v1119
        %v1655 = vpop.f32.mrb[0].mxu0
        %v1656 = vadd.f32 %v1495, %v1655
        %v1657 = vpop.f32.mrb[0].mxu0
        %v1658 = vpop.f32.mrb[0].mxu0
        %v1659 = vadd.f32 %v1498, %v1658
        %v1660 = vpop.f32.mrb[0].mxu0
        %1661 = vmatprep.mubr.bf16.mxu0 %v1011
        %1662 = vmatmul.mubr.bf16.gmra.mrb[0].mxu0 %v1123
        %v1663 = vpop.f32.mrb[0].mxu0
        %v1664 = vadd.f32 %v1503, %v1663
        %v1665 = vpop.f32.mrb[0].mxu0
        %v1666 = vpop.f32.mrb[0].mxu0
        %v1667 = vadd.f32 %v1506, %v1666
        %v1668 = vpop.f32.mrb[0].mxu0
        %1669 = vmatprep.mubr.bf16.mxu0 %v1014
        %1670 = vmatmul.mubr.bf16.gmra.mrb[0].mxu0 %v1127
        %v1671 = vpop.f32.mrb[0].mxu0
        %v1672 = vadd.f32 %v1511, %v1671
        %v1673 = vpop.f32.mrb[0].mxu0
        %v1674 = vpop.f32.mrb[0].mxu0
        %v1675 = vadd.f32 %v1514, %v1674
        %v1676 = vpop.f32.mrb[0].mxu0
        %1677 = vmatprep.mubr.bf16.mxu0 %v1017
        %1678 = vmatmul.mubr.bf16.gmra.mrb[0].mxu0 %v1131
        %v1679 = vpop.f32.mrb[0].mxu0
        %v1680 = vadd.f32 %v1519, %v1679
        %v1681 = vpop.f32.mrb[0].mxu0
        %v1682 = vpop.f32.mrb[0].mxu0
        %v1683 = vadd.f32 %v1522, %v1682
        %v1684 = vpop.f32.mrb[0].mxu0
        %1685 = vmatprep.mubr.bf16.mxu0 %v1020
        %1686 = vmatmul.mubr.bf16.gmra.mrb[0].mxu0 %v1135
        %v1687 = vpop.f32.mrb[0].mxu0
        %v1688 = vadd.f32 %v1527, %v1687
        %v1689 = vpop.f32.mrb[0].mxu0
        %v1690 = vpop.f32.mrb[0].mxu0
        %v1691 = vadd.f32 %v1530, %v1690
        %v1692 = vpop.f32.mrb[0].mxu0
        %1693 = vmatprep.mubr.bf16.mxu0 %v1023
        %1694 = vmatmul.mubr.bf16.gmra.mrb[0].mxu0 %v1139
        %v1695 = vpop.f32.mrb[0].mxu0
        %v1696 = vadd.f32 %v1535, %v1695
        %v1697 = vpop.f32.mrb[0].mxu0
        %v1698 = vpop.f32.mrb[0].mxu0
        %v1699 = vadd.f32 %v1538, %v1698
        %v1700 = vpop.f32.mrb[0].mxu0
        %1701 = vmatprep.mubr.bf16.mxu0 %v1026
        %1702 = vmatmul.mubr.bf16.gmra.mrb[0].mxu0 %v1143
        %v1703 = vpop.f32.mrb[0].mxu0
        %v1704 = vadd.f32 %v1543, %v1703
        %v1705 = vpop.f32.mrb[0].mxu0
        %v1706 = vpop.f32.mrb[0].mxu0
        %v1707 = vadd.f32 %v1546, %v1706
        %v1708 = vpop.f32.mrb[0].mxu0
        %1709 = vmatprep.mubr.bf16.mxu0 %v1029
        %1710 = vmatmul.mubr.bf16.gmra.mrb[0].mxu0 %v1147
        %v1711 = vpop.f32.mrb[0].mxu0
        %v1712 = vadd.f32 %v1551, %v1711
        %v1713 = vpop.f32.mrb[0].mxu0
        %v1714 = vpop.f32.mrb[0].mxu0
        %v1715 = vadd.f32 %v1554, %v1714
        %v1716 = vpop.f32.mrb[0].mxu0
        %1717 = vmatprep.mubr.bf16.mxu0 %v1032
        %1718 = vmatmul.mubr.bf16.gmra.mrb[0].mxu0 %v1151
        %v1719 = vpop.f32.mrb[0].mxu0
        %v1720 = vadd.f32 %v1559, %v1719
        %v1721 = vpop.f32.mrb[0].mxu0
        %v1722 = vpop.f32.mrb[0].mxu0
        %v1723 = vadd.f32 %v1562, %v1722
        %v1724 = vpop.f32.mrb[0].mxu0
        %1725 = vmatprep.mubr.bf16.mxu0 %v1035
        %1726 = vmatmul.mubr.bf16.gmra.mrb[0].mxu0 %v1155
        %v1727 = vpop.f32.mrb[0].mxu0
        %v1728 = vadd.f32 %v1567, %v1727
        %v1729 = vpop.f32.mrb[0].mxu0
        %v1730 = vpop.f32.mrb[0].mxu0
        %v1731 = vadd.f32 %v1570, %v1730
        %v1732 = vpop.f32.mrb[0].mxu0
        %1733 = vmatprep.mubr.bf16.mxu0 %v1166
        %1734 = vmatmul.mubr.bf16.gmra.mrb[0].mxu0 %v1159
        %v1735 = vpop.f32.mrb[0].mxu0
        %v1736 = vadd.f32 %v1575, %v1735
        %v1737 = vpop.f32.mrb[0].mxu0
        %v1738 = vpop.f32.mrb[0].mxu0
        %v1739 = vadd.f32 %v1578, %v1738
        %v1740 = vpop.f32.mrb[0].mxu0
        %1741 = vmatprep.mubr.bf16.mxu0 %v1169
        %1742 = vmatmul.mubr.bf16.gmra.mrb[0].mxu0 %v1163
        %v1743 = vpop.f32.mrb[0].mxu0
        %v1744 = vadd.f32 %v1583, %v1743
        %v1745 = vpop.f32.mrb[0].mxu0
        %v1746 = vpop.f32.mrb[0].mxu0
        %v1747 = vadd.f32 %v1586, %v1746
        %v1748 = vpop.f32.mrb[0].mxu0
        %1749 = vdwg.mxu0
        %1750 = vmatprep.subr.bf16.mxu0 0
        %1751 = vmatpush1.bf16.msra.mxu0 %v1354
        %1752 = vmatprep.subr.bf16.mxu0 0
        %1753 = vmatpush1.bf16.msra.mxu0 %v1355
        %1754 = vmatprep.subr.bf16.mxu0 0
        %1755 = vmatpush1.bf16.msra.mxu0 %v1356
        %1756 = vmatprep.subr.bf16.mxu0 0
        %1757 = vmatpush1.bf16.msra.mxu0 %v1357
        %1758 = vmatprep.subr.bf16.mxu0 0
        %1759 = vmatpush1.bf16.msra.mxu0 0
        %1760 = vmatprep.subr.bf16.mxu0 0
        %1761 = vmatpush1.bf16.msra.mxu0 0
        %1762 = vmatprep.subr.bf16.mxu0 0
        %1763 = vmatpush1.bf16.msra.mxu0 0
        %1764 = vmatprep.subr.bf16.mxu0 0
        %1765 = vmatpush1.bf16.msra.mxu0 0
        %1766 = vmatprep.subr.bf16.mxu0 0
        %1767 = vmatpush1.bf16.msra.mxu0 0
        %1768 = vmatprep.subr.bf16.mxu0 0
        %1769 = vmatpush1.bf16.msra.mxu0 0
        %1770 = vmatprep.subr.bf16.mxu0 0
        %1771 = vmatpush1.bf16.msra.mxu0 0
        %1772 = vmatprep.subr.bf16.mxu0 0
        %1773 = vmatpush1.bf16.msra.mxu0 0
        %1774 = vmatprep.subr.bf16.mxu0 0
        %1775 = vmatpush1.bf16.msra.mxu0 0
        %1776 = vmatprep.subr.bf16.mxu0 0
        %1777 = vmatpush1.bf16.msra.mxu0 0
        %1778 = vmatprep.subr.bf16.mxu0 0
        %1779 = vmatpush1.bf16.msra.mxu0 0
        %1780 = vmatprep.subr.bf16.mxu0 0
        %1781 = vmatpush1.bf16.msra.mxu0 0
        %1782 = vmatprep.mubr.bf16.mxu0 0
        %1783 = vmatmul.mubr.bf16.gmra.mrb[0].mxu0 %v1394
        %v1784 = vpop.f32.mrb[0].mxu0
        %v1785 = vadd.f32 %v1624, %v1784
        %v1786 = vpop.f32.mrb[0].mxu0
        %v1787 = vpop.f32.mrb[0].mxu0
        %v1788 = vadd.f32 %v1627, %v1787
        %v1789 = vpop.f32.mrb[0].mxu0
        %1790 = vmatprep.mubr.bf16.mxu0 0
        %1791 = vmatmul.mubr.bf16.gmra.mrb[0].mxu0 %v1396
        %v1792 = vpop.f32.mrb[0].mxu0
        %v1793 = vadd.f32 %v1632, %v1792
        %v1794 = vpop.f32.mrb[0].mxu0
        %v1795 = vpop.f32.mrb[0].mxu0
        %v1796 = vadd.f32 %v1635, %v1795
        %v1797 = vpop.f32.mrb[0].mxu0
        %1798 = vmatprep.mubr.bf16.mxu0 0
        %1799 = vmatmul.mubr.bf16.gmra.mrb[0].mxu0 %v1398
        %v1800 = vpop.f32.mrb[0].mxu0
        %v1801 = vadd.f32 %v1640, %v1800
        %v1802 = vpop.f32.mrb[0].mxu0
        %v1803 = vpop.f32.mrb[0].mxu0
        %v1804 = vadd.f32 %v1643, %v1803
        %v1805 = vpop.f32.mrb[0].mxu0
        %1806 = vmatprep.mubr.bf16.mxu0 0
        %1807 = vmatmul.mubr.bf16.gmra.mrb[0].mxu0 %v1400
        %v1808 = vpop.f32.mrb[0].mxu0
        %v1809 = vadd.f32 %v1648, %v1808
        %v1810 = vpop.f32.mrb[0].mxu0
        %v1811 = vpop.f32.mrb[0].mxu0
        %v1812 = vadd.f32 %v1651, %v1811
        %v1813 = vpop.f32.mrb[0].mxu0
        %1814 = vmatprep.mubr.bf16.mxu0 0
        %1815 = vmatmul.mubr.bf16.gmra.mrb[0].mxu0 %v1402
        %v1816 = vpop.f32.mrb[0].mxu0
        %v1817 = vadd.f32 %v1656, %v1816
        %v1818 = vpop.f32.mrb[0].mxu0
        %v1819 = vpop.f32.mrb[0].mxu0
        %v1820 = vadd.f32 %v1659, %v1819
        %v1821 = vpop.f32.mrb[0].mxu0
        %1822 = vmatprep.mubr.bf16.mxu0 0
        %1823 = vmatmul.mubr.bf16.gmra.mrb[0].mxu0 %v1404
        %v1824 = vpop.f32.mrb[0].mxu0
        %v1825 = vadd.f32 %v1664, %v1824
        %v1826 = vpop.f32.mrb[0].mxu0
        %v1827 = vpop.f32.mrb[0].mxu0
        %v1828 = vadd.f32 %v1667, %v1827
        %v1829 = vpop.f32.mrb[0].mxu0
        %1830 = vmatprep.mubr.bf16.mxu0 0
        %1831 = vmatmul.mubr.bf16.gmra.mrb[0].mxu0 %v1406
        %v1832 = vpop.f32.mrb[0].mxu0
        %v1833 = vadd.f32 %v1672, %v1832
        %v1834 = vpop.f32.mrb[0].mxu0
        %v1835 = vpop.f32.mrb[0].mxu0
        %v1836 = vadd.f32 %v1675, %v1835
        %v1837 = vpop.f32.mrb[0].mxu0
        %1838 = vmatprep.mubr.bf16.mxu0 0
        %1839 = vmatmul.mubr.bf16.gmra.mrb[0].mxu0 %v1408
        %v1840 = vpop.f32.mrb[0].mxu0
        %v1841 = vadd.f32 %v1680, %v1840
        %v1842 = vpop.f32.mrb[0].mxu0
        %v1843 = vpop.f32.mrb[0].mxu0
        %v1844 = vadd.f32 %v1683, %v1843
        %v1845 = vpop.f32.mrb[0].mxu0
        %1846 = vmatprep.mubr.bf16.mxu0 0
        %1847 = vmatmul.mubr.bf16.gmra.mrb[0].mxu0 %v1410
        %v1848 = vpop.f32.mrb[0].mxu0
        %v1849 = vadd.f32 %v1688, %v1848
        %v1850 = vpop.f32.mrb[0].mxu0
        %v1851 = vpop.f32.mrb[0].mxu0
        %v1852 = vadd.f32 %v1691, %v1851
        %v1853 = vpop.f32.mrb[0].mxu0
        %1854 = vmatprep.mubr.bf16.mxu0 0
        %1855 = vmatmul.mubr.bf16.gmra.mrb[0].mxu0 %v1412
        %v1856 = vpop.f32.mrb[0].mxu0
        %v1857 = vadd.f32 %v1696, %v1856
        %v1858 = vpop.f32.mrb[0].mxu0
        %v1859 = vpop.f32.mrb[0].mxu0
        %v1860 = vadd.f32 %v1699, %v1859
        %v1861 = vpop.f32.mrb[0].mxu0
        %1862 = vmatprep.mubr.bf16.mxu0 0
        %1863 = vmatmul.mubr.bf16.gmra.mrb[0].mxu0 %v1414
        %v1864 = vpop.f32.mrb[0].mxu0
        %v1865 = vadd.f32 %v1704, %v1864
        %v1866 = vpop.f32.mrb[0].mxu0
        %v1867 = vpop.f32.mrb[0].mxu0
        %v1868 = vadd.f32 %v1707, %v1867
        %v1869 = vpop.f32.mrb[0].mxu0
        %1870 = vmatprep.mubr.bf16.mxu0 0
        %1871 = vmatmul.mubr.bf16.gmra.mrb[0].mxu0 %v1416
        %v1872 = vpop.f32.mrb[0].mxu0
        %v1873 = vadd.f32 %v1712, %v1872
        %v1874 = vpop.f32.mrb[0].mxu0
        %v1875 = vpop.f32.mrb[0].mxu0
        %v1876 = vadd.f32 %v1715, %v1875
        %v1877 = vpop.f32.mrb[0].mxu0
        %1878 = vmatprep.mubr.bf16.mxu0 0
        %1879 = vmatmul.mubr.bf16.gmra.mrb[0].mxu0 %v1418
        %v1880 = vpop.f32.mrb[0].mxu0
        %v1881 = vadd.f32 %v1720, %v1880
        %v1882 = vpop.f32.mrb[0].mxu0
        %v1883 = vpop.f32.mrb[0].mxu0
        %v1884 = vadd.f32 %v1723, %v1883
        %v1885 = vpop.f32.mrb[0].mxu0
        %1886 = vmatprep.mubr.bf16.mxu0 0
        %1887 = vmatmul.mubr.bf16.gmra.mrb[0].mxu0 %v1420
        %v1888 = vpop.f32.mrb[0].mxu0
        %v1889 = vadd.f32 %v1728, %v1888
        %v1890 = vpop.f32.mrb[0].mxu0
        %v1891 = vpop.f32.mrb[0].mxu0
        %v1892 = vadd.f32 %v1731, %v1891
        %v1893 = vpop.f32.mrb[0].mxu0
        %1894 = vmatprep.mubr.bf16.mxu0 0
        %1895 = vmatmul.mubr.bf16.gmra.mrb[0].mxu0 %v1423
        %v1896 = vpop.f32.mrb[0].mxu0
        %v1897 = vadd.f32 %v1736, %v1896
        %v1898 = vpop.f32.mrb[0].mxu0
        %v1899 = vpop.f32.mrb[0].mxu0
        %v1900 = vadd.f32 %v1739, %v1899
        %v1901 = vpop.f32.mrb[0].mxu0
        %1902 = vmatprep.mubr.bf16.mxu0 0
        %1903 = vmatmul.mubr.bf16.gmra.mrb[0].mxu0 %v1426
        %v1904 = vpop.f32.mrb[0].mxu0
        %v1905 = vadd.f32 %v1744, %v1904
        %v1906 = vpop.f32.mrb[0].mxu0
        %v1907 = vpop.f32.mrb[0].mxu0
        %v1908 = vadd.f32 %v1747, %v1907
        %v1909 = vpop.f32.mrb[0].mxu0
        %1910 = vdwg.mxu0
        %v1911 = vmax.f32 %v1785, 0.0
        %v1912 = vmax.f32 %v1788, 0.0
        %v1913 = vmax.f32 %v1793, 0.0
        %v1914 = vmax.f32 %v1796, 0.0
        %v1915 = vmax.f32 %v1801, 0.0
        %v1916 = vmax.f32 %v1804, 0.0
        %v1917 = vmax.f32 %v1809, 0.0
        %v1918 = vmax.f32 %v1812, 0.0
        %v1919 = vmax.f32 %v1817, 0.0
        %v1920 = vmax.f32 %v1820, 0.0
        %v1921 = vmax.f32 %v1825, 0.0
        %v1922 = vmax.f32 %v1828, 0.0
        %v1923 = vmax.f32 %v1833, 0.0
        %v1924 = vmax.f32 %v1836, 0.0
        %v1925 = vmax.f32 %v1841, 0.0
        %v1926 = vmax.f32 %v1844, 0.0
        %v1927 = vmax.f32 %v1849, 0.0
        %v1928 = vmax.f32 %v1852, 0.0
        %v1929 = vmax.f32 %v1857, 0.0
        %v1930 = vmax.f32 %v1860, 0.0
        %v1931 = vmax.f32 %v1865, 0.0
        %v1932 = vmax.f32 %v1868, 0.0
        %v1933 = vmax.f32 %v1873, 0.0
        %v1934 = vmax.f32 %v1876, 0.0
        %v1935 = vmax.f32 %v1881, 0.0
        %v1936 = vmax.f32 %v1884, 0.0
        %v1937 = vmax.f32 %v1889, 0.0
        %v1938 = vmax.f32 %v1892, 0.0
        %v1939 = vmax.f32 %v1897, 0.0
        %v1940 = vmax.f32 %v1900, 0.0
        %v1941 = vmax.f32 %v1905, 0.0
        %v1942 = vmax.f32 %v1908, 0.0
        %1943 = vst.msk [vmem:[#allocation3] sm:$0xff] %vm330, 0.0
        %1944 = vst.msk [vmem:[#allocation3 + $0x8] sm:$0xff] %vm330, 0.0
        %1945 = vst.msk [vmem:[#allocation3 + $0x10] sm:$0x3] %vm333, 0.0
        %1946 = vst.msk [vmem:[#allocation3 + $0x18] sm:$0xff] %vm330, 0.0
        %1947 = vst.msk [vmem:[#allocation3 + $0x20] sm:$0xff] %vm330, 0.0
        %1948 = vst.msk [vmem:[#allocation3 + $0x28] sm:$0x3] %vm333, 0.0
        %1949 = vst.msk [vmem:[#allocation3 + $0x30] sm:$0xff] %vm330, 0.0
        %1950 = vst.msk [vmem:[#allocation3 + $0x38] sm:$0xff] %vm330, 0.0
        %1951 = vst.msk [vmem:[#allocation3 + $0x40] sm:$0x3] %vm333, 0.0
        %1952 = vst.msk [vmem:[#allocation3 + $0x48] sm:$0xff] %vm330, 0.0
        %1953 = vst.msk [vmem:[#allocation3 + $0x50] sm:$0xff] %vm330, 0.0
        %1954 = vst.msk [vmem:[#allocation3 + $0x58] sm:$0x3] %vm333, 0.0
        %1955 = vst.msk [vmem:[#allocation3 + $0x60] sm:$0xff] %vm330, 0.0
        %1956 = vst.msk [vmem:[#allocation3 + $0x68] sm:$0xff] %vm330, 0.0
        %1957 = vst.msk [vmem:[#allocation3 + $0x70] sm:$0x3] %vm333, 0.0
        %1958 = vst.msk [vmem:[#allocation3 + $0x78] sm:$0xff] %vm330, 0.0
        %1959 = vst.msk [vmem:[#allocation3 + $0x80] sm:$0xff] %vm330, 0.0
        %1960 = vst.msk [vmem:[#allocation3 + $0x88] sm:$0x3] %vm333, 0.0
        %1961 = vst.msk [vmem:[#allocation3 + $0x90] sm:$0xff] %vm330, 0.0
        %1962 = vst.msk [vmem:[#allocation3 + $0x98] sm:$0xff] %vm330, 0.0
        %1963 = vst.msk [vmem:[#allocation3 + $0xa0] sm:$0x3] %vm333, 0.0
        %1964 = vst.msk [vmem:[#allocation3 + $0xa8] sm:$0xff] %vm330, 0.0
        %1965 = vst.msk [vmem:[#allocation3 + $0xb0] sm:$0xff] %vm330, 0.0
        %1966 = vst.msk [vmem:[#allocation3 + $0xb8] sm:$0x3] %vm333, 0.0
        %1967 = vst.msk [vmem:[#allocation3 + $0xc0] sm:$0xff] %vm330, 0.0
        %1968 = vst.msk [vmem:[#allocation3 + $0xc8] sm:$0xff] %vm330, 0.0
        %1969 = vst.msk [vmem:[#allocation3 + $0xd0] sm:$0x3] %vm333, 0.0
        %1970 = vst.msk [vmem:[#allocation3 + $0xd8] sm:$0xff] %vm330, 0.0
        %1971 = vst.msk [vmem:[#allocation3 + $0xe0] sm:$0xff] %vm330, 0.0
        %1972 = vst.msk [vmem:[#allocation3 + $0xe8] sm:$0x3] %vm333, 0.0
        %1973 = vst.msk [vmem:[#allocation3 + $0xf0] sm:$0xff] %vm330, 0.0
        %1974 = vst.msk [vmem:[#allocation3 + $0xf8] sm:$0xff] %vm330, 0.0
        %1975 = vst.msk [vmem:[#allocation3 + $0x100] sm:$0x3] %vm333, 0.0
        %1976 = vst.msk [vmem:[#allocation3 + $0x108] sm:$0xff] %vm330, 0.0
        %1977 = vst.msk [vmem:[#allocation3 + $0x110] sm:$0xff] %vm330, 0.0
        %1978 = vst.msk [vmem:[#allocation3 + $0x118] sm:$0x3] %vm333, 0.0
        %1979 = vst.msk [vmem:[#allocation3 + $0x120] sm:$0xff] %vm330, 0.0
        %1980 = vst.msk [vmem:[#allocation3 + $0x128] sm:$0xff] %vm330, 0.0
        %1981 = vst.msk [vmem:[#allocation3 + $0x130] sm:$0x3] %vm333, 0.0
        %1982 = vst.msk [vmem:[#allocation3 + $0x138] sm:$0xff] %vm330, 0.0
        %1983 = vst.msk [vmem:[#allocation3 + $0x140] sm:$0xff] %vm330, 0.0
        %1984 = vst.msk [vmem:[#allocation3 + $0x148] sm:$0x3] %vm333, 0.0
        %1985 = vst.msk [vmem:[#allocation3 + $0x150] sm:$0xff] %vm330, 0.0
        %1986 = vst.msk [vmem:[#allocation3 + $0x158] sm:$0xff] %vm330, 0.0
        %1987 = vst.msk [vmem:[#allocation3 + $0x160] sm:$0x3] %vm333, 0.0
        %1988 = vst.msk [vmem:[#allocation3 + $0x168] sm:$0xff] %vm330, 0.0
        %1989 = vst.msk [vmem:[#allocation3 + $0x170] sm:$0xff] %vm330, 0.0
        %1990 = vst.msk [vmem:[#allocation3 + $0x178] sm:$0x3] %vm333, 0.0
        %1991 = vst.msk [vmem:[#allocation3 + $0x180] sm:$0xff] %vm330, 0.0
        %1992 = vst.msk [vmem:[#allocation3 + $0x188] sm:$0xff] %vm330, 0.0
        %1993 = vst.msk [vmem:[#allocation3 + $0x190] sm:$0x3] %vm333, 0.0
        %1994 = vst.msk [vmem:[#allocation3 + $0x198] sm:$0xff] %vm330, 0.0
        %1995 = vst.msk [vmem:[#allocation3 + $0x1a0] sm:$0xff] %vm330, 0.0
        %1996 = vst.msk [vmem:[#allocation3 + $0x1a8] sm:$0x3] %vm333, 0.0
        %s1997 = scalar_lea.vmem [#allocation3], 24
        %1998 = vst.msk [vmem:[%s1997 + $0x1] sm:$0xff] %vm330, %v1911
        %1999 = vst.msk [vmem:[%s1997 + $0x9] sm:$0xff] %vm330, %v1912
        %2000 = vst.msk [vmem:[%s1997 + $0x19] sm:$0xff] %vm330, %v1913
        %2001 = vst.msk [vmem:[%s1997 + $0x21] sm:$0xff] %vm330, %v1914
        %2002 = vst.msk [vmem:[%s1997 + $0x31] sm:$0xff] %vm330, %v1915
        %2003 = vst.msk [vmem:[%s1997 + $0x39] sm:$0xff] %vm330, %v1916
        %2004 = vst.msk [vmem:[%s1997 + $0x49] sm:$0xff] %vm330, %v1917
        %2005 = vst.msk [vmem:[%s1997 + $0x51] sm:$0xff] %vm330, %v1918
        %2006 = vst.msk [vmem:[%s1997 + $0x61] sm:$0xff] %vm330, %v1919
        %2007 = vst.msk [vmem:[%s1997 + $0x69] sm:$0xff] %vm330, %v1920
        %2008 = vst.msk [vmem:[%s1997 + $0x79] sm:$0xff] %vm330, %v1921
        %2009 = vst.msk [vmem:[%s1997 + $0x81] sm:$0xff] %vm330, %v1922
        %2010 = vst.msk [vmem:[%s1997 + $0x91] sm:$0xff] %vm330, %v1923
        %2011 = vst.msk [vmem:[%s1997 + $0x99] sm:$0xff] %vm330, %v1924
        %2012 = vst.msk [vmem:[%s1997 + $0xa9] sm:$0xff] %vm330, %v1925
        %2013 = vst.msk [vmem:[%s1997 + $0xb1] sm:$0xff] %vm330, %v1926
        %2014 = vst.msk [vmem:[%s1997 + $0xc1] sm:$0xff] %vm330, %v1927
        %2015 = vst.msk [vmem:[%s1997 + $0xc9] sm:$0xff] %vm330, %v1928
        %2016 = vst.msk [vmem:[%s1997 + $0xd9] sm:$0xff] %vm330, %v1929
        %2017 = vst.msk [vmem:[%s1997 + $0xe1] sm:$0xff] %vm330, %v1930
        %2018 = vst.msk [vmem:[%s1997 + $0xf1] sm:$0xff] %vm330, %v1931
        %2019 = vst.msk [vmem:[%s1997 + $0xf9] sm:$0xff] %vm330, %v1932
        %2020 = vst.msk [vmem:[%s1997 + $0x109] sm:$0xff] %vm330, %v1933
        %2021 = vst.msk [vmem:[%s1997 + $0x111] sm:$0xff] %vm330, %v1934
        %2022 = vst.msk [vmem:[%s1997 + $0x121] sm:$0xff] %vm330, %v1935
        %2023 = vst.msk [vmem:[%s1997 + $0x129] sm:$0xff] %vm330, %v1936
        %2024 = vst.msk [vmem:[%s1997 + $0x139] sm:$0xff] %vm330, %v1937
        %2025 = vst.msk [vmem:[%s1997 + $0x141] sm:$0xff] %vm330, %v1938
        %2026 = vst.msk [vmem:[%s1997 + $0x151] sm:$0xff] %vm330, %v1939
        %2027 = vst.msk [vmem:[%s1997 + $0x159] sm:$0xff] %vm330, %v1940
        %2028 = vst.msk [vmem:[%s1997 + $0x169] sm:$0xff] %vm330, %v1941
        %2029 = vst.msk [vmem:[%s1997 + $0x171] sm:$0xff] %vm330, %v1942
        %v2030 = vld [vmem:[#allocation3] sm:$0xff]
        %v2031 = vld [vmem:[#allocation3 + $0x8] sm:$0xff]
        %v2032 = vld [vmem:[#allocation3 + $0x10] sm:$0x3]
        %v2033 = vld [vmem:[#allocation3 + $0x18] sm:$0xff]
        %v2034 = vld [vmem:[#allocation3 + $0x20] sm:$0xff]
        %v2035 = vld [vmem:[#allocation3 + $0x28] sm:$0x3]
        %v2036 = vld [vmem:[#allocation3 + $0x30] sm:$0xff]
        %v2037 = vld [vmem:[#allocation3 + $0x38] sm:$0xff]
        %v2038 = vld [vmem:[#allocation3 + $0x40] sm:$0x3]
        %v2039 = vld [vmem:[#allocation3 + $0x48] sm:$0xff]
        %v2040 = vld [vmem:[#allocation3 + $0x50] sm:$0xff]
        %v2041 = vld [vmem:[#allocation3 + $0x58] sm:$0x3]
        %v2042 = vld [vmem:[#allocation3 + $0x60] sm:$0xff]
        %v2043 = vld [vmem:[#allocation3 + $0x68] sm:$0xff]
        %v2044 = vld [vmem:[#allocation3 + $0x70] sm:$0x3]
        %v2045 = vld [vmem:[#allocation3 + $0x78] sm:$0xff]
        %v2046 = vld [vmem:[#allocation3 + $0x80] sm:$0xff]
        %v2047 = vld [vmem:[#allocation3 + $0x88] sm:$0x3]
        %v2048 = vld [vmem:[#allocation3 + $0x90] sm:$0xff]
        %v2049 = vld [vmem:[#allocation3 + $0x98] sm:$0xff]
        %v2050 = vld [vmem:[#allocation3 + $0xa0] sm:$0x3]
        %v2051 = vld [vmem:[#allocation3 + $0xa8] sm:$0xff]
        %v2052 = vld [vmem:[#allocation3 + $0xb0] sm:$0xff]
        %v2053 = vld [vmem:[#allocation3 + $0xb8] sm:$0x3]
        %v2054 = vld [vmem:[#allocation3 + $0xc0] sm:$0xff]
        %v2055 = vld [vmem:[#allocation3 + $0xc8] sm:$0xff]
        %v2056 = vld [vmem:[#allocation3 + $0xd0] sm:$0x3]
        %v2057 = vld [vmem:[#allocation3 + $0xd8] sm:$0xff]
        %v2058 = vld [vmem:[#allocation3 + $0xe0] sm:$0xff]
        %v2059 = vld [vmem:[#allocation3 + $0xe8] sm:$0x3]
        %v2060 = vld [vmem:[#allocation3 + $0xf0] sm:$0xff]
        %v2061 = vld [vmem:[#allocation3 + $0xf8] sm:$0xff]
        %v2062 = vld [vmem:[#allocation3 + $0x100] sm:$0x3]
        %v2063 = vld [vmem:[#allocation3 + $0x108] sm:$0xff]
        %v2064 = vld [vmem:[#allocation3 + $0x110] sm:$0xff]
        %v2065 = vld [vmem:[#allocation3 + $0x118] sm:$0x3]
        %v2066 = vld [vmem:[#allocation3 + $0x120] sm:$0xff]
        %v2067 = vld [vmem:[#allocation3 + $0x128] sm:$0xff]
        %v2068 = vld [vmem:[#allocation3 + $0x130] sm:$0x3]
        %v2069 = vld [vmem:[#allocation3 + $0x138] sm:$0xff]
        %v2070 = vld [vmem:[#allocation3 + $0x140] sm:$0xff]
        %v2071 = vld [vmem:[#allocation3 + $0x148] sm:$0x3]
        %v2072 = vld [vmem:[#allocation3 + $0x150] sm:$0xff]
        %v2073 = vld [vmem:[#allocation3 + $0x158] sm:$0xff]
        %v2074 = vld [vmem:[#allocation3 + $0x160] sm:$0x3]
        %v2075 = vld [vmem:[#allocation3 + $0x168] sm:$0xff]
        %v2076 = vld [vmem:[#allocation3 + $0x170] sm:$0xff]
        %v2077 = vld [vmem:[#allocation3 + $0x178] sm:$0x3]
        %v2078 = vld [vmem:[#allocation3 + $0x180] sm:$0xff]
        %v2079 = vld [vmem:[#allocation3 + $0x188] sm:$0xff]
        %v2080 = vld [vmem:[#allocation3 + $0x190] sm:$0x3]
        %v2081 = vld [vmem:[#allocation3 + $0x198] sm:$0xff]
        %v2082 = vld [vmem:[#allocation3 + $0x1a0] sm:$0xff]
        %v2083 = vld [vmem:[#allocation3 + $0x1a8] sm:$0x3]
        %v2084 = vpack.c.bf16 %v2031, %v2030
        %v2085 = vpack.c.bf16 %v2032, %v2032
        %v2086 = vpack.c.bf16 %v2034, %v2033
        %v2087 = vpack.c.bf16 %v2035, %v2035
        %v2088 = vpack.c.bf16 %v2037, %v2036
        %v2089 = vpack.c.bf16 %v2038, %v2038
        %v2090 = vpack.c.bf16 %v2040, %v2039
        %v2091 = vpack.c.bf16 %v2041, %v2041
        %v2092 = vpack.c.bf16 %v2043, %v2042
        %v2093 = vpack.c.bf16 %v2044, %v2044
        %v2094 = vpack.c.bf16 %v2046, %v2045
        %v2095 = vpack.c.bf16 %v2047, %v2047
        %v2096 = vpack.c.bf16 %v2049, %v2048
        %v2097 = vpack.c.bf16 %v2050, %v2050
        %v2098 = vpack.c.bf16 %v2052, %v2051
        %v2099 = vpack.c.bf16 %v2053, %v2053
        %v2100 = vpack.c.bf16 %v2055, %v2054
        %v2101 = vpack.c.bf16 %v2056, %v2056
        %v2102 = vpack.c.bf16 %v2058, %v2057
        %v2103 = vpack.c.bf16 %v2059, %v2059
        %v2104 = vpack.c.bf16 %v2061, %v2060
        %v2105 = vpack.c.bf16 %v2062, %v2062
        %v2106 = vpack.c.bf16 %v2064, %v2063
        %v2107 = vpack.c.bf16 %v2065, %v2065
        %v2108 = vpack.c.bf16 %v2067, %v2066
        %v2109 = vpack.c.bf16 %v2068, %v2068
        %v2110 = vpack.c.bf16 %v2070, %v2069
        %v2111 = vpack.c.bf16 %v2071, %v2071
        %v2112 = vpack.c.bf16 %v2073, %v2072
        %v2113 = vpack.c.bf16 %v2074, %v2074
        %v2114 = vpack.c.bf16 %v2076, %v2075
        %v2115 = vpack.c.bf16 %v2077, %v2077
        %v2116 = vpack.c.bf16 %v2079, %v2078
        %v2117 = vpack.c.bf16 %v2080, %v2080
        %v2118 = vpack.c.bf16 %v2082, %v2081
        %v2119 = vpack.c.bf16 %v2083, %v2083
        %v2120 = vld [vmem:[#allocation10] sm:$0xf]
        %v2121 = vld [vmem:[#allocation10 + $0x4] sm:$0xf]
        %v2122 = vld [vmem:[#allocation10 + $0x8] sm:$0xf]
        %v2123 = vld [vmem:[#allocation10 + $0xc] sm:$0xf]
        %v2124 = vld [vmem:[#allocation10 + $0x10] sm:$0xf]
        %v2125 = vld [vmem:[#allocation10 + $0x14] sm:$0xf]
        %v2126 = vld [vmem:[#allocation10 + $0x18] sm:$0xf]
        %v2127 = vld [vmem:[#allocation10 + $0x1c] sm:$0xf]
        %v2128 = vld [vmem:[#allocation10 + $0x20] sm:$0xf]
        %v2129 = vld [vmem:[#allocation10 + $0x24] sm:$0xf]
        %v2130 = vld [vmem:[#allocation10 + $0x28] sm:$0xf]
        %v2131 = vld [vmem:[#allocation10 + $0x2c] sm:$0xf]
        %v2132 = vld [vmem:[#allocation10 + $0x30] sm:$0xf]
        %v2133 = vld [vmem:[#allocation10 + $0x34] sm:$0xf]
        %v2134 = vld [vmem:[#allocation10 + $0x38] sm:$0xf]
        %v2135 = vld [vmem:[#allocation10 + $0x3c] sm:$0xf]
        %v2136 = vld [vmem:[#allocation10 + $0x40] sm:$0xf]
        %v2137 = vld [vmem:[#allocation10 + $0x44] sm:$0xf]
        %v2138 = vld [vmem:[#allocation10 + $0x48] sm:$0xf]
        %v2139 = vld [vmem:[#allocation10 + $0x4c] sm:$0xf]
        %v2140 = vld [vmem:[#allocation10 + $0x50] sm:$0xf]
        %v2141 = vld [vmem:[#allocation10 + $0x54] sm:$0xf]
        %v2142 = vld [vmem:[#allocation10 + $0x58] sm:$0xf]
        %v2143 = vld [vmem:[#allocation10 + $0x5c] sm:$0xf]
        %v2144 = vld [vmem:[#allocation10 + $0x60] sm:$0xf]
        %v2145 = vld [vmem:[#allocation10 + $0x64] sm:$0xf]
        %v2146 = vld [vmem:[#allocation10 + $0x68] sm:$0xf]
        %v2147 = vld [vmem:[#allocation10 + $0x6c] sm:$0xf]
        %v2148 = vld [vmem:[#allocation10 + $0x70] sm:$0xf]
        %v2149 = vld [vmem:[#allocation10 + $0x74] sm:$0xf]
        %v2150 = vld [vmem:[#allocation10 + $0x78] sm:$0xf]
        %v2151 = vld [vmem:[#allocation10 + $0x7c] sm:$0xf]
        %v2152 = vld [vmem:[#allocation10 + $0x80] sm:$0xf]
        %v2153 = vld [vmem:[#allocation10 + $0x84] sm:$0xf]
        %v2154 = vld [vmem:[#allocation10 + $0x88] sm:$0xf]
        %v2155 = vld [vmem:[#allocation10 + $0x8c] sm:$0xf]
        %v2156 = vld [vmem:[#allocation10 + $0x90] sm:$0xf]
        %v2157 = vld [vmem:[#allocation10 + $0x94] sm:$0xf]
        %v2158 = vld [vmem:[#allocation10 + $0x98] sm:$0xf]
        %v2159 = vld [vmem:[#allocation10 + $0x9c] sm:$0xf]
        %v2160 = vld [vmem:[#allocation10 + $0xa0] sm:$0xf]
        %v2161 = vld [vmem:[#allocation10 + $0xa4] sm:$0xf]
        %v2162 = vld [vmem:[#allocation10 + $0xa8] sm:$0xf]
        %v2163 = vld [vmem:[#allocation10 + $0xac] sm:$0xf]
        %v2164 = vld [vmem:[#allocation10 + $0xb0] sm:$0xf]
        %v2165 = vld [vmem:[#allocation10 + $0xb4] sm:$0xf]
        %v2166 = vld [vmem:[#allocation10 + $0xb8] sm:$0xf]
        %v2167 = vld [vmem:[#allocation10 + $0xbc] sm:$0xf]
        %v2168 = vld [vmem:[#allocation10 + $0xc0] sm:$0xf]
        %v2169 = vld [vmem:[#allocation10 + $0xc4] sm:$0xf]
        %v2170 = vld [vmem:[#allocation10 + $0xc8] sm:$0xf]
        %v2171 = vld [vmem:[#allocation10 + $0xcc] sm:$0xf]
        %v2172 = vld [vmem:[#allocation10 + $0xd0] sm:$0xf]
        %v2173 = vld [vmem:[#allocation10 + $0xd4] sm:$0xf]
        %v2174 = vld [vmem:[#allocation10 + $0xd8] sm:$0xf]
        %v2175 = vld [vmem:[#allocation10 + $0xdc] sm:$0xf]
        %v2176 = vld [vmem:[#allocation10 + $0xe0] sm:$0xf]
        %v2177 = vld [vmem:[#allocation10 + $0xe4] sm:$0xf]
        %v2178 = vld [vmem:[#allocation10 + $0xe8] sm:$0xf]
        %v2179 = vld [vmem:[#allocation10 + $0xec] sm:$0xf]
        %v2180 = vld [vmem:[#allocation10 + $0xf0] sm:$0xf]
        %v2181 = vld [vmem:[#allocation10 + $0xf4] sm:$0xf]
        %v2182 = vld [vmem:[#allocation10 + $0xf8] sm:$0xf]
        %v2183 = vld [vmem:[#allocation10 + $0xfc] sm:$0xf]
        %v2184 = vld [vmem:[#allocation10 + $0x100] sm:$0xf]
        %v2185 = vld [vmem:[#allocation10 + $0x104] sm:$0xf]
        %v2186 = vld [vmem:[#allocation10 + $0x108] sm:$0xf]
        %v2187 = vld [vmem:[#allocation10 + $0x10c] sm:$0xf]
        %v2188 = vld [vmem:[#allocation10 + $0x110] sm:$0xf]
        %v2189 = vld [vmem:[#allocation10 + $0x114] sm:$0xf]
        %v2190 = vld [vmem:[#allocation10 + $0x118] sm:$0xf]
        %v2191 = vld [vmem:[#allocation10 + $0x11c] sm:$0xf]
        %v2193 = vshrl.u32 %v2084, 16
        %v2195 = vshll.u32 %v2084, 16
        %v2197 = vrot.slane %v2195, 1
        %v2198 = vor.u32 %v2193, %v2197
        %v2200 = vshll.u32 %v2085, 16
        %v2202 = vrot.slane %v2200, 1
        %v2203 = vsel %vm581, %v2198, %v2202
        %v2205 = vshrl.u32 %v2086, 16
        %v2207 = vshll.u32 %v2086, 16
        %v2209 = vrot.slane %v2207, 1
        %v2210 = vor.u32 %v2205, %v2209
        %v2212 = vshll.u32 %v2087, 16
        %v2214 = vrot.slane %v2212, 1
        %v2215 = vsel %vm581, %v2210, %v2214
        %v2217 = vshrl.u32 %v2088, 16
        %v2219 = vshll.u32 %v2088, 16
        %v2221 = vrot.slane %v2219, 1
        %v2222 = vor.u32 %v2217, %v2221
        %v2224 = vshll.u32 %v2089, 16
        %v2226 = vrot.slane %v2224, 1
        %v2227 = vsel %vm581, %v2222, %v2226
        %v2229 = vshrl.u32 %v2090, 16
        %v2231 = vshll.u32 %v2090, 16
        %v2233 = vrot.slane %v2231, 1
        %v2234 = vor.u32 %v2229, %v2233
        %v2236 = vshll.u32 %v2091, 16
        %v2238 = vrot.slane %v2236, 1
        %v2239 = vsel %vm581, %v2234, %v2238
        %v2241 = vshrl.u32 %v2092, 16
        %v2243 = vshll.u32 %v2092, 16
        %v2245 = vrot.slane %v2243, 1
        %v2246 = vor.u32 %v2241, %v2245
        %v2248 = vshll.u32 %v2093, 16
        %v2250 = vrot.slane %v2248, 1
        %v2251 = vsel %vm581, %v2246, %v2250
        %v2253 = vshrl.u32 %v2094, 16
        %v2255 = vshll.u32 %v2094, 16
        %v2257 = vrot.slane %v2255, 1
        %v2258 = vor.u32 %v2253, %v2257
        %v2260 = vshll.u32 %v2095, 16
        %v2262 = vrot.slane %v2260, 1
        %v2263 = vsel %vm581, %v2258, %v2262
        %v2265 = vshrl.u32 %v2096, 16
        %v2267 = vshll.u32 %v2096, 16
        %v2269 = vrot.slane %v2267, 1
        %v2270 = vor.u32 %v2265, %v2269
        %v2272 = vshll.u32 %v2097, 16
        %v2274 = vrot.slane %v2272, 1
        %v2275 = vsel %vm581, %v2270, %v2274
        %v2277 = vshrl.u32 %v2098, 16
        %v2279 = vshll.u32 %v2098, 16
        %v2281 = vrot.slane %v2279, 1
        %v2282 = vor.u32 %v2277, %v2281
        %v2284 = vshll.u32 %v2099, 16
        %v2286 = vrot.slane %v2284, 1
        %v2287 = vsel %vm581, %v2282, %v2286
        %v2289 = vshrl.u32 %v2100, 16
        %v2291 = vshll.u32 %v2100, 16
        %v2293 = vrot.slane %v2291, 1
        %v2294 = vor.u32 %v2289, %v2293
        %v2296 = vshll.u32 %v2101, 16
        %v2298 = vrot.slane %v2296, 1
        %v2299 = vsel %vm581, %v2294, %v2298
        %v2301 = vshrl.u32 %v2102, 16
        %v2303 = vshll.u32 %v2102, 16
        %v2305 = vrot.slane %v2303, 1
        %v2306 = vor.u32 %v2301, %v2305
        %v2308 = vshll.u32 %v2103, 16
        %v2310 = vrot.slane %v2308, 1
        %v2311 = vsel %vm581, %v2306, %v2310
        %v2313 = vshrl.u32 %v2104, 16
        %v2315 = vshll.u32 %v2104, 16
        %v2317 = vrot.slane %v2315, 1
        %v2318 = vor.u32 %v2313, %v2317
        %v2320 = vshll.u32 %v2105, 16
        %v2322 = vrot.slane %v2320, 1
        %v2323 = vsel %vm581, %v2318, %v2322
        %v2325 = vshrl.u32 %v2106, 16
        %v2327 = vshll.u32 %v2106, 16
        %v2329 = vrot.slane %v2327, 1
        %v2330 = vor.u32 %v2325, %v2329
        %v2332 = vshll.u32 %v2107, 16
        %v2334 = vrot.slane %v2332, 1
        %v2335 = vsel %vm581, %v2330, %v2334
        %v2337 = vshrl.u32 %v2108, 16
        %v2339 = vshll.u32 %v2108, 16
        %v2341 = vrot.slane %v2339, 1
        %v2342 = vor.u32 %v2337, %v2341
        %v2344 = vshll.u32 %v2109, 16
        %v2346 = vrot.slane %v2344, 1
        %v2347 = vsel %vm581, %v2342, %v2346
        %v2349 = vshrl.u32 %v2110, 16
        %v2351 = vshll.u32 %v2110, 16
        %v2353 = vrot.slane %v2351, 1
        %v2354 = vor.u32 %v2349, %v2353
        %v2356 = vshll.u32 %v2111, 16
        %v2358 = vrot.slane %v2356, 1
        %v2359 = vsel %vm581, %v2354, %v2358
        %v2361 = vshrl.u32 %v2112, 16
        %v2363 = vshll.u32 %v2112, 16
        %v2365 = vrot.slane %v2363, 1
        %v2366 = vor.u32 %v2361, %v2365
        %v2368 = vshll.u32 %v2113, 16
        %v2370 = vrot.slane %v2368, 1
        %v2371 = vsel %vm581, %v2366, %v2370
        %v2373 = vshrl.u32 %v2114, 16
        %v2375 = vshll.u32 %v2114, 16
        %v2377 = vrot.slane %v2375, 1
        %v2378 = vor.u32 %v2373, %v2377
        %v2380 = vshll.u32 %v2115, 16
        %v2382 = vrot.slane %v2380, 1
        %v2383 = vsel %vm581, %v2378, %v2382
        %2384 = vrot.lane.b32.xlu0 %v2203, 64
        %v2385 = vpop.permute.xlu0 %2384
        %2386 = vrot.lane.b32.xlu0 %v2215, 64
        %v2387 = vpop.permute.xlu0 %2386
        %2388 = vrot.lane.b32.xlu0 %v2227, 64
        %v2389 = vpop.permute.xlu0 %2388
        %2390 = vrot.lane.b32.xlu0 %v2239, 64
        %v2391 = vpop.permute.xlu0 %2390
        %2392 = vrot.lane.b32.xlu0 %v2251, 64
        %v2393 = vpop.permute.xlu0 %2392
        %2394 = vrot.lane.b32.xlu0 %v2263, 64
        %v2395 = vpop.permute.xlu0 %2394
        %2396 = vrot.lane.b32.xlu0 %v2275, 64
        %v2397 = vpop.permute.xlu0 %2396
        %2398 = vrot.lane.b32.xlu0 %v2287, 64
        %v2399 = vpop.permute.xlu0 %2398
        %2400 = vrot.lane.b32.xlu0 %v2299, 64
        %v2401 = vpop.permute.xlu0 %2400
        %2402 = vrot.lane.b32.xlu0 %v2311, 64
        %v2403 = vpop.permute.xlu0 %2402
        %2404 = vrot.lane.b32.xlu0 %v2323, 64
        %v2405 = vpop.permute.xlu0 %2404
        %2406 = vrot.lane.b32.xlu0 %v2335, 64
        %v2407 = vpop.permute.xlu0 %2406
        %2408 = vrot.lane.b32.xlu0 %v2347, 64
        %v2409 = vpop.permute.xlu0 %2408
        %2410 = vrot.lane.b32.xlu0 %v2359, 64
        %v2411 = vpop.permute.xlu0 %2410
        %2412 = vrot.lane.b32.xlu0 %v2371, 64
        %v2413 = vpop.permute.xlu0 %2412
        %2414 = vrot.lane.b32.xlu0 %v2383, 64
        %v2415 = vpop.permute.xlu0 %2414
        %v2448 = vrot.slane %v2084, 1
        %v2449 = vrot.slane %v2085, 1
        %v2450 = vsel %vm838, %v2448, %v2449
        %v2451 = vrot.slane %v2086, 1
        %v2452 = vrot.slane %v2087, 1
        %v2453 = vsel %vm838, %v2451, %v2452
        %v2454 = vrot.slane %v2088, 1
        %v2455 = vrot.slane %v2089, 1
        %v2456 = vsel %vm838, %v2454, %v2455
        %v2457 = vrot.slane %v2090, 1
        %v2458 = vrot.slane %v2091, 1
        %v2459 = vsel %vm838, %v2457, %v2458
        %v2460 = vrot.slane %v2092, 1
        %v2461 = vrot.slane %v2093, 1
        %v2462 = vsel %vm838, %v2460, %v2461
        %v2463 = vrot.slane %v2094, 1
        %v2464 = vrot.slane %v2095, 1
        %v2465 = vsel %vm838, %v2463, %v2464
        %v2466 = vrot.slane %v2096, 1
        %v2467 = vrot.slane %v2097, 1
        %v2468 = vsel %vm838, %v2466, %v2467
        %v2469 = vrot.slane %v2098, 1
        %v2470 = vrot.slane %v2099, 1
        %v2471 = vsel %vm838, %v2469, %v2470
        %v2472 = vrot.slane %v2100, 1
        %v2473 = vrot.slane %v2101, 1
        %v2474 = vsel %vm838, %v2472, %v2473
        %v2475 = vrot.slane %v2102, 1
        %v2476 = vrot.slane %v2103, 1
        %v2477 = vsel %vm838, %v2475, %v2476
        %v2478 = vrot.slane %v2104, 1
        %v2479 = vrot.slane %v2105, 1
        %v2480 = vsel %vm838, %v2478, %v2479
        %v2481 = vrot.slane %v2106, 1
        %v2482 = vrot.slane %v2107, 1
        %v2483 = vsel %vm838, %v2481, %v2482
        %v2484 = vrot.slane %v2108, 1
        %v2485 = vrot.slane %v2109, 1
        %v2486 = vsel %vm838, %v2484, %v2485
        %v2487 = vrot.slane %v2110, 1
        %v2488 = vrot.slane %v2111, 1
        %v2489 = vsel %vm838, %v2487, %v2488
        %v2490 = vrot.slane %v2112, 1
        %v2491 = vrot.slane %v2113, 1
        %v2492 = vsel %vm838, %v2490, %v2491
        %v2493 = vrot.slane %v2114, 1
        %v2494 = vrot.slane %v2115, 1
        %v2495 = vsel %vm838, %v2493, %v2494
        %2497 = vrot.lane.b32.xlu0 %v2086, 64
        %v2498 = vpop.permute.xlu0 %2497
        %2499 = vrot.lane.b32.xlu0 %v2088, 64
        %v2500 = vpop.permute.xlu0 %2499
        %2501 = vrot.lane.b32.xlu0 %v2090, 64
        %v2502 = vpop.permute.xlu0 %2501
        %2503 = vrot.lane.b32.xlu0 %v2092, 64
        %v2504 = vpop.permute.xlu0 %2503
        %2505 = vrot.lane.b32.xlu0 %v2094, 64
        %v2506 = vpop.permute.xlu0 %2505
        %2507 = vrot.lane.b32.xlu0 %v2096, 64
        %v2508 = vpop.permute.xlu0 %2507
        %2509 = vrot.lane.b32.xlu0 %v2098, 64
        %v2510 = vpop.permute.xlu0 %2509
        %2511 = vrot.lane.b32.xlu0 %v2100, 64
        %v2512 = vpop.permute.xlu0 %2511
        %2513 = vrot.lane.b32.xlu0 %v2102, 64
        %v2514 = vpop.permute.xlu0 %2513
        %2515 = vrot.lane.b32.xlu0 %v2104, 64
        %v2516 = vpop.permute.xlu0 %2515
        %2517 = vrot.lane.b32.xlu0 %v2106, 64
        %v2518 = vpop.permute.xlu0 %2517
        %2519 = vrot.lane.b32.xlu0 %v2108, 64
        %v2520 = vpop.permute.xlu0 %2519
        %2521 = vrot.lane.b32.xlu0 %v2110, 64
        %v2522 = vpop.permute.xlu0 %2521
        %2523 = vrot.lane.b32.xlu0 %v2112, 64
        %v2524 = vpop.permute.xlu0 %2523
        %2525 = vrot.lane.b32.xlu0 %v2114, 64
        %v2526 = vpop.permute.xlu0 %2525
        %2527 = vrot.lane.b32.xlu0 %v2116, 64
        %v2528 = vpop.permute.xlu0 %2527
        %v2530 = vshrl.u32 %v2116, 16
        %v2532 = vshll.u32 %v2116, 16
        %v2534 = vrot.slane %v2532, 1
        %v2535 = vor.u32 %v2530, %v2534
        %v2537 = vshll.u32 %v2117, 16
        %v2539 = vrot.slane %v2537, 1
        %v2540 = vsel %vm581, %v2535, %v2539
        %v2542 = vrot.slane %v2116, 1
        %v2543 = vrot.slane %v2117, 1
        %v2544 = vsel %vm838, %v2542, %v2543
        %2545 = vrot.lane.b32.xlu0 %v2453, 64
        %v2546 = vpop.permute.xlu0 %2545
        %2547 = vrot.lane.b32.xlu0 %v2456, 64
        %v2548 = vpop.permute.xlu0 %2547
        %2549 = vrot.lane.b32.xlu0 %v2459, 64
        %v2550 = vpop.permute.xlu0 %2549
        %2551 = vrot.lane.b32.xlu0 %v2462, 64
        %v2552 = vpop.permute.xlu0 %2551
        %2553 = vrot.lane.b32.xlu0 %v2465, 64
        %v2554 = vpop.permute.xlu0 %2553
        %2555 = vrot.lane.b32.xlu0 %v2468, 64
        %v2556 = vpop.permute.xlu0 %2555
        %2557 = vrot.lane.b32.xlu0 %v2471, 64
        %v2558 = vpop.permute.xlu0 %2557
        %2559 = vrot.lane.b32.xlu0 %v2474, 64
        %v2560 = vpop.permute.xlu0 %2559
        %2561 = vrot.lane.b32.xlu0 %v2477, 64
        %v2562 = vpop.permute.xlu0 %2561
        %2563 = vrot.lane.b32.xlu0 %v2480, 64
        %v2564 = vpop.permute.xlu0 %2563
        %2565 = vrot.lane.b32.xlu0 %v2483, 64
        %v2566 = vpop.permute.xlu0 %2565
        %2567 = vrot.lane.b32.xlu0 %v2486, 64
        %v2568 = vpop.permute.xlu0 %2567
        %2569 = vrot.lane.b32.xlu0 %v2489, 64
        %v2570 = vpop.permute.xlu0 %2569
        %2571 = vrot.lane.b32.xlu0 %v2492, 64
        %v2572 = vpop.permute.xlu0 %2571
        %2573 = vrot.lane.b32.xlu0 %v2495, 64
        %v2574 = vpop.permute.xlu0 %2573
        %2575 = vrot.lane.b32.xlu0 %v2544, 64
        %v2576 = vpop.permute.xlu0 %2575
        %v2578 = vshrl.u32 %v2118, 16
        %v2580 = vshll.u32 %v2118, 16
        %v2582 = vrot.slane %v2580, 1
        %v2583 = vor.u32 %v2578, %v2582
        %v2585 = vshll.u32 %v2119, 16
        %v2587 = vrot.slane %v2585, 1
        %v2588 = vsel %vm581, %v2583, %v2587
        %2589 = vrot.lane.b32.xlu0 %v2540, 64
        %v2590 = vpop.permute.xlu0 %2589
        %2591 = vrot.lane.b32.xlu0 %v2588, 64
        %v2592 = vpop.permute.xlu0 %2591
        %v2595 = vrot.slane %v2118, 1
        %v2596 = vrot.slane %v2119, 1
        %v2597 = vsel %vm838, %v2595, %v2596
        %v2599 = vsel %vm330, %v2084, %v2385
        %v2602 = vsel %vm330, %v2086, %v2387
        %v2605 = vsel %vm330, %v2088, %v2389
        %v2608 = vsel %vm330, %v2090, %v2391
        %v2611 = vsel %vm330, %v2092, %v2393
        %v2614 = vsel %vm330, %v2094, %v2395
        %v2617 = vsel %vm330, %v2096, %v2397
        %v2620 = vsel %vm330, %v2098, %v2399
        %v2623 = vsel %vm330, %v2100, %v2401
        %v2626 = vsel %vm330, %v2102, %v2403
        %v2629 = vsel %vm330, %v2104, %v2405
        %v2632 = vsel %vm330, %v2106, %v2407
        %v2635 = vsel %vm330, %v2108, %v2409
        %v2638 = vsel %vm330, %v2110, %v2411
        %v2641 = vsel %vm330, %v2112, %v2413
        %v2644 = vsel %vm330, %v2114, %v2415
        %v2648 = vsel %vm330, %v2450, %v2498
        %v2652 = vsel %vm330, %v2453, %v2500
        %v2656 = vsel %vm330, %v2456, %v2502
        %v2660 = vsel %vm330, %v2459, %v2504
        %v2664 = vsel %vm330, %v2462, %v2506
        %v2668 = vsel %vm330, %v2465, %v2508
        %v2672 = vsel %vm330, %v2468, %v2510
        %v2676 = vsel %vm330, %v2471, %v2512
        %v2680 = vsel %vm330, %v2474, %v2514
        %v2684 = vsel %vm330, %v2477, %v2516
        %v2688 = vsel %vm330, %v2480, %v2518
        %v2692 = vsel %vm330, %v2483, %v2520
        %v2696 = vsel %vm330, %v2486, %v2522
        %v2700 = vsel %vm330, %v2489, %v2524
        %v2704 = vsel %vm330, %v2492, %v2526
        %v2708 = vsel %vm330, %v2495, %v2528
        %v2712 = vsel %vm330, %v2215, %v2546
        %v2716 = vsel %vm330, %v2227, %v2548
        %v2720 = vsel %vm330, %v2239, %v2550
        %v2724 = vsel %vm330, %v2251, %v2552
        %v2728 = vsel %vm330, %v2263, %v2554
        %v2732 = vsel %vm330, %v2275, %v2556
        %v2736 = vsel %vm330, %v2287, %v2558
        %v2740 = vsel %vm330, %v2299, %v2560
        %v2744 = vsel %vm330, %v2311, %v2562
        %v2748 = vsel %vm330, %v2323, %v2564
        %v2752 = vsel %vm330, %v2335, %v2566
        %v2756 = vsel %vm330, %v2347, %v2568
        %v2760 = vsel %vm330, %v2359, %v2570
        %v2764 = vsel %vm330, %v2371, %v2572
        %v2768 = vsel %vm330, %v2383, %v2574
        %v2772 = vsel %vm330, %v2540, %v2576
        %v2775 = vsel %vm330, %v2116, %v2590
        %v2778 = vsel %vm330, %v2118, %v2592
        %v2780 = vld [vmem:[#allocation12] sm:$0x1]
        %v2782 = vlaneseq
        %v2783 = vshrl.u32 %v2782, 7
        %v2784 = vsub.s32 0, %v2783
        %v2785 = vrot.slane %v2780, %v2784
        %v2859 = vunpack.c.l.b16 %v2120
        %v2860 = vunpack.c.l.b16 %v2121
        %v2861 = vunpack.c.l.b16 %v2122
        %v2862 = vunpack.c.l.b16 %v2123
        %v2863 = vunpack.c.l.b16 %v2124
        %v2864 = vunpack.c.l.b16 %v2125
        %v2865 = vunpack.c.l.b16 %v2126
        %v2866 = vunpack.c.l.b16 %v2127
        %v2867 = vunpack.c.l.b16 %v2128
        %v2868 = vunpack.c.l.b16 %v2129
        %v2869 = vunpack.c.l.b16 %v2130
        %v2870 = vunpack.c.l.b16 %v2131
        %v2871 = vunpack.c.l.b16 %v2132
        %v2872 = vunpack.c.l.b16 %v2133
        %v2873 = vunpack.c.l.b16 %v2134
        %v2874 = vunpack.c.l.b16 %v2135
        %v2875 = vunpack.c.l.b16 %v2136
        %v2876 = vunpack.c.l.b16 %v2137
        %v2877 = vunpack.c.l.b16 %v2138
        %v2878 = vunpack.c.l.b16 %v2139
        %v2879 = vunpack.c.l.b16 %v2140
        %v2880 = vunpack.c.l.b16 %v2141
        %v2881 = vunpack.c.l.b16 %v2142
        %v2882 = vunpack.c.l.b16 %v2143
        %v2883 = vunpack.c.l.b16 %v2144
        %v2884 = vunpack.c.l.b16 %v2145
        %v2885 = vunpack.c.l.b16 %v2146
        %v2886 = vunpack.c.l.b16 %v2147
        %v2887 = vunpack.c.l.b16 %v2148
        %v2888 = vunpack.c.l.b16 %v2149
        %v2889 = vunpack.c.l.b16 %v2150
        %v2890 = vunpack.c.l.b16 %v2151
        %v2891 = vunpack.c.l.b16 %v2152
        %v2892 = vunpack.c.l.b16 %v2153
        %v2893 = vunpack.c.l.b16 %v2154
        %v2894 = vunpack.c.l.b16 %v2155
        %v2895 = vunpack.c.l.b16 %v2156
        %v2896 = vunpack.c.l.b16 %v2157
        %v2897 = vunpack.c.l.b16 %v2158
        %v2898 = vunpack.c.l.b16 %v2159
        %v2899 = vunpack.c.l.b16 %v2160
        %v2900 = vunpack.c.l.b16 %v2161
        %v2901 = vunpack.c.l.b16 %v2162
        %v2902 = vunpack.c.l.b16 %v2163
        %v2903 = vunpack.c.l.b16 %v2164
        %v2904 = vunpack.c.l.b16 %v2165
        %v2905 = vunpack.c.l.b16 %v2166
        %v2906 = vunpack.c.l.b16 %v2167
        %v2907 = vunpack.c.l.b16 %v2168
        %v2908 = vunpack.c.l.b16 %v2169
        %v2909 = vunpack.c.l.b16 %v2170
        %v2910 = vunpack.c.l.b16 %v2171
        %v2911 = vunpack.c.l.b16 %v2172
        %v2912 = vunpack.c.l.b16 %v2173
        %v2913 = vunpack.c.l.b16 %v2174
        %v2914 = vunpack.c.l.b16 %v2175
        %v2915 = vunpack.c.l.b16 %v2176
        %v2916 = vunpack.c.l.b16 %v2177
        %v2917 = vunpack.c.l.b16 %v2178
        %v2918 = vunpack.c.l.b16 %v2179
        %v2919 = vunpack.c.l.b16 %v2180
        %v2920 = vunpack.c.l.b16 %v2181
        %v2921 = vunpack.c.l.b16 %v2182
        %v2922 = vunpack.c.l.b16 %v2183
        %v2923 = vunpack.c.l.b16 %v2184
        %v2924 = vunpack.c.l.b16 %v2185
        %v2925 = vunpack.c.l.b16 %v2186
        %v2926 = vunpack.c.l.b16 %v2187
        %v2927 = vunpack.c.l.b16 %v2188
        %v2928 = vunpack.c.l.b16 %v2189
        %v2929 = vunpack.c.l.b16 %v2190
        %v2930 = vunpack.c.l.b16 %v2191
        %v2931 = vpack.c.b16 %v2860, %v2859
        %v2932 = vpack.c.b16 %v2862, %v2861
        %v2933 = vpack.c.b16 %v2864, %v2863
        %v2934 = vpack.c.b16 %v2866, %v2865
        %v2935 = vpack.c.b16 %v2868, %v2867
        %v2936 = vpack.c.b16 %v2870, %v2869
        %v2937 = vpack.c.b16 %v2872, %v2871
        %v2938 = vpack.c.b16 %v2874, %v2873
        %v2939 = vpack.c.b16 %v2876, %v2875
        %v2940 = vpack.c.b16 %v2878, %v2877
        %v2941 = vpack.c.b16 %v2880, %v2879
        %v2942 = vpack.c.b16 %v2882, %v2881
        %v2943 = vpack.c.b16 %v2884, %v2883
        %v2944 = vpack.c.b16 %v2886, %v2885
        %v2945 = vpack.c.b16 %v2888, %v2887
        %v2946 = vpack.c.b16 %v2890, %v2889
        %v2947 = vpack.c.b16 %v2892, %v2891
        %v2948 = vpack.c.b16 %v2894, %v2893
        %v2949 = vpack.c.b16 %v2896, %v2895
        %v2950 = vpack.c.b16 %v2898, %v2897
        %v2951 = vpack.c.b16 %v2900, %v2899
        %v2952 = vpack.c.b16 %v2902, %v2901
        %v2953 = vpack.c.b16 %v2904, %v2903
        %v2954 = vpack.c.b16 %v2906, %v2905
        %v2955 = vpack.c.b16 %v2908, %v2907
        %v2956 = vpack.c.b16 %v2910, %v2909
        %v2957 = vpack.c.b16 %v2912, %v2911
        %v2958 = vpack.c.b16 %v2914, %v2913
        %v2959 = vpack.c.b16 %v2916, %v2915
        %v2960 = vpack.c.b16 %v2918, %v2917
        %v2961 = vpack.c.b16 %v2920, %v2919
        %v2962 = vpack.c.b16 %v2922, %v2921
        %v2963 = vpack.c.b16 %v2924, %v2923
        %v2964 = vpack.c.b16 %v2926, %v2925
        %v2965 = vpack.c.b16 %v2928, %v2927
        %v2966 = vpack.c.b16 %v2930, %v2929
        %v3003 = vsel %vm330, %v2456, 0
        %v3005 = vsel %vm330, %v2459, 0
        %v3007 = vsel %vm330, %v2462, 0
        %v3009 = vsel %vm330, %v2465, 0
        %v3011 = vsel %vm330, %v2468, 0
        %v3013 = vsel %vm330, %v2471, 0
        %v3015 = vsel %vm330, %v2474, 0
        %v3017 = vsel %vm330, %v2477, 0
        %v3019 = vsel %vm330, %v2480, 0
        %v3021 = vsel %vm330, %v2483, 0
        %v3023 = vsel %vm330, %v2486, 0
        %v3025 = vsel %vm330, %v2489, 0
        %v3027 = vsel %vm330, %v2492, 0
        %v3029 = vsel %vm330, %v2495, 0
        %v3032 = vsel %vm330, %v2544, 0
        %v3035 = vsel %vm330, %v2597, 0
        %3037 = vmatprep.subr.bf16.mxu0 0
        %3038 = vmatpush1.bf16.msra.mxu0 %v2931
        %3039 = vmatprep.subr.bf16.mxu0 0
        %3040 = vmatpush1.bf16.msra.mxu0 %v2932
        %3041 = vmatprep.subr.bf16.mxu0 0
        %3042 = vmatpush1.bf16.msra.mxu0 %v2933
        %3043 = vmatprep.subr.bf16.mxu0 0
        %3044 = vmatpush1.bf16.msra.mxu0 %v2934
        %3045 = vmatprep.subr.bf16.mxu0 0
        %3046 = vmatpush1.bf16.msra.mxu0 %v2935
        %3047 = vmatprep.subr.bf16.mxu0 0
        %3048 = vmatpush1.bf16.msra.mxu0 %v2936
        %3049 = vmatprep.subr.bf16.mxu0 0
        %3050 = vmatpush1.bf16.msra.mxu0 %v2937
        %3051 = vmatprep.subr.bf16.mxu0 0
        %3052 = vmatpush1.bf16.msra.mxu0 %v2938
        %3053 = vmatprep.subr.bf16.mxu0 0
        %3054 = vmatpush1.bf16.msra.mxu0 %v2939
        %3055 = vmatprep.subr.bf16.mxu0 0
        %3056 = vmatpush1.bf16.msra.mxu0 %v2940
        %3057 = vmatprep.subr.bf16.mxu0 0
        %3058 = vmatpush1.bf16.msra.mxu0 %v2941
        %3059 = vmatprep.subr.bf16.mxu0 0
        %3060 = vmatpush1.bf16.msra.mxu0 %v2942
        %3061 = vmatprep.subr.bf16.mxu0 0
        %3062 = vmatpush1.bf16.msra.mxu0 %v2943
        %3063 = vmatprep.subr.bf16.mxu0 0
        %3064 = vmatpush1.bf16.msra.mxu0 %v2944
        %3065 = vmatprep.subr.bf16.mxu0 0
        %3066 = vmatpush1.bf16.msra.mxu0 %v2945
        %3067 = vmatprep.subr.bf16.mxu0 0
        %3068 = vmatpush1.bf16.msra.mxu0 %v2946
        %3069 = vmatprep.mubr.bf16.mxu0 %v2648
        %3070 = vmatmul.mubr.bf16.gmra.mrb[0].mxu0 %v2599
        %v3071 = vpop.f32.mrb[0].mxu0
        %v3072 = vadd.f32 %v2785, %v3071
        %v3073 = vpop.f32.mrb[0].mxu0
        %v3074 = vpop.f32.mrb[0].mxu0
        %v3075 = vadd.f32 %v2785, %v3074
        %v3076 = vpop.f32.mrb[0].mxu0
        %3077 = vmatprep.mubr.bf16.mxu0 %v2652
        %3078 = vmatmul.mubr.bf16.gmra.mrb[0].mxu0 %v2602
        %v3079 = vpop.f32.mrb[0].mxu0
        %v3080 = vadd.f32 %v2785, %v3079
        %v3081 = vpop.f32.mrb[0].mxu0
        %v3082 = vpop.f32.mrb[0].mxu0
        %v3083 = vadd.f32 %v2785, %v3082
        %v3084 = vpop.f32.mrb[0].mxu0
        %3085 = vmatprep.mubr.bf16.mxu0 %v2656
        %3086 = vmatmul.mubr.bf16.gmra.mrb[0].mxu0 %v2605
        %v3087 = vpop.f32.mrb[0].mxu0
        %v3088 = vadd.f32 %v2785, %v3087
        %v3089 = vpop.f32.mrb[0].mxu0
        %v3090 = vpop.f32.mrb[0].mxu0
        %v3091 = vadd.f32 %v2785, %v3090
        %v3092 = vpop.f32.mrb[0].mxu0
        %3093 = vmatprep.mubr.bf16.mxu0 %v2660
        %3094 = vmatmul.mubr.bf16.gmra.mrb[0].mxu0 %v2608
        %v3095 = vpop.f32.mrb[0].mxu0
        %v3096 = vadd.f32 %v2785, %v3095
        %v3097 = vpop.f32.mrb[0].mxu0
        %v3098 = vpop.f32.mrb[0].mxu0
        %v3099 = vadd.f32 %v2785, %v3098
        %v3100 = vpop.f32.mrb[0].mxu0
        %3101 = vmatprep.mubr.bf16.mxu0 %v2664
        %3102 = vmatmul.mubr.bf16.gmra.mrb[0].mxu0 %v2611
        %v3103 = vpop.f32.mrb[0].mxu0
        %v3104 = vadd.f32 %v2785, %v3103
        %v3105 = vpop.f32.mrb[0].mxu0
        %v3106 = vpop.f32.mrb[0].mxu0
        %v3107 = vadd.f32 %v2785, %v3106
        %v3108 = vpop.f32.mrb[0].mxu0
        %3109 = vmatprep.mubr.bf16.mxu0 %v2668
        %3110 = vmatmul.mubr.bf16.gmra.mrb[0].mxu0 %v2614
        %v3111 = vpop.f32.mrb[0].mxu0
        %v3112 = vadd.f32 %v2785, %v3111
        %v3113 = vpop.f32.mrb[0].mxu0
        %v3114 = vpop.f32.mrb[0].mxu0
        %v3115 = vadd.f32 %v2785, %v3114
        %v3116 = vpop.f32.mrb[0].mxu0
        %3117 = vmatprep.mubr.bf16.mxu0 %v2672
        %3118 = vmatmul.mubr.bf16.gmra.mrb[0].mxu0 %v2617
        %v3119 = vpop.f32.mrb[0].mxu0
        %v3120 = vadd.f32 %v2785, %v3119
        %v3121 = vpop.f32.mrb[0].mxu0
        %v3122 = vpop.f32.mrb[0].mxu0
        %v3123 = vadd.f32 %v2785, %v3122
        %v3124 = vpop.f32.mrb[0].mxu0
        %3125 = vmatprep.mubr.bf16.mxu0 %v2676
        %3126 = vmatmul.mubr.bf16.gmra.mrb[0].mxu0 %v2620
        %v3127 = vpop.f32.mrb[0].mxu0
        %v3128 = vadd.f32 %v2785, %v3127
        %v3129 = vpop.f32.mrb[0].mxu0
        %v3130 = vpop.f32.mrb[0].mxu0
        %v3131 = vadd.f32 %v2785, %v3130
        %v3132 = vpop.f32.mrb[0].mxu0
        %3133 = vmatprep.mubr.bf16.mxu0 %v2680
        %3134 = vmatmul.mubr.bf16.gmra.mrb[0].mxu0 %v2623
        %v3135 = vpop.f32.mrb[0].mxu0
        %v3136 = vadd.f32 %v2785, %v3135
        %v3137 = vpop.f32.mrb[0].mxu0
        %v3138 = vpop.f32.mrb[0].mxu0
        %v3139 = vadd.f32 %v2785, %v3138
        %v3140 = vpop.f32.mrb[0].mxu0
        %3141 = vmatprep.mubr.bf16.mxu0 %v2684
        %3142 = vmatmul.mubr.bf16.gmra.mrb[0].mxu0 %v2626
        %v3143 = vpop.f32.mrb[0].mxu0
        %v3144 = vadd.f32 %v2785, %v3143
        %v3145 = vpop.f32.mrb[0].mxu0
        %v3146 = vpop.f32.mrb[0].mxu0
        %v3147 = vadd.f32 %v2785, %v3146
        %v3148 = vpop.f32.mrb[0].mxu0
        %3149 = vmatprep.mubr.bf16.mxu0 %v2688
        %3150 = vmatmul.mubr.bf16.gmra.mrb[0].mxu0 %v2629
        %v3151 = vpop.f32.mrb[0].mxu0
        %v3152 = vadd.f32 %v2785, %v3151
        %v3153 = vpop.f32.mrb[0].mxu0
        %v3154 = vpop.f32.mrb[0].mxu0
        %v3155 = vadd.f32 %v2785, %v3154
        %v3156 = vpop.f32.mrb[0].mxu0
        %3157 = vmatprep.mubr.bf16.mxu0 %v2692
        %3158 = vmatmul.mubr.bf16.gmra.mrb[0].mxu0 %v2632
        %v3159 = vpop.f32.mrb[0].mxu0
        %v3160 = vadd.f32 %v2785, %v3159
        %v3161 = vpop.f32.mrb[0].mxu0
        %v3162 = vpop.f32.mrb[0].mxu0
        %v3163 = vadd.f32 %v2785, %v3162
        %v3164 = vpop.f32.mrb[0].mxu0
        %3165 = vmatprep.mubr.bf16.mxu0 %v2696
        %3166 = vmatmul.mubr.bf16.gmra.mrb[0].mxu0 %v2635
        %v3167 = vpop.f32.mrb[0].mxu0
        %v3168 = vadd.f32 %v2785, %v3167
        %v3169 = vpop.f32.mrb[0].mxu0
        %v3170 = vpop.f32.mrb[0].mxu0
        %v3171 = vadd.f32 %v2785, %v3170
        %v3172 = vpop.f32.mrb[0].mxu0
        %3173 = vmatprep.mubr.bf16.mxu0 %v2700
        %3174 = vmatmul.mubr.bf16.gmra.mrb[0].mxu0 %v2638
        %v3175 = vpop.f32.mrb[0].mxu0
        %v3176 = vadd.f32 %v2785, %v3175
        %v3177 = vpop.f32.mrb[0].mxu0
        %v3178 = vpop.f32.mrb[0].mxu0
        %v3179 = vadd.f32 %v2785, %v3178
        %v3180 = vpop.f32.mrb[0].mxu0
        %3181 = vmatprep.mubr.bf16.mxu0 %v2704
        %3182 = vmatmul.mubr.bf16.gmra.mrb[0].mxu0 %v2641
        %v3183 = vpop.f32.mrb[0].mxu0
        %v3184 = vadd.f32 %v2785, %v3183
        %v3185 = vpop.f32.mrb[0].mxu0
        %v3186 = vpop.f32.mrb[0].mxu0
        %v3187 = vadd.f32 %v2785, %v3186
        %v3188 = vpop.f32.mrb[0].mxu0
        %3189 = vmatprep.mubr.bf16.mxu0 %v2708
        %3190 = vmatmul.mubr.bf16.gmra.mrb[0].mxu0 %v2644
        %v3191 = vpop.f32.mrb[0].mxu0
        %v3192 = vadd.f32 %v2785, %v3191
        %v3193 = vpop.f32.mrb[0].mxu0
        %v3194 = vpop.f32.mrb[0].mxu0
        %v3195 = vadd.f32 %v2785, %v3194
        %v3196 = vpop.f32.mrb[0].mxu0
        %3197 = vdwg.mxu0
        %3198 = vmatprep.subr.bf16.mxu0 0
        %3199 = vmatpush1.bf16.msra.mxu0 %v2947
        %3200 = vmatprep.subr.bf16.mxu0 0
        %3201 = vmatpush1.bf16.msra.mxu0 %v2948
        %3202 = vmatprep.subr.bf16.mxu0 0
        %3203 = vmatpush1.bf16.msra.mxu0 %v2949
        %3204 = vmatprep.subr.bf16.mxu0 0
        %3205 = vmatpush1.bf16.msra.mxu0 %v2950
        %3206 = vmatprep.subr.bf16.mxu0 0
        %3207 = vmatpush1.bf16.msra.mxu0 %v2951
        %3208 = vmatprep.subr.bf16.mxu0 0
        %3209 = vmatpush1.bf16.msra.mxu0 %v2952
        %3210 = vmatprep.subr.bf16.mxu0 0
        %3211 = vmatpush1.bf16.msra.mxu0 %v2953
        %3212 = vmatprep.subr.bf16.mxu0 0
        %3213 = vmatpush1.bf16.msra.mxu0 %v2954
        %3214 = vmatprep.subr.bf16.mxu0 0
        %3215 = vmatpush1.bf16.msra.mxu0 %v2955
        %3216 = vmatprep.subr.bf16.mxu0 0
        %3217 = vmatpush1.bf16.msra.mxu0 %v2956
        %3218 = vmatprep.subr.bf16.mxu0 0
        %3219 = vmatpush1.bf16.msra.mxu0 %v2957
        %3220 = vmatprep.subr.bf16.mxu0 0
        %3221 = vmatpush1.bf16.msra.mxu0 %v2958
        %3222 = vmatprep.subr.bf16.mxu0 0
        %3223 = vmatpush1.bf16.msra.mxu0 %v2959
        %3224 = vmatprep.subr.bf16.mxu0 0
        %3225 = vmatpush1.bf16.msra.mxu0 %v2960
        %3226 = vmatprep.subr.bf16.mxu0 0
        %3227 = vmatpush1.bf16.msra.mxu0 %v2961
        %3228 = vmatprep.subr.bf16.mxu0 0
        %3229 = vmatpush1.bf16.msra.mxu0 %v2962
        %3230 = vmatprep.mubr.bf16.mxu0 %v2605
        %3231 = vmatmul.mubr.bf16.gmra.mrb[0].mxu0 %v2712
        %v3232 = vpop.f32.mrb[0].mxu0
        %v3233 = vadd.f32 %v3072, %v3232
        %v3234 = vpop.f32.mrb[0].mxu0
        %v3235 = vpop.f32.mrb[0].mxu0
        %v3236 = vadd.f32 %v3075, %v3235
        %v3237 = vpop.f32.mrb[0].mxu0
        %3238 = vmatprep.mubr.bf16.mxu0 %v2608
        %3239 = vmatmul.mubr.bf16.gmra.mrb[0].mxu0 %v2716
        %v3240 = vpop.f32.mrb[0].mxu0
        %v3241 = vadd.f32 %v3080, %v3240
        %v3242 = vpop.f32.mrb[0].mxu0
        %v3243 = vpop.f32.mrb[0].mxu0
        %v3244 = vadd.f32 %v3083, %v3243
        %v3245 = vpop.f32.mrb[0].mxu0
        %3246 = vmatprep.mubr.bf16.mxu0 %v2611
        %3247 = vmatmul.mubr.bf16.gmra.mrb[0].mxu0 %v2720
        %v3248 = vpop.f32.mrb[0].mxu0
        %v3249 = vadd.f32 %v3088, %v3248
        %v3250 = vpop.f32.mrb[0].mxu0
        %v3251 = vpop.f32.mrb[0].mxu0
        %v3252 = vadd.f32 %v3091, %v3251
        %v3253 = vpop.f32.mrb[0].mxu0
        %3254 = vmatprep.mubr.bf16.mxu0 %v2614
        %3255 = vmatmul.mubr.bf16.gmra.mrb[0].mxu0 %v2724
        %v3256 = vpop.f32.mrb[0].mxu0
        %v3257 = vadd.f32 %v3096, %v3256
        %v3258 = vpop.f32.mrb[0].mxu0
        %v3259 = vpop.f32.mrb[0].mxu0
        %v3260 = vadd.f32 %v3099, %v3259
        %v3261 = vpop.f32.mrb[0].mxu0
        %3262 = vmatprep.mubr.bf16.mxu0 %v2617
        %3263 = vmatmul.mubr.bf16.gmra.mrb[0].mxu0 %v2728
        %v3264 = vpop.f32.mrb[0].mxu0
        %v3265 = vadd.f32 %v3104, %v3264
        %v3266 = vpop.f32.mrb[0].mxu0
        %v3267 = vpop.f32.mrb[0].mxu0
        %v3268 = vadd.f32 %v3107, %v3267
        %v3269 = vpop.f32.mrb[0].mxu0
        %3270 = vmatprep.mubr.bf16.mxu0 %v2620
        %3271 = vmatmul.mubr.bf16.gmra.mrb[0].mxu0 %v2732
        %v3272 = vpop.f32.mrb[0].mxu0
        %v3273 = vadd.f32 %v3112, %v3272
        %v3274 = vpop.f32.mrb[0].mxu0
        %v3275 = vpop.f32.mrb[0].mxu0
        %v3276 = vadd.f32 %v3115, %v3275
        %v3277 = vpop.f32.mrb[0].mxu0
        %3278 = vmatprep.mubr.bf16.mxu0 %v2623
        %3279 = vmatmul.mubr.bf16.gmra.mrb[0].mxu0 %v2736
        %v3280 = vpop.f32.mrb[0].mxu0
        %v3281 = vadd.f32 %v3120, %v3280
        %v3282 = vpop.f32.mrb[0].mxu0
        %v3283 = vpop.f32.mrb[0].mxu0
        %v3284 = vadd.f32 %v3123, %v3283
        %v3285 = vpop.f32.mrb[0].mxu0
        %3286 = vmatprep.mubr.bf16.mxu0 %v2626
        %3287 = vmatmul.mubr.bf16.gmra.mrb[0].mxu0 %v2740
        %v3288 = vpop.f32.mrb[0].mxu0
        %v3289 = vadd.f32 %v3128, %v3288
        %v3290 = vpop.f32.mrb[0].mxu0
        %v3291 = vpop.f32.mrb[0].mxu0
        %v3292 = vadd.f32 %v3131, %v3291
        %v3293 = vpop.f32.mrb[0].mxu0
        %3294 = vmatprep.mubr.bf16.mxu0 %v2629
        %3295 = vmatmul.mubr.bf16.gmra.mrb[0].mxu0 %v2744
        %v3296 = vpop.f32.mrb[0].mxu0
        %v3297 = vadd.f32 %v3136, %v3296
        %v3298 = vpop.f32.mrb[0].mxu0
        %v3299 = vpop.f32.mrb[0].mxu0
        %v3300 = vadd.f32 %v3139, %v3299
        %v3301 = vpop.f32.mrb[0].mxu0
        %3302 = vmatprep.mubr.bf16.mxu0 %v2632
        %3303 = vmatmul.mubr.bf16.gmra.mrb[0].mxu0 %v2748
        %v3304 = vpop.f32.mrb[0].mxu0
        %v3305 = vadd.f32 %v3144, %v3304
        %v3306 = vpop.f32.mrb[0].mxu0
        %v3307 = vpop.f32.mrb[0].mxu0
        %v3308 = vadd.f32 %v3147, %v3307
        %v3309 = vpop.f32.mrb[0].mxu0
        %3310 = vmatprep.mubr.bf16.mxu0 %v2635
        %3311 = vmatmul.mubr.bf16.gmra.mrb[0].mxu0 %v2752
        %v3312 = vpop.f32.mrb[0].mxu0
        %v3313 = vadd.f32 %v3152, %v3312
        %v3314 = vpop.f32.mrb[0].mxu0
        %v3315 = vpop.f32.mrb[0].mxu0
        %v3316 = vadd.f32 %v3155, %v3315
        %v3317 = vpop.f32.mrb[0].mxu0
        %3318 = vmatprep.mubr.bf16.mxu0 %v2638
        %3319 = vmatmul.mubr.bf16.gmra.mrb[0].mxu0 %v2756
        %v3320 = vpop.f32.mrb[0].mxu0
        %v3321 = vadd.f32 %v3160, %v3320
        %v3322 = vpop.f32.mrb[0].mxu0
        %v3323 = vpop.f32.mrb[0].mxu0
        %v3324 = vadd.f32 %v3163, %v3323
        %v3325 = vpop.f32.mrb[0].mxu0
        %3326 = vmatprep.mubr.bf16.mxu0 %v2641
        %3327 = vmatmul.mubr.bf16.gmra.mrb[0].mxu0 %v2760
        %v3328 = vpop.f32.mrb[0].mxu0
        %v3329 = vadd.f32 %v3168, %v3328
        %v3330 = vpop.f32.mrb[0].mxu0
        %v3331 = vpop.f32.mrb[0].mxu0
        %v3332 = vadd.f32 %v3171, %v3331
        %v3333 = vpop.f32.mrb[0].mxu0
        %3334 = vmatprep.mubr.bf16.mxu0 %v2644
        %3335 = vmatmul.mubr.bf16.gmra.mrb[0].mxu0 %v2764
        %v3336 = vpop.f32.mrb[0].mxu0
        %v3337 = vadd.f32 %v3176, %v3336
        %v3338 = vpop.f32.mrb[0].mxu0
        %v3339 = vpop.f32.mrb[0].mxu0
        %v3340 = vadd.f32 %v3179, %v3339
        %v3341 = vpop.f32.mrb[0].mxu0
        %3342 = vmatprep.mubr.bf16.mxu0 %v2775
        %3343 = vmatmul.mubr.bf16.gmra.mrb[0].mxu0 %v2768
        %v3344 = vpop.f32.mrb[0].mxu0
        %v3345 = vadd.f32 %v3184, %v3344
        %v3346 = vpop.f32.mrb[0].mxu0
        %v3347 = vpop.f32.mrb[0].mxu0
        %v3348 = vadd.f32 %v3187, %v3347
        %v3349 = vpop.f32.mrb[0].mxu0
        %3350 = vmatprep.mubr.bf16.mxu0 %v2778
        %3351 = vmatmul.mubr.bf16.gmra.mrb[0].mxu0 %v2772
        %v3352 = vpop.f32.mrb[0].mxu0
        %v3353 = vadd.f32 %v3192, %v3352
        %v3354 = vpop.f32.mrb[0].mxu0
        %v3355 = vpop.f32.mrb[0].mxu0
        %v3356 = vadd.f32 %v3195, %v3355
        %v3357 = vpop.f32.mrb[0].mxu0
        %3358 = vdwg.mxu0
        %3359 = vmatprep.subr.bf16.mxu0 0
        %3360 = vmatpush1.bf16.msra.mxu0 %v2963
        %3361 = vmatprep.subr.bf16.mxu0 0
        %3362 = vmatpush1.bf16.msra.mxu0 %v2964
        %3363 = vmatprep.subr.bf16.mxu0 0
        %3364 = vmatpush1.bf16.msra.mxu0 %v2965
        %3365 = vmatprep.subr.bf16.mxu0 0
        %3366 = vmatpush1.bf16.msra.mxu0 %v2966
        %3367 = vmatprep.subr.bf16.mxu0 0
        %3368 = vmatpush1.bf16.msra.mxu0 0
        %3369 = vmatprep.subr.bf16.mxu0 0
        %3370 = vmatpush1.bf16.msra.mxu0 0
        %3371 = vmatprep.subr.bf16.mxu0 0
        %3372 = vmatpush1.bf16.msra.mxu0 0
        %3373 = vmatprep.subr.bf16.mxu0 0
        %3374 = vmatpush1.bf16.msra.mxu0 0
        %3375 = vmatprep.subr.bf16.mxu0 0
        %3376 = vmatpush1.bf16.msra.mxu0 0
        %3377 = vmatprep.subr.bf16.mxu0 0
        %3378 = vmatpush1.bf16.msra.mxu0 0
        %3379 = vmatprep.subr.bf16.mxu0 0
        %3380 = vmatpush1.bf16.msra.mxu0 0
        %3381 = vmatprep.subr.bf16.mxu0 0
        %3382 = vmatpush1.bf16.msra.mxu0 0
        %3383 = vmatprep.subr.bf16.mxu0 0
        %3384 = vmatpush1.bf16.msra.mxu0 0
        %3385 = vmatprep.subr.bf16.mxu0 0
        %3386 = vmatpush1.bf16.msra.mxu0 0
        %3387 = vmatprep.subr.bf16.mxu0 0
        %3388 = vmatpush1.bf16.msra.mxu0 0
        %3389 = vmatprep.subr.bf16.mxu0 0
        %3390 = vmatpush1.bf16.msra.mxu0 0
        %3391 = vmatprep.mubr.bf16.mxu0 0
        %3392 = vmatmul.mubr.bf16.gmra.mrb[0].mxu0 %v3003
        %v3393 = vpop.f32.mrb[0].mxu0
        %v3394 = vadd.f32 %v3233, %v3393
        %v3395 = vpop.f32.mrb[0].mxu0
        %v3396 = vpop.f32.mrb[0].mxu0
        %v3397 = vadd.f32 %v3236, %v3396
        %v3398 = vpop.f32.mrb[0].mxu0
        %3399 = vmatprep.mubr.bf16.mxu0 0
        %3400 = vmatmul.mubr.bf16.gmra.mrb[0].mxu0 %v3005
        %v3401 = vpop.f32.mrb[0].mxu0
        %v3402 = vadd.f32 %v3241, %v3401
        %v3403 = vpop.f32.mrb[0].mxu0
        %v3404 = vpop.f32.mrb[0].mxu0
        %v3405 = vadd.f32 %v3244, %v3404
        %v3406 = vpop.f32.mrb[0].mxu0
        %3407 = vmatprep.mubr.bf16.mxu0 0
        %3408 = vmatmul.mubr.bf16.gmra.mrb[0].mxu0 %v3007
        %v3409 = vpop.f32.mrb[0].mxu0
        %v3410 = vadd.f32 %v3249, %v3409
        %v3411 = vpop.f32.mrb[0].mxu0
        %v3412 = vpop.f32.mrb[0].mxu0
        %v3413 = vadd.f32 %v3252, %v3412
        %v3414 = vpop.f32.mrb[0].mxu0
        %3415 = vmatprep.mubr.bf16.mxu0 0
        %3416 = vmatmul.mubr.bf16.gmra.mrb[0].mxu0 %v3009
        %v3417 = vpop.f32.mrb[0].mxu0
        %v3418 = vadd.f32 %v3257, %v3417
        %v3419 = vpop.f32.mrb[0].mxu0
        %v3420 = vpop.f32.mrb[0].mxu0
        %v3421 = vadd.f32 %v3260, %v3420
        %v3422 = vpop.f32.mrb[0].mxu0
        %3423 = vmatprep.mubr.bf16.mxu0 0
        %3424 = vmatmul.mubr.bf16.gmra.mrb[0].mxu0 %v3011
        %v3425 = vpop.f32.mrb[0].mxu0
        %v3426 = vadd.f32 %v3265, %v3425
        %v3427 = vpop.f32.mrb[0].mxu0
        %v3428 = vpop.f32.mrb[0].mxu0
        %v3429 = vadd.f32 %v3268, %v3428
        %v3430 = vpop.f32.mrb[0].mxu0
        %3431 = vmatprep.mubr.bf16.mxu0 0
        %3432 = vmatmul.mubr.bf16.gmra.mrb[0].mxu0 %v3013
        %v3433 = vpop.f32.mrb[0].mxu0
        %v3434 = vadd.f32 %v3273, %v3433
        %v3435 = vpop.f32.mrb[0].mxu0
        %v3436 = vpop.f32.mrb[0].mxu0
        %v3437 = vadd.f32 %v3276, %v3436
        %v3438 = vpop.f32.mrb[0].mxu0
        %3439 = vmatprep.mubr.bf16.mxu0 0
        %3440 = vmatmul.mubr.bf16.gmra.mrb[0].mxu0 %v3015
        %v3441 = vpop.f32.mrb[0].mxu0
        %v3442 = vadd.f32 %v3281, %v3441
        %v3443 = vpop.f32.mrb[0].mxu0
        %v3444 = vpop.f32.mrb[0].mxu0
        %v3445 = vadd.f32 %v3284, %v3444
        %v3446 = vpop.f32.mrb[0].mxu0
        %3447 = vmatprep.mubr.bf16.mxu0 0
        %3448 = vmatmul.mubr.bf16.gmra.mrb[0].mxu0 %v3017
        %v3449 = vpop.f32.mrb[0].mxu0
        %v3450 = vadd.f32 %v3289, %v3449
        %v3451 = vpop.f32.mrb[0].mxu0
        %v3452 = vpop.f32.mrb[0].mxu0
        %v3453 = vadd.f32 %v3292, %v3452
        %v3454 = vpop.f32.mrb[0].mxu0
        %3455 = vmatprep.mubr.bf16.mxu0 0
        %3456 = vmatmul.mubr.bf16.gmra.mrb[0].mxu0 %v3019
        %v3457 = vpop.f32.mrb[0].mxu0
        %v3458 = vadd.f32 %v3297, %v3457
        %v3459 = vpop.f32.mrb[0].mxu0
        %v3460 = vpop.f32.mrb[0].mxu0
        %v3461 = vadd.f32 %v3300, %v3460
        %v3462 = vpop.f32.mrb[0].mxu0
        %3463 = vmatprep.mubr.bf16.mxu0 0
        %3464 = vmatmul.mubr.bf16.gmra.mrb[0].mxu0 %v3021
        %v3465 = vpop.f32.mrb[0].mxu0
        %v3466 = vadd.f32 %v3305, %v3465
        %v3467 = vpop.f32.mrb[0].mxu0
        %v3468 = vpop.f32.mrb[0].mxu0
        %v3469 = vadd.f32 %v3308, %v3468
        %v3470 = vpop.f32.mrb[0].mxu0
        %3471 = vmatprep.mubr.bf16.mxu0 0
        %3472 = vmatmul.mubr.bf16.gmra.mrb[0].mxu0 %v3023
        %v3473 = vpop.f32.mrb[0].mxu0
        %v3474 = vadd.f32 %v3313, %v3473
        %v3475 = vpop.f32.mrb[0].mxu0
        %v3476 = vpop.f32.mrb[0].mxu0
        %v3477 = vadd.f32 %v3316, %v3476
        %v3478 = vpop.f32.mrb[0].mxu0
        %3479 = vmatprep.mubr.bf16.mxu0 0
        %3480 = vmatmul.mubr.bf16.gmra.mrb[0].mxu0 %v3025
        %v3481 = vpop.f32.mrb[0].mxu0
        %v3482 = vadd.f32 %v3321, %v3481
        %v3483 = vpop.f32.mrb[0].mxu0
        %v3484 = vpop.f32.mrb[0].mxu0
        %v3485 = vadd.f32 %v3324, %v3484
        %v3486 = vpop.f32.mrb[0].mxu0
        %3487 = vmatprep.mubr.bf16.mxu0 0
        %3488 = vmatmul.mubr.bf16.gmra.mrb[0].mxu0 %v3027
        %v3489 = vpop.f32.mrb[0].mxu0
        %v3490 = vadd.f32 %v3329, %v3489
        %v3491 = vpop.f32.mrb[0].mxu0
        %v3492 = vpop.f32.mrb[0].mxu0
        %v3493 = vadd.f32 %v3332, %v3492
        %v3494 = vpop.f32.mrb[0].mxu0
        %3495 = vmatprep.mubr.bf16.mxu0 0
        %3496 = vmatmul.mubr.bf16.gmra.mrb[0].mxu0 %v3029
        %v3497 = vpop.f32.mrb[0].mxu0
        %v3498 = vadd.f32 %v3337, %v3497
        %v3499 = vpop.f32.mrb[0].mxu0
        %v3500 = vpop.f32.mrb[0].mxu0
        %v3501 = vadd.f32 %v3340, %v3500
        %v3502 = vpop.f32.mrb[0].mxu0
        %3503 = vmatprep.mubr.bf16.mxu0 0
        %3504 = vmatmul.mubr.bf16.gmra.mrb[0].mxu0 %v3032
        %v3505 = vpop.f32.mrb[0].mxu0
        %v3506 = vadd.f32 %v3345, %v3505
        %v3507 = vpop.f32.mrb[0].mxu0
        %v3508 = vpop.f32.mrb[0].mxu0
        %v3509 = vadd.f32 %v3348, %v3508
        %v3510 = vpop.f32.mrb[0].mxu0
        %3511 = vmatprep.mubr.bf16.mxu0 0
        %3512 = vmatmul.mubr.bf16.gmra.mrb[0].mxu0 %v3035
        %v3513 = vpop.f32.mrb[0].mxu0
        %v3514 = vadd.f32 %v3353, %v3513
        %v3515 = vpop.f32.mrb[0].mxu0
        %v3516 = vpop.f32.mrb[0].mxu0
        %v3517 = vadd.f32 %v3356, %v3516
        %v3518 = vpop.f32.mrb[0].mxu0
        %3519 = vdwg.mxu0
        %v3520 = vadd.f32 %v3394, %v298
        %v3521 = vadd.f32 %v3397, %v299
        %v3522 = vadd.f32 %v3402, %v300
        %v3523 = vadd.f32 %v3405, %v301
        %v3524 = vadd.f32 %v3410, %v302
        %v3525 = vadd.f32 %v3413, %v303
        %v3526 = vadd.f32 %v3418, %v304
        %v3527 = vadd.f32 %v3421, %v305
        %v3528 = vadd.f32 %v3426, %v306
        %v3529 = vadd.f32 %v3429, %v307
        %v3530 = vadd.f32 %v3434, %v308
        %v3531 = vadd.f32 %v3437, %v309
        %v3532 = vadd.f32 %v3442, %v310
        %v3533 = vadd.f32 %v3445, %v311
        %v3534 = vadd.f32 %v3450, %v312
        %v3535 = vadd.f32 %v3453, %v313
        %v3536 = vadd.f32 %v3458, %v314
        %v3537 = vadd.f32 %v3461, %v315
        %v3538 = vadd.f32 %v3466, %v316
        %v3539 = vadd.f32 %v3469, %v317
        %v3540 = vadd.f32 %v3474, %v318
        %v3541 = vadd.f32 %v3477, %v319
        %v3542 = vadd.f32 %v3482, %v320
        %v3543 = vadd.f32 %v3485, %v321
        %v3544 = vadd.f32 %v3490, %v322
        %v3545 = vadd.f32 %v3493, %v323
        %v3546 = vadd.f32 %v3498, %v324
        %v3547 = vadd.f32 %v3501, %v325
        %v3548 = vadd.f32 %v3506, %v326
        %v3549 = vadd.f32 %v3509, %v327
        %v3550 = vadd.f32 %v3514, %v328
        %v3551 = vadd.f32 %v3517, %v329
        %3552 = vst.msk [vmem:[%s296] sm:$0xff] %vm330, %v3520
        %3553 = vst.msk [vmem:[%s296 + $0x8] sm:$0xff] %vm330, %v3521
        %3554 = vst.msk [vmem:[%s296 + $0x10] sm:$0xff] %vm330, %v3522
        %3555 = vst.msk [vmem:[%s296 + $0x18] sm:$0xff] %vm330, %v3523
        %3556 = vst.msk [vmem:[%s296 + $0x20] sm:$0xff] %vm330, %v3524
        %3557 = vst.msk [vmem:[%s296 + $0x28] sm:$0xff] %vm330, %v3525
        %3558 = vst.msk [vmem:[%s296 + $0x30] sm:$0xff] %vm330, %v3526
        %3559 = vst.msk [vmem:[%s296 + $0x38] sm:$0xff] %vm330, %v3527
        %3560 = vst.msk [vmem:[%s296 + $0x40] sm:$0xff] %vm330, %v3528
        %3561 = vst.msk [vmem:[%s296 + $0x48] sm:$0xff] %vm330, %v3529
        %3562 = vst.msk [vmem:[%s296 + $0x50] sm:$0xff] %vm330, %v3530
        %3563 = vst.msk [vmem:[%s296 + $0x58] sm:$0xff] %vm330, %v3531
        %3564 = vst.msk [vmem:[%s296 + $0x60] sm:$0xff] %vm330, %v3532
        %3565 = vst.msk [vmem:[%s296 + $0x68] sm:$0xff] %vm330, %v3533
        %3566 = vst.msk [vmem:[%s296 + $0x70] sm:$0xff] %vm330, %v3534
        %3567 = vst.msk [vmem:[%s296 + $0x78] sm:$0xff] %vm330, %v3535
        %3568 = vst.msk [vmem:[%s296 + $0x80] sm:$0xff] %vm330, %v3536
        %3569 = vst.msk [vmem:[%s296 + $0x88] sm:$0xff] %vm330, %v3537
        %3570 = vst.msk [vmem:[%s296 + $0x90] sm:$0xff] %vm330, %v3538
        %3571 = vst.msk [vmem:[%s296 + $0x98] sm:$0xff] %vm330, %v3539
        %3572 = vst.msk [vmem:[%s296 + $0xa0] sm:$0xff] %vm330, %v3540
        %3573 = vst.msk [vmem:[%s296 + $0xa8] sm:$0xff] %vm330, %v3541
        %3574 = vst.msk [vmem:[%s296 + $0xb0] sm:$0xff] %vm330, %v3542
        %3575 = vst.msk [vmem:[%s296 + $0xb8] sm:$0xff] %vm330, %v3543
        %3576 = vst.msk [vmem:[%s296 + $0xc0] sm:$0xff] %vm330, %v3544
        %3577 = vst.msk [vmem:[%s296 + $0xc8] sm:$0xff] %vm330, %v3545
        %3578 = vst.msk [vmem:[%s296 + $0xd0] sm:$0xff] %vm330, %v3546
        %3579 = vst.msk [vmem:[%s296 + $0xd8] sm:$0xff] %vm330, %v3547
        %3580 = vst.msk [vmem:[%s296 + $0xe0] sm:$0xff] %vm330, %v3548
        %3581 = vst.msk [vmem:[%s296 + $0xe8] sm:$0xff] %vm330, %v3549
        %3582 = vst.msk [vmem:[%s296 + $0xf0] sm:$0xff] %vm330, %v3550
        %3583 = vst.msk [vmem:[%s296 + $0xf8] sm:$0xff] %vm330, %v3551
        %s3584 = sand.u32 %s142, 1
        %s3585 = scalar_lea.sflag [#allocation6], %s3584
        %s3586 = sand.u32 %s142, 1
        %s3587 = smul.addr %s3586, 256
        %s3588 = scalar_lea.vmem [#allocation13], %s3587
        // Predicated region
        $region61: #{rb_forward.1} parent=39 // pred_check
          %p3589 = pneg %p152
        $region62: #{rb_forward.1} parent=39 // pred_check_branch
          %3591 = sbr.rel (%p3589) target = $region64
        $region63: #{rb_forward.1} parent=39 // pred_region
          %s3593 = ssub.s32 4096, 4096
          %3594 = vsyncadd %s3585, %s3593
          %s3595 = smul.addr %s24, 32
          %s3596 = smul.addr %s3595, 128
          %s3597 = scalar_lea.hbm %s5, %s3596
          %s3598 = sshll.u32 %s3588, 4
          %s3599 = int_to_ptr.vmem [resolvable:$true] %s3598
          %3604 = dma.vmem_to_hbm [thread:$0]  %s3599, 4096, %s3597, %s3585, 128, 128, 8
        $region64: #{rb_forward.1} parent=39 // pred_fallthru
          _
      $region40: #{rb_forward.1} parent=5 // pred_fallthru
        _
      %p3605 = scmp.le.s32.totalorder 2, %s19
      // Predicated region
      $region65: #{rb_forward.1} parent=5 // pred_check
        %p3606 = pneg %p3605
      $region66: #{rb_forward.1} parent=5 // pred_check_branch
        %3608 = sbr.rel (%p3606) target = $region68
      $region67: #{rb_forward.1} parent=5 // pred_region
        %s3609 = ssub.s32 %s19, 2
        // Predicated region
        $region69: #{rb_forward.1} parent=67 // pred_check
          %p3610 = pneg %p158
        $region70: #{rb_forward.1} parent=67 // pred_check_branch
          %3612 = sbr.rel (%p3610) target = $region72
        $region71: #{rb_forward.1} parent=67 // pred_region
          %s3613 = sand.u32 %s143, 1
          %s3614 = scalar_lea.sflag [#allocation6], %s3613
          %s3615 = sand.u32 %s143, 1
          %s3616 = smul.addr %s3615, 256
          %s3617 = scalar_lea.vmem [#allocation13], %s3616
          %3618 = dma.done %s3614, 4096
        $region72: #{rb_forward.1} parent=67 // pred_fallthru
          _
      $region68: #{rb_forward.1} parent=5 // pred_fallthru
        _
    $region6: #{rb_forward.1} parent=1 // loop_footer
      %s23 = sadd.s32 1, %s19
    $region7: #{rb_forward.1} parent=1 // loop_footer_branch
      %18 = sbr.rel target = $region3
    $region8: #{rb_forward.1} parent=1 // loop_exit
      _
    %3619 = vsyncpa [#allocation5], 1
    %s3620 = scalar_lea.sflag [#allocation5], 1
    %3621 = vsyncpa %s3620, 1
    %3622 = vsyncpa [#allocation8], 1
    %3623 = vsyncpa [#allocation11], 1
    %3624 = vsyncpa [#allocation6], 1
    %s3625 = scalar_lea.sflag [#allocation6], 1
    %3626 = vsyncpa %s3625, 1

</llo_original>
